<compile_context>
chip_gen: v7x
topology: tpu7x:2x2x1
jax: 0.10.0
libtpu: 0.0.40
codegen_flags: <defaults>
</compile_context>

<pallas_src>
import functools

import jax
import jax.numpy as jnp
from jax import lax
from jax.experimental import pallas as pl
from jax.experimental.pallas import tpu as pltpu


def _mish(x):
    return x * jnp.tanh(jax.nn.softplus(x))


def _mel_style_encoder_kernel(
    # scalar prefetch
    lengths_ref,
    # per-batch inputs
    mel_ref, spk_ref,
    # weights (shared across the grid; grid-invariant blocks)
    fc1_w, fc1_b, sp1_w, sp1_b, sp2_w, sp2_b,
    cv1_w, cv1_b, cv2_w, cv2_b,
    wqkv, bqkv, wo, bo,
    spk_w1, spk_b1, spk_w2, spk_b2,
    fc2_w, fc2_b,
    # output
    gst_ref,
    # scratch
    xp_scratch,
    *, d_model, n_head, d_k, d_v, seq_len,
):
    T = seq_len
    d = d_model
    mm = jnp.bfloat16   # matmul operand dtype (MXU); accumulation stays f32

    # ---- masks built in-kernel from the prefetched lengths ----
    length = lengths_ref[pl.program_id(0)]
    t_col = lax.broadcasted_iota(jnp.int32, (T, 1), 0)
    t_row = lax.broadcasted_iota(jnp.int32, (1, T), 1)
    mc = (t_col < length).astype(jnp.float32)     # (T, 1) valid-time mask
    key_valid = t_row < length                    # (1, T) attention key mask

    def linear(v, w_ref, b_ref):
        return jnp.dot(v.astype(mm), w_ref[...],
                       preferred_element_type=jnp.float32) + b_ref[...]

    # ---- fc_1 + spectral_stack (Linear + Mish) ----
    h = _mish(linear(mel_ref[0], fc1_w, fc1_b))
    h = _mish(linear(h, sp1_w, sp1_b))
    h = _mish(linear(h, sp2_w, sp2_b))
    h = h * mc                                    # conv_mask before temporal stack

    # ---- temporal_stack: Conv1d(k=5, pad=2) -> Mish -> Dropout(id) -> GLU ----
    # The zero-padded sequence lives in xp_scratch rows [2, T+2).  The 4 pad
    # rows are never written by the conv loop, so zero them ONCE per grid step
    # (unconditionally: with "parallel" megacore sharding each core owns its
    # own scratch and may never execute program_id == 0).
    zero_rows = jnp.zeros((2, d), jnp.float32)
    xp_scratch[pl.ds(0, 2), :] = zero_rows
    xp_scratch[pl.ds(T + 2, 2), :] = zero_rows

    for cw_ref, cb_ref in ((cv1_w, cv1_b), (cv2_w, cv2_b)):
        xp_scratch[pl.ds(2, T), :] = h
        # center tap uses h directly (no scratch reload); bias added once at end
        acc = jnp.dot(h.astype(mm), cw_ref[2], preferred_element_type=jnp.float32)
        for k in (0, 1, 3, 4):
            acc = acc + jnp.dot(xp_scratch[pl.ds(k, T), :].astype(mm), cw_ref[k],
                                preferred_element_type=jnp.float32)
        g = _mish(acc + cb_ref[...])
        # GLU over the channel axis (PyTorch dim=1 in NCT layout)
        glu = g[:, :d] * jax.nn.sigmoid(g[:, d:])
        h = (h + glu) * mc

    # ---- speaker_biases: Linear -> ReLU -> Linear, take chunk 0 ----
    s1 = jax.nn.relu(linear(spk_ref[0], spk_w1, spk_b1))
    s2 = linear(s1, spk_w2, spk_b2)
    spk_bias = s2[:, :d]                          # (1, d_model)

    # ---- self-attention (1 layer, n_head heads) ----
    residual = h
    # fused q|k|v projection; 1/sqrt(d_k) already folded into the q weights.
    qkv = linear(h, wqkv, bqkv)                   # (T, 2*n_head*d_k + n_head*d_v)
    nq = n_head * d_k
    ctx_heads = []
    for hd in range(n_head):
        qh = qkv[:, hd * d_k:(hd + 1) * d_k].astype(mm)
        kh = qkv[:, nq + hd * d_k:nq + (hd + 1) * d_k].astype(mm)
        vh = qkv[:, 2 * nq + hd * d_v:2 * nq + (hd + 1) * d_v].astype(mm)
        scores = lax.dot_general(qh, kh, (((1,), (1,)), ((), ())),
                                 preferred_element_type=jnp.float32)   # (T, T)
        scores = jnp.where(key_valid, scores, -1e30)  # mask==1 -> valid key (f32)
        m = jnp.max(scores, axis=-1, keepdims=True)
        p = jnp.exp(scores - m)
        denom = jnp.sum(p, axis=-1, keepdims=True)
        p = p * pl.reciprocal(denom, approx=True)
        ctx_heads.append(jnp.dot(p.astype(mm), vh,
                                 preferred_element_type=jnp.float32))  # (T, d_v)
    # single fused output projection over all heads
    ctx = jnp.concatenate(ctx_heads, axis=-1).astype(mm)               # (T, n_head*d_v)
    attn_out = jnp.dot(ctx, wo[...], preferred_element_type=jnp.float32) + bo[...]
    h = residual + attn_out + spk_bias

    # ---- fc_2 + Mish, masked mean pooling over time ----
    o = _mish(linear(h, fc2_w, fc2_b))            # (T, out_pad)  lane-dense
    num = jnp.sum(o * mc, axis=0, keepdims=True)  # (1, out_pad)
    den = jnp.sum(mc, axis=0, keepdims=True)      # (1, 1)
    gst_ref[0] = (num / den).astype(gst_ref.dtype)


def mel_style_encoder(mel, mask, spkr_vec, params, *, d_model, n_head, out_dim):
    N, T, mel_dim = mel.shape
    d_k = d_v = d_model // n_head
    spkr_hidden = spkr_vec.shape[-1]
    out_pad = ((out_dim + 127) // 128) * 128      # lane-dense output store

    # TODO(synk): lengths are recovered from the mask assuming a contiguous
    # length mask (the usual usage of this module); arbitrary masks would need
    # the full mask shipped instead of a scalar length.
    lengths = jnp.sum((mask > 0).astype(jnp.int32), axis=-1).astype(jnp.int32)

    f32, mm = jnp.float32, jnp.bfloat16
    inv_temp = 1.0 / (float(d_k) ** 0.5)

    # --- wrapper-side weight preprocessing (pure JAX, done once) ---
    wqkv = jnp.concatenate([params['wq'] * inv_temp, params['wk'], params['wv']], axis=1)
    bqkv = jnp.concatenate([params['bq'] * inv_temp, params['bk'], params['bv']], axis=1)
    fc2_w = jnp.zeros((d_model, out_pad), f32).at[:, :out_dim].set(params['fc2_w'])
    fc2_b = jnp.zeros((1, out_pad), f32).at[:, :out_dim].set(params['fc2_b'])

    def w(x):  # matmul operands -> bf16 (halves weight DMA/VMEM, full MXU rate)
        return x.astype(mm)

    def b(x):  # biases stay f32 (added to f32 accumulators)
        return x.astype(f32)

    weights = (
        w(params['fc1_w']), b(params['fc1_b']),
        w(params['sp1_w']), b(params['sp1_b']),
        w(params['sp2_w']), b(params['sp2_b']),
        w(params['cv1_w']), b(params['cv1_b']),
        w(params['cv2_w']), b(params['cv2_b']),
        w(wqkv), b(bqkv), w(params['wo']), b(params['bo']),
        w(params['spk_w1']), b(params['spk_b1']),
        w(params['spk_w2']), b(params['spk_b2']),
        w(fc2_w), b(fc2_b),
    )

    def full_spec(shape):
        nd = len(shape)
        return pl.BlockSpec(shape, lambda i, lens, _n=nd: (0,) * _n)

    batch_specs = [
        pl.BlockSpec((1, T, mel_dim), lambda i, lens: (i, 0, 0)),
        pl.BlockSpec((1, 1, spkr_hidden), lambda i, lens: (i, 0, 0)),
    ]
    weight_specs = [full_spec(x.shape) for x in weights]

    kernel = functools.partial(
        _mel_style_encoder_kernel,
        d_model=d_model, n_head=n_head, d_k=d_k, d_v=d_v, seq_len=T)

    gst = pl.pallas_call(
        kernel,
        out_shape=jax.ShapeDtypeStruct((N, 1, out_pad), jnp.float32),
        grid_spec=pltpu.PrefetchScalarGridSpec(
            num_scalar_prefetch=1,
            grid=(N,),
            in_specs=batch_specs + weight_specs,
            out_specs=pl.BlockSpec((1, 1, out_pad), lambda i, lens: (i, 0, 0)),
            scratch_shapes=[pltpu.VMEM((T + 4, d_model), jnp.float32)],
        ),
        compiler_params=pltpu.CompilerParams(
            # "parallel" batch axis feeds both TensorCores on v7x when N >= 2.
            dimension_semantics=("parallel",),
            # explicit headroom; stays under v7x's 64 MiB physical VMEM.
            vmem_limit_bytes=48 * 1024 * 1024),
    )(lengths, mel.astype(mm), spkr_vec.astype(mm), *weights)
    return {'gst': gst[:, :, :out_dim]}


def init_params(key, mel_dim, d_model, spkr_hidden, out_dim, n_head):
    d_k = d_v = d_model // n_head
    n_slf_attn_layer = 1

    def xavier(k, fi, fo):
        lim = (6.0 / (fi + fo)) ** 0.5
        return jax.random.uniform(k, (fi, fo), jnp.float32, -lim, lim)

    def smallu(k, shape, scale=0.05):
        return jax.random.uniform(k, shape, jnp.float32, -scale, scale)

    ks = iter(jax.random.split(key, 24))
    p = {}
    p['fc1_w'] = xavier(next(ks), mel_dim, d_model)
    p['fc1_b'] = jnp.zeros((1, d_model), jnp.float32)       # nn.init.constant_(0.0)
    p['sp1_w'] = xavier(next(ks), d_model, d_model)
    p['sp1_b'] = smallu(next(ks), (1, d_model))
    p['sp2_w'] = xavier(next(ks), d_model, d_model)
    p['sp2_b'] = smallu(next(ks), (1, d_model))
    # conv weights stored as (K=5, C_in, C_out) = transpose of torch (C_out, C_in, K)
    p['cv1_w'] = smallu(next(ks), (5, d_model, 2 * d_model), 0.1)
    p['cv1_b'] = smallu(next(ks), (1, 2 * d_model))
    p['cv2_w'] = smallu(next(ks), (5, d_model, 2 * d_model), 0.1)
    p['cv2_b'] = smallu(next(ks), (1, 2 * d_model))
    p['wq'] = xavier(next(ks), d_model, n_head * d_k)
    p['bq'] = smallu(next(ks), (1, n_head * d_k))
    p['wk'] = xavier(next(ks), d_model, n_head * d_k)
    p['bk'] = smallu(next(ks), (1, n_head * d_k))
    p['wv'] = xavier(next(ks), d_model, n_head * d_v)
    p['bv'] = smallu(next(ks), (1, n_head * d_v))
    p['wo'] = xavier(next(ks), n_head * d_v, d_model)
    p['bo'] = smallu(next(ks), (1, d_model))
    p['spk_w1'] = xavier(next(ks), spkr_hidden, d_model)
    p['spk_b1'] = smallu(next(ks), (1, d_model))
    p['spk_w2'] = xavier(next(ks), d_model, n_slf_attn_layer * n_head * d_model)
    p['spk_b2'] = smallu(next(ks), (1, n_slf_attn_layer * n_head * d_model))
    p['fc2_w'] = xavier(next(ks), d_model, out_dim)
    p['fc2_b'] = jnp.zeros((1, out_dim), jnp.float32)        # nn.init.constant_(0.0)
    return p


def reference(mel, mask, spkr_vec, p, *, d_model, n_head):
    """Pure-JAX f32 reference mirroring the PyTorch forward (eval mode)."""
    d = d_model
    d_k = d_v = d // n_head
    N, T, _ = mel.shape
    mc = mask[:, :, None]
    mr = mask[:, None, :]
    h = _mish(mel @ p['fc1_w'] + p['fc1_b'])
    h = _mish(h @ p['sp1_w'] + p['sp1_b'])
    h = _mish(h @ p['sp2_w'] + p['sp2_b'])
    h = h * mc
    for cw, cb in ((p['cv1_w'], p['cv1_b']), (p['cv2_w'], p['cv2_b'])):
        res = h
        xp = jnp.pad(h, ((0, 0), (2, 2), (0, 0)))
        acc = jnp.zeros((N, T, 2 * d), jnp.float32) + cb
        for k in range(5):
            acc = acc + xp[:, k:k + T, :] @ cw[k]
        g = _mish(acc)
        y = g[..., :d] * jax.nn.sigmoid(g[..., d:])
        h = (res + y) * mc
    s1 = jax.nn.relu(spkr_vec @ p['spk_w1'] + p['spk_b1'])
    s2 = s1 @ p['spk_w2'] + p['spk_b2']
    bias0 = s2[..., :d]
    res = h
    q = h @ p['wq'] + p['bq']
    k_ = h @ p['wk'] + p['bk']
    v = h @ p['wv'] + p['bv']
    out = jnp.zeros((N, T, d), jnp.float32) + p['bo']
    for hd in range(n_head):
        qh = q[..., hd * d_k:(hd + 1) * d_k]
        kh = k_[..., hd * d_k:(hd + 1) * d_k]
        vh = v[..., hd * d_v:(hd + 1) * d_v]
        sc = jnp.einsum('nqd,nkd->nqk', qh, kh) / jnp.sqrt(jnp.float32(d_k))
        sc = jnp.where(mr > 0, sc, -1e30)
        attn_w = jax.nn.softmax(sc, axis=-1)
        ctx = attn_w @ vh
        out = out + ctx @ p['wo'][hd * d_v:(hd + 1) * d_v, :]
    h = res + out + bias0
    o = _mish(h @ p['fc2_w'] + p['fc2_b'])
    num = jnp.sum(o * mc, axis=1, keepdims=True)
    den = jnp.sum(mc, axis=1, keepdims=True)
    return num / den


if __name__ == "__main__":
    N, T = 2, 16
    mel_dim, d_model, spkr_hidden, out_dim = 20, 32, 16, 8
    n_head = 2

    key = jax.random.PRNGKey(0)
    k_mel, k_spk, k_par = jax.random.split(key, 3)
    mel = jax.random.normal(k_mel, (N, T, mel_dim), jnp.float32)
    lengths = jnp.array([T, T - 4], jnp.int32)
    mask = (jnp.arange(T)[None, :] < lengths[:, None]).astype(jnp.float32)  # 1 = valid
    spkr_vec = jax.random.normal(k_spk, (N, 1, spkr_hidden), jnp.float32)

    params = init_params(k_par, mel_dim, d_model, spkr_hidden, out_dim, n_head)

    out = mel_style_encoder(mel, mask, spkr_vec, params,
                            d_model=d_model, n_head=n_head, out_dim=out_dim)
    gst = jax.block_until_ready(out['gst'])
    assert gst.shape == (N, 1, out_dim), gst.shape

    # The kernel intentionally stores matmul weights/inputs in bf16 (with f32
    # accumulation).  To validate the kernel's structure/math rather than the
    # storage-precision choice, run the exact f32 reference on the same
    # bf16-rounded weights/inputs and compare with a modest tolerance (the
    # residual difference is in-kernel activation rounding + approx reciprocal).
    def _rt(x):
        return x.astype(jnp.bfloat16).astype(jnp.float32)

    mat_keys = ('fc1_w', 'sp1_w', 'sp2_w', 'cv1_w', 'cv2_w',
                'wq', 'wk', 'wv', 'wo', 'spk_w1', 'spk_w2', 'fc2_w')
    p_ref = {k: (_rt(v) if k in mat_keys else v) for k, v in params.items()}
    ref = jax.block_until_ready(
        reference(_rt(mel), mask, _rt(spkr_vec), p_ref,
                  d_model=d_model, n_head=n_head))
    assert jnp.allclose(gst, ref, rtol=5e-2, atol=3e-2), (gst, ref)

    print("KERNEL_OK")
</pallas_src>

<mosaic_0001>
module attributes {stable_mosaic.version = 11 : i64} {
  func.func @_mel_style_encoder_kernel(%arg0: i32, %arg1: memref<2xi32, #tpu.memory_space<smem>>, %arg2: memref<1x16x20xbf16, #tpu.memory_space<vmem>>, %arg3: memref<1x1x16xbf16, #tpu.memory_space<vmem>>, %arg4: memref<20x32xbf16, #tpu.memory_space<vmem>>, %arg5: memref<1x32xf32, #tpu.memory_space<vmem>>, %arg6: memref<32x32xbf16, #tpu.memory_space<vmem>>, %arg7: memref<1x32xf32, #tpu.memory_space<vmem>>, %arg8: memref<32x32xbf16, #tpu.memory_space<vmem>>, %arg9: memref<1x32xf32, #tpu.memory_space<vmem>>, %arg10: memref<5x32x64xbf16, #tpu.memory_space<vmem>>, %arg11: memref<1x64xf32, #tpu.memory_space<vmem>>, %arg12: memref<5x32x64xbf16, #tpu.memory_space<vmem>>, %arg13: memref<1x64xf32, #tpu.memory_space<vmem>>, %arg14: memref<32x96xbf16, #tpu.memory_space<vmem>>, %arg15: memref<1x96xf32, #tpu.memory_space<vmem>>, %arg16: memref<32x32xbf16, #tpu.memory_space<vmem>>, %arg17: memref<1x32xf32, #tpu.memory_space<vmem>>, %arg18: memref<16x32xbf16, #tpu.memory_space<vmem>>, %arg19: memref<1x32xf32, #tpu.memory_space<vmem>>, %arg20: memref<32x64xbf16, #tpu.memory_space<vmem>>, %arg21: memref<1x64xf32, #tpu.memory_space<vmem>>, %arg22: memref<32x128xbf16, #tpu.memory_space<vmem>>, %arg23: memref<1x128xf32, #tpu.memory_space<vmem>>, %arg24: memref<1x1x128xf32, #tpu.memory_space<vmem>>, %arg25: memref<20x32xf32, #tpu.memory_space<vmem>>) attributes {dimension_semantics = [#tpu.dimension_semantics<parallel>], iteration_bounds = array<i64: 2>, scalar_prefetch = 1 : i64, scratch_operands = 1 : i64, tpu.core_type = #tpu.core_type<tc>, window_params = [{transform_indices = @transform_0, window_bounds = array<i64: 1, 16, 20>}, {transform_indices = @transform_1, window_bounds = array<i64: 1, 1, 16>}, {pipeline_mode = #tpu.pipeline_mode<synchronous>, transform_indices = @transform_2, window_bounds = array<i64: 20, 32>}, {pipeline_mode = #tpu.pipeline_mode<synchronous>, transform_indices = @transform_3, window_bounds = array<i64: 1, 32>}, {pipeline_mode = #tpu.pipeline_mode<synchronous>, transform_indices = @transform_4, window_bounds = array<i64: 32, 32>}, {pipeline_mode = #tpu.pipeline_mode<synchronous>, transform_indices = @transform_5, window_bounds = array<i64: 1, 32>}, {pipeline_mode = #tpu.pipeline_mode<synchronous>, transform_indices = @transform_6, window_bounds = array<i64: 32, 32>}, {pipeline_mode = #tpu.pipeline_mode<synchronous>, transform_indices = @transform_7, window_bounds = array<i64: 1, 32>}, {pipeline_mode = #tpu.pipeline_mode<synchronous>, transform_indices = @transform_8, window_bounds = array<i64: 5, 32, 64>}, {pipeline_mode = #tpu.pipeline_mode<synchronous>, transform_indices = @transform_9, window_bounds = array<i64: 1, 64>}, {pipeline_mode = #tpu.pipeline_mode<synchronous>, transform_indices = @transform_10, window_bounds = array<i64: 5, 32, 64>}, {pipeline_mode = #tpu.pipeline_mode<synchronous>, transform_indices = @transform_11, window_bounds = array<i64: 1, 64>}, {pipeline_mode = #tpu.pipeline_mode<synchronous>, transform_indices = @transform_12, window_bounds = array<i64: 32, 96>}, {pipeline_mode = #tpu.pipeline_mode<synchronous>, transform_indices = @transform_13, window_bounds = array<i64: 1, 96>}, {pipeline_mode = #tpu.pipeline_mode<synchronous>, transform_indices = @transform_14, window_bounds = array<i64: 32, 32>}, {pipeline_mode = #tpu.pipeline_mode<synchronous>, transform_indices = @transform_15, window_bounds = array<i64: 1, 32>}, {pipeline_mode = #tpu.pipeline_mode<synchronous>, transform_indices = @transform_16, window_bounds = array<i64: 16, 32>}, {pipeline_mode = #tpu.pipeline_mode<synchronous>, transform_indices = @transform_17, window_bounds = array<i64: 1, 32>}, {pipeline_mode = #tpu.pipeline_mode<synchronous>, transform_indices = @transform_18, window_bounds = array<i64: 32, 64>}, {pipeline_mode = #tpu.pipeline_mode<synchronous>, transform_indices = @transform_19, window_bounds = array<i64: 1, 64>}, {pipeline_mode = #tpu.pipeline_mode<synchronous>, transform_indices = @transform_20, window_bounds = array<i64: 32, 128>}, {pipeline_mode = #tpu.pipeline_mode<synchronous>, transform_indices = @transform_21, window_bounds = array<i64: 1, 128>}, {transform_indices = @transform_22, window_bounds = array<i64: 1, 1, 128>}]} {
    %0 = arith.index_cast %arg0 : i32 to index
    %1 = memref.load %arg1[%0] : memref<2xi32, #tpu.memory_space<smem>>
    %2 = tpu.iota {dimensions = array<i32: 0>} : vector<16x1xi32>
    %3 = tpu.iota {dimensions = array<i32: 1>} : vector<1x16xi32>
    %4 = vector.broadcast %1 : i32 to vector<16x1xi32>
    %5 = arith.cmpi slt, %2, %4 : vector<16x1xi32>
    %6 = arith.extui %5 : vector<16x1xi1> to vector<16x1xi32>
    %7 = arith.sitofp %6 : vector<16x1xi32> to vector<16x1xf32>
    %8 = vector.broadcast %1 : i32 to vector<1x16xi32>
    %9 = arith.cmpi slt, %3, %8 : vector<1x16xi32>
    %c0 = arith.constant 0 : index
    %c0_0 = arith.constant 0 : index
    %c0_1 = arith.constant 0 : index
    %10 = vector.load %arg2[%c0, %c0_0, %c0_1] : memref<1x16x20xbf16, #tpu.memory_space<vmem>>, vector<1x16x20xbf16>
    %11 = vector.shape_cast %10 : vector<1x16x20xbf16> to vector<16x20xbf16>
    %c0_2 = arith.constant 0 : index
    %c0_3 = arith.constant 0 : index
    %12 = vector.load %arg4[%c0_2, %c0_3] : memref<20x32xbf16, #tpu.memory_space<vmem>>, vector<20x32xbf16>
    %cst = arith.constant dense<0.000000e+00> : vector<16x32xf32>
    %13 = tpu.matmul %11, %12, %cst {dimension_numbers = #tpu.dot_dimension_numbers<[1], [0], [0], [1], [0, 0, 1, 1], [], []>} : vector<16x20xbf16>, vector<20x32xbf16>, vector<16x32xf32> -> vector<16x32xf32>
    %c0_4 = arith.constant 0 : index
    %c0_5 = arith.constant 0 : index
    %14 = vector.load %arg5[%c0_4, %c0_5] : memref<1x32xf32, #tpu.memory_space<vmem>>, vector<1x32xf32>
    %15 = vector.broadcast %14 : vector<1x32xf32> to vector<16x32xf32>
    %16 = arith.addf %13, %15 : vector<16x32xf32>
    %cst_6 = arith.constant 0.000000e+00 : f32
    %17 = vector.broadcast %cst_6 : f32 to vector<16x32xf32>
    %18 = arith.maximumf %16, %17 : vector<16x32xf32>
    %19 = vector.broadcast %cst_6 : f32 to vector<16x32xf32>
    %20 = arith.subf %16, %19 : vector<16x32xf32>
    %21 = arith.cmpf one, %20, %20 : vector<16x32xf32>
    %22 = vector.broadcast %cst_6 : f32 to vector<16x32xf32>
    %23 = arith.addf %16, %22 : vector<16x32xf32>
    %24 = math.absf %20 : vector<16x32xf32>
    %cst_7 = arith.constant 0.000000e+00 : f32
    %25 = vector.broadcast %cst_7 : f32 to vector<16x32xf32>
    %26 = arith.subf %25, %24 : vector<16x32xf32>
    %27 = math.exp %26 : vector<16x32xf32>
    %28 = math.log1p %27 : vector<16x32xf32>
    %29 = arith.addf %18, %28 : vector<16x32xf32>
    %30 = arith.select %21, %23, %29 : vector<16x32xi1>, vector<16x32xf32>
    %31 = math.tanh %30 : vector<16x32xf32>
    %32 = arith.mulf %16, %31 : vector<16x32xf32>
    %33 = arith.truncf %32 : vector<16x32xf32> to vector<16x32xbf16>
    %c0_8 = arith.constant 0 : index
    %c0_9 = arith.constant 0 : index
    %34 = vector.load %arg6[%c0_8, %c0_9] : memref<32x32xbf16, #tpu.memory_space<vmem>>, vector<32x32xbf16>
    %cst_10 = arith.constant dense<0.000000e+00> : vector<16x32xf32>
    %35 = tpu.matmul %33, %34, %cst_10 {dimension_numbers = #tpu.dot_dimension_numbers<[1], [0], [0], [1], [0, 0, 1, 1], [], []>} : vector<16x32xbf16>, vector<32x32xbf16>, vector<16x32xf32> -> vector<16x32xf32>
    %c0_11 = arith.constant 0 : index
    %c0_12 = arith.constant 0 : index
    %36 = vector.load %arg7[%c0_11, %c0_12] : memref<1x32xf32, #tpu.memory_space<vmem>>, vector<1x32xf32>
    %37 = vector.broadcast %36 : vector<1x32xf32> to vector<16x32xf32>
    %38 = arith.addf %35, %37 : vector<16x32xf32>
    %cst_13 = arith.constant 0.000000e+00 : f32
    %39 = vector.broadcast %cst_13 : f32 to vector<16x32xf32>
    %40 = arith.maximumf %38, %39 : vector<16x32xf32>
    %41 = vector.broadcast %cst_13 : f32 to vector<16x32xf32>
    %42 = arith.subf %38, %41 : vector<16x32xf32>
    %43 = arith.cmpf one, %42, %42 : vector<16x32xf32>
    %44 = vector.broadcast %cst_13 : f32 to vector<16x32xf32>
    %45 = arith.addf %38, %44 : vector<16x32xf32>
    %46 = math.absf %42 : vector<16x32xf32>
    %cst_14 = arith.constant 0.000000e+00 : f32
    %47 = vector.broadcast %cst_14 : f32 to vector<16x32xf32>
    %48 = arith.subf %47, %46 : vector<16x32xf32>
    %49 = math.exp %48 : vector<16x32xf32>
    %50 = math.log1p %49 : vector<16x32xf32>
    %51 = arith.addf %40, %50 : vector<16x32xf32>
    %52 = arith.select %43, %45, %51 : vector<16x32xi1>, vector<16x32xf32>
    %53 = math.tanh %52 : vector<16x32xf32>
    %54 = arith.mulf %38, %53 : vector<16x32xf32>
    %55 = arith.truncf %54 : vector<16x32xf32> to vector<16x32xbf16>
    %c0_15 = arith.constant 0 : index
    %c0_16 = arith.constant 0 : index
    %56 = vector.load %arg8[%c0_15, %c0_16] : memref<32x32xbf16, #tpu.memory_space<vmem>>, vector<32x32xbf16>
    %cst_17 = arith.constant dense<0.000000e+00> : vector<16x32xf32>
    %57 = tpu.matmul %55, %56, %cst_17 {dimension_numbers = #tpu.dot_dimension_numbers<[1], [0], [0], [1], [0, 0, 1, 1], [], []>} : vector<16x32xbf16>, vector<32x32xbf16>, vector<16x32xf32> -> vector<16x32xf32>
    %c0_18 = arith.constant 0 : index
    %c0_19 = arith.constant 0 : index
    %58 = vector.load %arg9[%c0_18, %c0_19] : memref<1x32xf32, #tpu.memory_space<vmem>>, vector<1x32xf32>
    %59 = vector.broadcast %58 : vector<1x32xf32> to vector<16x32xf32>
    %60 = arith.addf %57, %59 : vector<16x32xf32>
    %cst_20 = arith.constant 0.000000e+00 : f32
    %61 = vector.broadcast %cst_20 : f32 to vector<16x32xf32>
    %62 = arith.maximumf %60, %61 : vector<16x32xf32>
    %63 = vector.broadcast %cst_20 : f32 to vector<16x32xf32>
    %64 = arith.subf %60, %63 : vector<16x32xf32>
    %65 = arith.cmpf one, %64, %64 : vector<16x32xf32>
    %66 = vector.broadcast %cst_20 : f32 to vector<16x32xf32>
    %67 = arith.addf %60, %66 : vector<16x32xf32>
    %68 = math.absf %64 : vector<16x32xf32>
    %cst_21 = arith.constant 0.000000e+00 : f32
    %69 = vector.broadcast %cst_21 : f32 to vector<16x32xf32>
    %70 = arith.subf %69, %68 : vector<16x32xf32>
    %71 = math.exp %70 : vector<16x32xf32>
    %72 = math.log1p %71 : vector<16x32xf32>
    %73 = arith.addf %62, %72 : vector<16x32xf32>
    %74 = arith.select %65, %67, %73 : vector<16x32xi1>, vector<16x32xf32>
    %75 = math.tanh %74 : vector<16x32xf32>
    %76 = arith.mulf %60, %75 : vector<16x32xf32>
    %77 = vector.broadcast %7 : vector<16x1xf32> to vector<16x32xf32>
    %78 = arith.mulf %76, %77 : vector<16x32xf32>
    %cst_22 = arith.constant 0.000000e+00 : f32
    %79 = vector.broadcast %cst_22 : f32 to vector<2x32xf32>
    %c0_23 = arith.constant 0 : index
    %c0_24 = arith.constant 0 : index
    %80 = vector.load %arg25[%c0_23, %c0_24] : memref<20x32xf32, #tpu.memory_space<vmem>>, vector<2x32xf32>
    tpu.vector_store %arg25[%c0_23, %c0_24], %79 {strides = array<i32>} : memref<20x32xf32, #tpu.memory_space<vmem>>, vector<2x32xf32>,
    %c18 = arith.constant 18 : index
    %c0_25 = arith.constant 0 : index
    %81 = vector.load %arg25[%c18, %c0_25] : memref<20x32xf32, #tpu.memory_space<vmem>>, vector<2x32xf32>
    tpu.vector_store %arg25[%c18, %c0_25], %79 {strides = array<i32>} : memref<20x32xf32, #tpu.memory_space<vmem>>, vector<2x32xf32>,
    %c2 = arith.constant 2 : index
    %c0_26 = arith.constant 0 : index
    %82 = vector.load %arg25[%c2, %c0_26] : memref<20x32xf32, #tpu.memory_space<vmem>>, vector<16x32xf32>
    tpu.vector_store %arg25[%c2, %c0_26], %78 {strides = array<i32>} : memref<20x32xf32, #tpu.memory_space<vmem>>, vector<16x32xf32>,
    %83 = arith.truncf %78 : vector<16x32xf32> to vector<16x32xbf16>
    %c2_27 = arith.constant 2 : index
    %c0_28 = arith.constant 0 : index
    %c0_29 = arith.constant 0 : index
    %84 = vector.load %arg10[%c2_27, %c0_28, %c0_29] : memref<5x32x64xbf16, #tpu.memory_space<vmem>>, vector<1x32x64xbf16>
    %85 = vector.shape_cast %84 : vector<1x32x64xbf16> to vector<32x64xbf16>
    %cst_30 = arith.constant dense<0.000000e+00> : vector<16x64xf32>
    %86 = tpu.matmul %83, %85, %cst_30 {dimension_numbers = #tpu.dot_dimension_numbers<[1], [0], [0], [1], [0, 0, 1, 1], [], []>} : vector<16x32xbf16>, vector<32x64xbf16>, vector<16x64xf32> -> vector<16x64xf32>
    %c0_31 = arith.constant 0 : index
    %c0_32 = arith.constant 0 : index
    %87 = vector.load %arg25[%c0_31, %c0_32] : memref<20x32xf32, #tpu.memory_space<vmem>>, vector<16x32xf32>
    %88 = arith.truncf %87 : vector<16x32xf32> to vector<16x32xbf16>
    %c0_33 = arith.constant 0 : index
    %c0_34 = arith.constant 0 : index
    %c0_35 = arith.constant 0 : index
    %89 = vector.load %arg10[%c0_33, %c0_34, %c0_35] : memref<5x32x64xbf16, #tpu.memory_space<vmem>>, vector<1x32x64xbf16>
    %90 = vector.shape_cast %89 : vector<1x32x64xbf16> to vector<32x64xbf16>
    %cst_36 = arith.constant dense<0.000000e+00> : vector<16x64xf32>
    %91 = tpu.matmul %88, %90, %cst_36 {dimension_numbers = #tpu.dot_dimension_numbers<[1], [0], [0], [1], [0, 0, 1, 1], [], []>} : vector<16x32xbf16>, vector<32x64xbf16>, vector<16x64xf32> -> vector<16x64xf32>
    %92 = arith.addf %86, %91 : vector<16x64xf32>
    %c1 = arith.constant 1 : index
    %c0_37 = arith.constant 0 : index
    %93 = vector.load %arg25[%c1, %c0_37] : memref<20x32xf32, #tpu.memory_space<vmem>>, vector<16x32xf32>
    %94 = arith.truncf %93 : vector<16x32xf32> to vector<16x32xbf16>
    %c1_38 = arith.constant 1 : index
    %c0_39 = arith.constant 0 : index
    %c0_40 = arith.constant 0 : index
    %95 = vector.load %arg10[%c1_38, %c0_39, %c0_40] : memref<5x32x64xbf16, #tpu.memory_space<vmem>>, vector<1x32x64xbf16>
    %96 = vector.shape_cast %95 : vector<1x32x64xbf16> to vector<32x64xbf16>
    %cst_41 = arith.constant dense<0.000000e+00> : vector<16x64xf32>
    %97 = tpu.matmul %94, %96, %cst_41 {dimension_numbers = #tpu.dot_dimension_numbers<[1], [0], [0], [1], [0, 0, 1, 1], [], []>} : vector<16x32xbf16>, vector<32x64xbf16>, vector<16x64xf32> -> vector<16x64xf32>
    %98 = arith.addf %92, %97 : vector<16x64xf32>
    %c3 = arith.constant 3 : index
    %c0_42 = arith.constant 0 : index
    %99 = vector.load %arg25[%c3, %c0_42] : memref<20x32xf32, #tpu.memory_space<vmem>>, vector<16x32xf32>
    %100 = arith.truncf %99 : vector<16x32xf32> to vector<16x32xbf16>
    %c3_43 = arith.constant 3 : index
    %c0_44 = arith.constant 0 : index
    %c0_45 = arith.constant 0 : index
    %101 = vector.load %arg10[%c3_43, %c0_44, %c0_45] : memref<5x32x64xbf16, #tpu.memory_space<vmem>>, vector<1x32x64xbf16>
    %102 = vector.shape_cast %101 : vector<1x32x64xbf16> to vector<32x64xbf16>
    %cst_46 = arith.constant dense<0.000000e+00> : vector<16x64xf32>
    %103 = tpu.matmul %100, %102, %cst_46 {dimension_numbers = #tpu.dot_dimension_numbers<[1], [0], [0], [1], [0, 0, 1, 1], [], []>} : vector<16x32xbf16>, vector<32x64xbf16>, vector<16x64xf32> -> vector<16x64xf32>
    %104 = arith.addf %98, %103 : vector<16x64xf32>
    %c4 = arith.constant 4 : index
    %c0_47 = arith.constant 0 : index
    %105 = vector.load %arg25[%c4, %c0_47] : memref<20x32xf32, #tpu.memory_space<vmem>>, vector<16x32xf32>
    %106 = arith.truncf %105 : vector<16x32xf32> to vector<16x32xbf16>
    %c4_48 = arith.constant 4 : index
    %c0_49 = arith.constant 0 : index
    %c0_50 = arith.constant 0 : index
    %107 = vector.load %arg10[%c4_48, %c0_49, %c0_50] : memref<5x32x64xbf16, #tpu.memory_space<vmem>>, vector<1x32x64xbf16>
    %108 = vector.shape_cast %107 : vector<1x32x64xbf16> to vector<32x64xbf16>
    %cst_51 = arith.constant dense<0.000000e+00> : vector<16x64xf32>
    %109 = tpu.matmul %106, %108, %cst_51 {dimension_numbers = #tpu.dot_dimension_numbers<[1], [0], [0], [1], [0, 0, 1, 1], [], []>} : vector<16x32xbf16>, vector<32x64xbf16>, vector<16x64xf32> -> vector<16x64xf32>
    %110 = arith.addf %104, %109 : vector<16x64xf32>
    %c0_52 = arith.constant 0 : index
    %c0_53 = arith.constant 0 : index
    %111 = vector.load %arg11[%c0_52, %c0_53] : memref<1x64xf32, #tpu.memory_space<vmem>>, vector<1x64xf32>
    %112 = vector.broadcast %111 : vector<1x64xf32> to vector<16x64xf32>
    %113 = arith.addf %110, %112 : vector<16x64xf32>
    %cst_54 = arith.constant 0.000000e+00 : f32
    %114 = vector.broadcast %cst_54 : f32 to vector<16x64xf32>
    %115 = arith.maximumf %113, %114 : vector<16x64xf32>
    %116 = vector.broadcast %cst_54 : f32 to vector<16x64xf32>
    %117 = arith.subf %113, %116 : vector<16x64xf32>
    %118 = arith.cmpf one, %117, %117 : vector<16x64xf32>
    %119 = vector.broadcast %cst_54 : f32 to vector<16x64xf32>
    %120 = arith.addf %113, %119 : vector<16x64xf32>
    %121 = math.absf %117 : vector<16x64xf32>
    %cst_55 = arith.constant 0.000000e+00 : f32
    %122 = vector.broadcast %cst_55 : f32 to vector<16x64xf32>
    %123 = arith.subf %122, %121 : vector<16x64xf32>
    %124 = math.exp %123 : vector<16x64xf32>
    %125 = math.log1p %124 : vector<16x64xf32>
    %126 = arith.addf %115, %125 : vector<16x64xf32>
    %127 = arith.select %118, %120, %126 : vector<16x64xi1>, vector<16x64xf32>
    %128 = math.tanh %127 : vector<16x64xf32>
    %129 = arith.mulf %113, %128 : vector<16x64xf32>
    %130 = vector.extract_strided_slice %129 {offsets = [0, 0], sizes = [16, 32], strides = [1, 1]} : vector<16x64xf32> to vector<16x32xf32>
    %131 = vector.extract_strided_slice %129 {offsets = [0, 32], sizes = [16, 32], strides = [1, 1]} : vector<16x64xf32> to vector<16x32xf32>
    %132 = arith.negf %131 : vector<16x32xf32>
    %133 = math.exp %132 : vector<16x32xf32>
    %cst_56 = arith.constant 1.000000e+00 : f32
    %134 = vector.broadcast %cst_56 : f32 to vector<16x32xf32>
    %135 = arith.addf %134, %133 : vector<16x32xf32>
    %136 = arith.divf %134, %135 : vector<16x32xf32>
    %137 = arith.mulf %130, %136 : vector<16x32xf32>
    %138 = arith.addf %78, %137 : vector<16x32xf32>
    %139 = vector.broadcast %7 : vector<16x1xf32> to vector<16x32xf32>
    %140 = arith.mulf %138, %139 : vector<16x32xf32>
    %c2_57 = arith.constant 2 : index
    %c0_58 = arith.constant 0 : index
    %141 = vector.load %arg25[%c2_57, %c0_58] : memref<20x32xf32, #tpu.memory_space<vmem>>, vector<16x32xf32>
    tpu.vector_store %arg25[%c2_57, %c0_58], %140 {strides = array<i32>} : memref<20x32xf32, #tpu.memory_space<vmem>>, vector<16x32xf32>,
    %142 = arith.truncf %140 : vector<16x32xf32> to vector<16x32xbf16>
    %c2_59 = arith.constant 2 : index
    %c0_60 = arith.constant 0 : index
    %c0_61 = arith.constant 0 : index
    %143 = vector.load %arg12[%c2_59, %c0_60, %c0_61] : memref<5x32x64xbf16, #tpu.memory_space<vmem>>, vector<1x32x64xbf16>
    %144 = vector.shape_cast %143 : vector<1x32x64xbf16> to vector<32x64xbf16>
    %cst_62 = arith.constant dense<0.000000e+00> : vector<16x64xf32>
    %145 = tpu.matmul %142, %144, %cst_62 {dimension_numbers = #tpu.dot_dimension_numbers<[1], [0], [0], [1], [0, 0, 1, 1], [], []>} : vector<16x32xbf16>, vector<32x64xbf16>, vector<16x64xf32> -> vector<16x64xf32>
    %c0_63 = arith.constant 0 : index
    %c0_64 = arith.constant 0 : index
    %146 = vector.load %arg25[%c0_63, %c0_64] : memref<20x32xf32, #tpu.memory_space<vmem>>, vector<16x32xf32>
    %147 = arith.truncf %146 : vector<16x32xf32> to vector<16x32xbf16>
    %c0_65 = arith.constant 0 : index
    %c0_66 = arith.constant 0 : index
    %c0_67 = arith.constant 0 : index
    %148 = vector.load %arg12[%c0_65, %c0_66, %c0_67] : memref<5x32x64xbf16, #tpu.memory_space<vmem>>, vector<1x32x64xbf16>
    %149 = vector.shape_cast %148 : vector<1x32x64xbf16> to vector<32x64xbf16>
    %cst_68 = arith.constant dense<0.000000e+00> : vector<16x64xf32>
    %150 = tpu.matmul %147, %149, %cst_68 {dimension_numbers = #tpu.dot_dimension_numbers<[1], [0], [0], [1], [0, 0, 1, 1], [], []>} : vector<16x32xbf16>, vector<32x64xbf16>, vector<16x64xf32> -> vector<16x64xf32>
    %151 = arith.addf %145, %150 : vector<16x64xf32>
    %c1_69 = arith.constant 1 : index
    %c0_70 = arith.constant 0 : index
    %152 = vector.load %arg25[%c1_69, %c0_70] : memref<20x32xf32, #tpu.memory_space<vmem>>, vector<16x32xf32>
    %153 = arith.truncf %152 : vector<16x32xf32> to vector<16x32xbf16>
    %c1_71 = arith.constant 1 : index
    %c0_72 = arith.constant 0 : index
    %c0_73 = arith.constant 0 : index
    %154 = vector.load %arg12[%c1_71, %c0_72, %c0_73] : memref<5x32x64xbf16, #tpu.memory_space<vmem>>, vector<1x32x64xbf16>
    %155 = vector.shape_cast %154 : vector<1x32x64xbf16> to vector<32x64xbf16>
    %cst_74 = arith.constant dense<0.000000e+00> : vector<16x64xf32>
    %156 = tpu.matmul %153, %155, %cst_74 {dimension_numbers = #tpu.dot_dimension_numbers<[1], [0], [0], [1], [0, 0, 1, 1], [], []>} : vector<16x32xbf16>, vector<32x64xbf16>, vector<16x64xf32> -> vector<16x64xf32>
    %157 = arith.addf %151, %156 : vector<16x64xf32>
    %c3_75 = arith.constant 3 : index
    %c0_76 = arith.constant 0 : index
    %158 = vector.load %arg25[%c3_75, %c0_76] : memref<20x32xf32, #tpu.memory_space<vmem>>, vector<16x32xf32>
    %159 = arith.truncf %158 : vector<16x32xf32> to vector<16x32xbf16>
    %c3_77 = arith.constant 3 : index
    %c0_78 = arith.constant 0 : index
    %c0_79 = arith.constant 0 : index
    %160 = vector.load %arg12[%c3_77, %c0_78, %c0_79] : memref<5x32x64xbf16, #tpu.memory_space<vmem>>, vector<1x32x64xbf16>
    %161 = vector.shape_cast %160 : vector<1x32x64xbf16> to vector<32x64xbf16>
    %cst_80 = arith.constant dense<0.000000e+00> : vector<16x64xf32>
    %162 = tpu.matmul %159, %161, %cst_80 {dimension_numbers = #tpu.dot_dimension_numbers<[1], [0], [0], [1], [0, 0, 1, 1], [], []>} : vector<16x32xbf16>, vector<32x64xbf16>, vector<16x64xf32> -> vector<16x64xf32>
    %163 = arith.addf %157, %162 : vector<16x64xf32>
    %c4_81 = arith.constant 4 : index
    %c0_82 = arith.constant 0 : index
    %164 = vector.load %arg25[%c4_81, %c0_82] : memref<20x32xf32, #tpu.memory_space<vmem>>, vector<16x32xf32>
    %165 = arith.truncf %164 : vector<16x32xf32> to vector<16x32xbf16>
    %c4_83 = arith.constant 4 : index
    %c0_84 = arith.constant 0 : index
    %c0_85 = arith.constant 0 : index
    %166 = vector.load %arg12[%c4_83, %c0_84, %c0_85] : memref<5x32x64xbf16, #tpu.memory_space<vmem>>, vector<1x32x64xbf16>
    %167 = vector.shape_cast %166 : vector<1x32x64xbf16> to vector<32x64xbf16>
    %cst_86 = arith.constant dense<0.000000e+00> : vector<16x64xf32>
    %168 = tpu.matmul %165, %167, %cst_86 {dimension_numbers = #tpu.dot_dimension_numbers<[1], [0], [0], [1], [0, 0, 1, 1], [], []>} : vector<16x32xbf16>, vector<32x64xbf16>, vector<16x64xf32> -> vector<16x64xf32>
    %169 = arith.addf %163, %168 : vector<16x64xf32>
    %c0_87 = arith.constant 0 : index
    %c0_88 = arith.constant 0 : index
    %170 = vector.load %arg13[%c0_87, %c0_88] : memref<1x64xf32, #tpu.memory_space<vmem>>, vector<1x64xf32>
    %171 = vector.broadcast %170 : vector<1x64xf32> to vector<16x64xf32>
    %172 = arith.addf %169, %171 : vector<16x64xf32>
    %cst_89 = arith.constant 0.000000e+00 : f32
    %173 = vector.broadcast %cst_89 : f32 to vector<16x64xf32>
    %174 = arith.maximumf %172, %173 : vector<16x64xf32>
    %175 = vector.broadcast %cst_89 : f32 to vector<16x64xf32>
    %176 = arith.subf %172, %175 : vector<16x64xf32>
    %177 = arith.cmpf one, %176, %176 : vector<16x64xf32>
    %178 = vector.broadcast %cst_89 : f32 to vector<16x64xf32>
    %179 = arith.addf %172, %178 : vector<16x64xf32>
    %180 = math.absf %176 : vector<16x64xf32>
    %cst_90 = arith.constant 0.000000e+00 : f32
    %181 = vector.broadcast %cst_90 : f32 to vector<16x64xf32>
    %182 = arith.subf %181, %180 : vector<16x64xf32>
    %183 = math.exp %182 : vector<16x64xf32>
    %184 = math.log1p %183 : vector<16x64xf32>
    %185 = arith.addf %174, %184 : vector<16x64xf32>
    %186 = arith.select %177, %179, %185 : vector<16x64xi1>, vector<16x64xf32>
    %187 = math.tanh %186 : vector<16x64xf32>
    %188 = arith.mulf %172, %187 : vector<16x64xf32>
    %189 = vector.extract_strided_slice %188 {offsets = [0, 0], sizes = [16, 32], strides = [1, 1]} : vector<16x64xf32> to vector<16x32xf32>
    %190 = vector.extract_strided_slice %188 {offsets = [0, 32], sizes = [16, 32], strides = [1, 1]} : vector<16x64xf32> to vector<16x32xf32>
    %191 = arith.negf %190 : vector<16x32xf32>
    %192 = math.exp %191 : vector<16x32xf32>
    %cst_91 = arith.constant 1.000000e+00 : f32
    %193 = vector.broadcast %cst_91 : f32 to vector<16x32xf32>
    %194 = arith.addf %193, %192 : vector<16x32xf32>
    %195 = arith.divf %193, %194 : vector<16x32xf32>
    %196 = arith.mulf %189, %195 : vector<16x32xf32>
    %197 = arith.addf %140, %196 : vector<16x32xf32>
    %198 = vector.broadcast %7 : vector<16x1xf32> to vector<16x32xf32>
    %199 = arith.mulf %197, %198 : vector<16x32xf32>
    %c0_92 = arith.constant 0 : index
    %c0_93 = arith.constant 0 : index
    %c0_94 = arith.constant 0 : index
    %200 = vector.load %arg3[%c0_92, %c0_93, %c0_94] : memref<1x1x16xbf16, #tpu.memory_space<vmem>>, vector<1x1x16xbf16>
    %201 = vector.shape_cast %200 : vector<1x1x16xbf16> to vector<1x16xbf16>
    %c0_95 = arith.constant 0 : index
    %c0_96 = arith.constant 0 : index
    %202 = vector.load %arg18[%c0_95, %c0_96] : memref<16x32xbf16, #tpu.memory_space<vmem>>, vector<16x32xbf16>
    %cst_97 = arith.constant dense<0.000000e+00> : vector<1x32xf32>
    %203 = tpu.matmul %201, %202, %cst_97 {dimension_numbers = #tpu.dot_dimension_numbers<[1], [0], [0], [1], [0, 0, 1, 1], [], []>} : vector<1x16xbf16>, vector<16x32xbf16>, vector<1x32xf32> -> vector<1x32xf32>
    %c0_98 = arith.constant 0 : index
    %c0_99 = arith.constant 0 : index
    %204 = vector.load %arg19[%c0_98, %c0_99] : memref<1x32xf32, #tpu.memory_space<vmem>>, vector<1x32xf32>
    %205 = arith.addf %203, %204 : vector<1x32xf32>
    %cst_100 = arith.constant 0.000000e+00 : f32
    %206 = vector.broadcast %cst_100 : f32 to vector<1x32xf32>
    %207 = arith.maximumf %205, %206 : vector<1x32xf32>
    %208 = arith.truncf %207 : vector<1x32xf32> to vector<1x32xbf16>
    %c0_101 = arith.constant 0 : index
    %c0_102 = arith.constant 0 : index
    %209 = vector.load %arg20[%c0_101, %c0_102] : memref<32x64xbf16, #tpu.memory_space<vmem>>, vector<32x64xbf16>
    %cst_103 = arith.constant dense<0.000000e+00> : vector<1x64xf32>
    %210 = tpu.matmul %208, %209, %cst_103 {dimension_numbers = #tpu.dot_dimension_numbers<[1], [0], [0], [1], [0, 0, 1, 1], [], []>} : vector<1x32xbf16>, vector<32x64xbf16>, vector<1x64xf32> -> vector<1x64xf32>
    %c0_104 = arith.constant 0 : index
    %c0_105 = arith.constant 0 : index
    %211 = vector.load %arg21[%c0_104, %c0_105] : memref<1x64xf32, #tpu.memory_space<vmem>>, vector<1x64xf32>
    %212 = arith.addf %210, %211 : vector<1x64xf32>
    %213 = vector.extract_strided_slice %212 {offsets = [0, 0], sizes = [1, 32], strides = [1, 1]} : vector<1x64xf32> to vector<1x32xf32>
    %214 = arith.truncf %199 : vector<16x32xf32> to vector<16x32xbf16>
    %c0_106 = arith.constant 0 : index
    %c0_107 = arith.constant 0 : index
    %215 = vector.load %arg14[%c0_106, %c0_107] : memref<32x96xbf16, #tpu.memory_space<vmem>>, vector<32x96xbf16>
    %cst_108 = arith.constant dense<0.000000e+00> : vector<16x96xf32>
    %216 = tpu.matmul %214, %215, %cst_108 {dimension_numbers = #tpu.dot_dimension_numbers<[1], [0], [0], [1], [0, 0, 1, 1], [], []>} : vector<16x32xbf16>, vector<32x96xbf16>, vector<16x96xf32> -> vector<16x96xf32>
    %c0_109 = arith.constant 0 : index
    %c0_110 = arith.constant 0 : index
    %217 = vector.load %arg15[%c0_109, %c0_110] : memref<1x96xf32, #tpu.memory_space<vmem>>, vector<1x96xf32>
    %218 = vector.broadcast %217 : vector<1x96xf32> to vector<16x96xf32>
    %219 = arith.addf %216, %218 : vector<16x96xf32>
    %220 = vector.extract_strided_slice %219 {offsets = [0, 0], sizes = [16, 16], strides = [1, 1]} : vector<16x96xf32> to vector<16x16xf32>
    %221 = arith.truncf %220 : vector<16x16xf32> to vector<16x16xbf16>
    %222 = vector.extract_strided_slice %219 {offsets = [0, 32], sizes = [16, 16], strides = [1, 1]} : vector<16x96xf32> to vector<16x16xf32>
    %223 = arith.truncf %222 : vector<16x16xf32> to vector<16x16xbf16>
    %224 = vector.extract_strided_slice %219 {offsets = [0, 64], sizes = [16, 16], strides = [1, 1]} : vector<16x96xf32> to vector<16x16xf32>
    %225 = arith.truncf %224 : vector<16x16xf32> to vector<16x16xbf16>
    %cst_111 = arith.constant dense<0.000000e+00> : vector<16x16xf32>
    %226 = tpu.matmul %221, %223, %cst_111 {dimension_numbers = #tpu.dot_dimension_numbers<[1], [1], [0], [0], [0, 0, 1, 0], [], []>} : vector<16x16xbf16>, vector<16x16xbf16>, vector<16x16xf32> -> vector<16x16xf32>
    %cst_112 = arith.constant -1.000000e+30 : f32
    %227 = vector.shape_cast %9 : vector<1x16xi1> to vector<1x16xi1>
    %228 = vector.broadcast %227 : vector<1x16xi1> to vector<16x16xi1>
    %229 = vector.broadcast %cst_112 : f32 to vector<16x16xf32>
    %230 = arith.select %228, %226, %229 : vector<16x16xi1>, vector<16x16xf32>
    %cst_113 = arith.constant dense<0xFF800000> : vector<16xf32>
    %231 = vector.multi_reduction <maximumf>, %230, %cst_113 [1] : vector<16x16xf32> to vector<16xf32>
    %232 = vector.shape_cast %231 : vector<16xf32> to vector<16x1xf32>
    %233 = vector.broadcast %232 : vector<16x1xf32> to vector<16x16xf32>
    %234 = arith.subf %230, %233 : vector<16x16xf32>
    %235 = math.exp %234 : vector<16x16xf32>
    %cst_114 = arith.constant dense<0.000000e+00> : vector<16xf32>
    %236 = vector.multi_reduction <add>, %235, %cst_114 [1] : vector<16x16xf32> to vector<16xf32>
    %237 = vector.shape_cast %236 : vector<16xf32> to vector<16x1xf32>
    %238 = tpu.reciprocal %237 {approx = true} : vector<16x1xf32> -> vector<16x1xf32>
    %239 = vector.broadcast %238 : vector<16x1xf32> to vector<16x16xf32>
    %240 = arith.mulf %235, %239 : vector<16x16xf32>
    %241 = arith.truncf %240 : vector<16x16xf32> to vector<16x16xbf16>
    %cst_115 = arith.constant dense<0.000000e+00> : vector<16x16xf32>
    %242 = tpu.matmul %241, %225, %cst_115 {dimension_numbers = #tpu.dot_dimension_numbers<[1], [0], [0], [1], [0, 0, 1, 1], [], []>} : vector<16x16xbf16>, vector<16x16xbf16>, vector<16x16xf32> -> vector<16x16xf32>
    %243 = vector.extract_strided_slice %219 {offsets = [0, 16], sizes = [16, 16], strides = [1, 1]} : vector<16x96xf32> to vector<16x16xf32>
    %244 = arith.truncf %243 : vector<16x16xf32> to vector<16x16xbf16>
    %245 = vector.extract_strided_slice %219 {offsets = [0, 48], sizes = [16, 16], strides = [1, 1]} : vector<16x96xf32> to vector<16x16xf32>
    %246 = arith.truncf %245 : vector<16x16xf32> to vector<16x16xbf16>
    %247 = vector.extract_strided_slice %219 {offsets = [0, 80], sizes = [16, 16], strides = [1, 1]} : vector<16x96xf32> to vector<16x16xf32>
    %248 = arith.truncf %247 : vector<16x16xf32> to vector<16x16xbf16>
    %cst_116 = arith.constant dense<0.000000e+00> : vector<16x16xf32>
    %249 = tpu.matmul %244, %246, %cst_116 {dimension_numbers = #tpu.dot_dimension_numbers<[1], [1], [0], [0], [0, 0, 1, 0], [], []>} : vector<16x16xbf16>, vector<16x16xbf16>, vector<16x16xf32> -> vector<16x16xf32>
    %cst_117 = arith.constant -1.000000e+30 : f32
    %250 = vector.shape_cast %9 : vector<1x16xi1> to vector<1x16xi1>
    %251 = vector.broadcast %250 : vector<1x16xi1> to vector<16x16xi1>
    %252 = vector.broadcast %cst_117 : f32 to vector<16x16xf32>
    %253 = arith.select %251, %249, %252 : vector<16x16xi1>, vector<16x16xf32>
    %cst_118 = arith.constant dense<0xFF800000> : vector<16xf32>
    %254 = vector.multi_reduction <maximumf>, %253, %cst_118 [1] : vector<16x16xf32> to vector<16xf32>
    %255 = vector.shape_cast %254 : vector<16xf32> to vector<16x1xf32>
    %256 = vector.broadcast %255 : vector<16x1xf32> to vector<16x16xf32>
    %257 = arith.subf %253, %256 : vector<16x16xf32>
    %258 = math.exp %257 : vector<16x16xf32>
    %cst_119 = arith.constant dense<0.000000e+00> : vector<16xf32>
    %259 = vector.multi_reduction <add>, %258, %cst_119 [1] : vector<16x16xf32> to vector<16xf32>
    %260 = vector.shape_cast %259 : vector<16xf32> to vector<16x1xf32>
    %261 = tpu.reciprocal %260 {approx = true} : vector<16x1xf32> -> vector<16x1xf32>
    %262 = vector.broadcast %261 : vector<16x1xf32> to vector<16x16xf32>
    %263 = arith.mulf %258, %262 : vector<16x16xf32>
    %264 = arith.truncf %263 : vector<16x16xf32> to vector<16x16xbf16>
    %cst_120 = arith.constant dense<0.000000e+00> : vector<16x16xf32>
    %265 = tpu.matmul %264, %248, %cst_120 {dimension_numbers = #tpu.dot_dimension_numbers<[1], [0], [0], [1], [0, 0, 1, 1], [], []>} : vector<16x16xbf16>, vector<16x16xbf16>, vector<16x16xf32> -> vector<16x16xf32>
    %266 = tpu.concatenate %242, %265 in 1 : vector<16x16xf32>, vector<16x16xf32> -> vector<16x32xf32>
    %267 = arith.truncf %266 : vector<16x32xf32> to vector<16x32xbf16>
    %c0_121 = arith.constant 0 : index
    %c0_122 = arith.constant 0 : index
    %268 = vector.load %arg16[%c0_121, %c0_122] : memref<32x32xbf16, #tpu.memory_space<vmem>>, vector<32x32xbf16>
    %cst_123 = arith.constant dense<0.000000e+00> : vector<16x32xf32>
    %269 = tpu.matmul %267, %268, %cst_123 {dimension_numbers = #tpu.dot_dimension_numbers<[1], [0], [0], [1], [0, 0, 1, 1], [], []>} : vector<16x32xbf16>, vector<32x32xbf16>, vector<16x32xf32> -> vector<16x32xf32>
    %c0_124 = arith.constant 0 : index
    %c0_125 = arith.constant 0 : index
    %270 = vector.load %arg17[%c0_124, %c0_125] : memref<1x32xf32, #tpu.memory_space<vmem>>, vector<1x32xf32>
    %271 = vector.broadcast %270 : vector<1x32xf32> to vector<16x32xf32>
    %272 = arith.addf %269, %271 : vector<16x32xf32>
    %273 = arith.addf %199, %272 : vector<16x32xf32>
    %274 = vector.broadcast %213 : vector<1x32xf32> to vector<16x32xf32>
    %275 = arith.addf %273, %274 : vector<16x32xf32>
    %276 = arith.truncf %275 : vector<16x32xf32> to vector<16x32xbf16>
    %c0_126 = arith.constant 0 : index
    %c0_127 = arith.constant 0 : index
    %277 = vector.load %arg22[%c0_126, %c0_127] : memref<32x128xbf16, #tpu.memory_space<vmem>>, vector<32x128xbf16>
    %cst_128 = arith.constant dense<0.000000e+00> : vector<16x128xf32>
    %278 = tpu.matmul %276, %277, %cst_128 {dimension_numbers = #tpu.dot_dimension_numbers<[1], [0], [0], [1], [0, 0, 1, 1], [], []>} : vector<16x32xbf16>, vector<32x128xbf16>, vector<16x128xf32> -> vector<16x128xf32>
    %c0_129 = arith.constant 0 : index
    %c0_130 = arith.constant 0 : index
    %279 = vector.load %arg23[%c0_129, %c0_130] : memref<1x128xf32, #tpu.memory_space<vmem>>, vector<1x128xf32>
    %280 = vector.broadcast %279 : vector<1x128xf32> to vector<16x128xf32>
    %281 = arith.addf %278, %280 : vector<16x128xf32>
    %cst_131 = arith.constant 0.000000e+00 : f32
    %282 = vector.broadcast %cst_131 : f32 to vector<16x128xf32>
    %283 = arith.maximumf %281, %282 : vector<16x128xf32>
    %284 = vector.broadcast %cst_131 : f32 to vector<16x128xf32>
    %285 = arith.subf %281, %284 : vector<16x128xf32>
    %286 = arith.cmpf one, %285, %285 : vector<16x128xf32>
    %287 = vector.broadcast %cst_131 : f32 to vector<16x128xf32>
    %288 = arith.addf %281, %287 : vector<16x128xf32>
    %289 = math.absf %285 : vector<16x128xf32>
    %cst_132 = arith.constant 0.000000e+00 : f32
    %290 = vector.broadcast %cst_132 : f32 to vector<16x128xf32>
    %291 = arith.subf %290, %289 : vector<16x128xf32>
    %292 = math.exp %291 : vector<16x128xf32>
    %293 = math.log1p %292 : vector<16x128xf32>
    %294 = arith.addf %283, %293 : vector<16x128xf32>
    %295 = arith.select %286, %288, %294 : vector<16x128xi1>, vector<16x128xf32>
    %296 = math.tanh %295 : vector<16x128xf32>
    %297 = arith.mulf %281, %296 : vector<16x128xf32>
    %298 = vector.broadcast %7 : vector<16x1xf32> to vector<16x128xf32>
    %299 = arith.mulf %297, %298 : vector<16x128xf32>
    %cst_133 = arith.constant dense<0.000000e+00> : vector<128xf32>
    %300 = vector.multi_reduction <add>, %299, %cst_133 [0] : vector<16x128xf32> to vector<128xf32>
    %301 = vector.shape_cast %300 : vector<128xf32> to vector<1x128xf32>
    %cst_134 = arith.constant dense<0.000000e+00> : vector<1xf32>
    %302 = vector.multi_reduction <add>, %7, %cst_134 [0] : vector<16x1xf32> to vector<1xf32>
    %303 = vector.shape_cast %302 : vector<1xf32> to vector<1x1xf32>
    %304 = vector.broadcast %303 : vector<1x1xf32> to vector<1x128xf32>
    %305 = arith.divf %301, %304 : vector<1x128xf32>
    %c0_135 = arith.constant 0 : index
    %c0_136 = arith.constant 0 : index
    %c0_137 = arith.constant 0 : index
    %306 = vector.load %arg24[%c0_135, %c0_136, %c0_137] : memref<1x1x128xf32, #tpu.memory_space<vmem>>, vector<1x1x128xf32>
    %307 = vector.shape_cast %306 : vector<1x1x128xf32> to vector<1x128xf32>
    %308 = vector.shape_cast %305 : vector<1x128xf32> to vector<1x1x128xf32>
    tpu.vector_store %arg24[%c0_135, %c0_136, %c0_137], %308 {strides = array<i32>} : memref<1x1x128xf32, #tpu.memory_space<vmem>>, vector<1x1x128xf32>,
    return
  }
  func.func @transform_0(%arg0: i32, %arg1: memref<2xi32, #tpu.memory_space<smem>>) -> (i32, i32, i32) {
    %c0_i32 = arith.constant 0 : i32
    %c0_i32_0 = arith.constant 0 : i32
    %c0_i32_1 = arith.constant 0 : i32
    return %arg0, %c0_i32, %c0_i32_0 : i32, i32, i32
  }
  func.func @transform_1(%arg0: i32, %arg1: memref<2xi32, #tpu.memory_space<smem>>) -> (i32, i32, i32) {
    %c0_i32 = arith.constant 0 : i32
    %c0_i32_0 = arith.constant 0 : i32
    %c0_i32_1 = arith.constant 0 : i32
    return %arg0, %c0_i32, %c0_i32_0 : i32, i32, i32
  }
  func.func @transform_2(%arg0: i32, %arg1: memref<2xi32, #tpu.memory_space<smem>>) -> (i32, i32) {
    %c0_i32 = arith.constant 0 : i32
    %c0_i32_0 = arith.constant 0 : i32
    %c0_i32_1 = arith.constant 0 : i32
    return %c0_i32, %c0_i32_0 : i32, i32
  }
  func.func @transform_3(%arg0: i32, %arg1: memref<2xi32, #tpu.memory_space<smem>>) -> (i32, i32) {
    %c0_i32 = arith.constant 0 : i32
    %c0_i32_0 = arith.constant 0 : i32
    %c0_i32_1 = arith.constant 0 : i32
    return %c0_i32, %c0_i32_0 : i32, i32
  }
  func.func @transform_4(%arg0: i32, %arg1: memref<2xi32, #tpu.memory_space<smem>>) -> (i32, i32) {
    %c0_i32 = arith.constant 0 : i32
    %c0_i32_0 = arith.constant 0 : i32
    %c0_i32_1 = arith.constant 0 : i32
    return %c0_i32, %c0_i32_0 : i32, i32
  }
  func.func @transform_5(%arg0: i32, %arg1: memref<2xi32, #tpu.memory_space<smem>>) -> (i32, i32) {
    %c0_i32 = arith.constant 0 : i32
    %c0_i32_0 = arith.constant 0 : i32
    %c0_i32_1 = arith.constant 0 : i32
    return %c0_i32, %c0_i32_0 : i32, i32
  }
  func.func @transform_6(%arg0: i32, %arg1: memref<2xi32, #tpu.memory_space<smem>>) -> (i32, i32) {
    %c0_i32 = arith.constant 0 : i32
    %c0_i32_0 = arith.constant 0 : i32
    %c0_i32_1 = arith.constant 0 : i32
    return %c0_i32, %c0_i32_0 : i32, i32
  }
  func.func @transform_7(%arg0: i32, %arg1: memref<2xi32, #tpu.memory_space<smem>>) -> (i32, i32) {
    %c0_i32 = arith.constant 0 : i32
    %c0_i32_0 = arith.constant 0 : i32
    %c0_i32_1 = arith.constant 0 : i32
    return %c0_i32, %c0_i32_0 : i32, i32
  }
  func.func @transform_8(%arg0: i32, %arg1: memref<2xi32, #tpu.memory_space<smem>>) -> (i32, i32, i32) {
    %c0_i32 = arith.constant 0 : i32
    %c0_i32_0 = arith.constant 0 : i32
    %c0_i32_1 = arith.constant 0 : i32
    %c0_i32_2 = arith.constant 0 : i32
    return %c0_i32, %c0_i32_0, %c0_i32_1 : i32, i32, i32
  }
  func.func @transform_9(%arg0: i32, %arg1: memref<2xi32, #tpu.memory_space<smem>>) -> (i32, i32) {
    %c0_i32 = arith.constant 0 : i32
    %c0_i32_0 = arith.constant 0 : i32
    %c0_i32_1 = arith.constant 0 : i32
    return %c0_i32, %c0_i32_0 : i32, i32
  }
  func.func @transform_10(%arg0: i32, %arg1: memref<2xi32, #tpu.memory_space<smem>>) -> (i32, i32, i32) {
    %c0_i32 = arith.constant 0 : i32
    %c0_i32_0 = arith.constant 0 : i32
    %c0_i32_1 = arith.constant 0 : i32
    %c0_i32_2 = arith.constant 0 : i32
    return %c0_i32, %c0_i32_0, %c0_i32_1 : i32, i32, i32
  }
  func.func @transform_11(%arg0: i32, %arg1: memref<2xi32, #tpu.memory_space<smem>>) -> (i32, i32) {
    %c0_i32 = arith.constant 0 : i32
    %c0_i32_0 = arith.constant 0 : i32
    %c0_i32_1 = arith.constant 0 : i32
    return %c0_i32, %c0_i32_0 : i32, i32
  }
  func.func @transform_12(%arg0: i32, %arg1: memref<2xi32, #tpu.memory_space<smem>>) -> (i32, i32) {
    %c0_i32 = arith.constant 0 : i32
    %c0_i32_0 = arith.constant 0 : i32
    %c0_i32_1 = arith.constant 0 : i32
    return %c0_i32, %c0_i32_0 : i32, i32
  }
  func.func @transform_13(%arg0: i32, %arg1: memref<2xi32, #tpu.memory_space<smem>>) -> (i32, i32) {
    %c0_i32 = arith.constant 0 : i32
    %c0_i32_0 = arith.constant 0 : i32
    %c0_i32_1 = arith.constant 0 : i32
    return %c0_i32, %c0_i32_0 : i32, i32
  }
  func.func @transform_14(%arg0: i32, %arg1: memref<2xi32, #tpu.memory_space<smem>>) -> (i32, i32) {
    %c0_i32 = arith.constant 0 : i32
    %c0_i32_0 = arith.constant 0 : i32
    %c0_i32_1 = arith.constant 0 : i32
    return %c0_i32, %c0_i32_0 : i32, i32
  }
  func.func @transform_15(%arg0: i32, %arg1: memref<2xi32, #tpu.memory_space<smem>>) -> (i32, i32) {
    %c0_i32 = arith.constant 0 : i32
    %c0_i32_0 = arith.constant 0 : i32
    %c0_i32_1 = arith.constant 0 : i32
    return %c0_i32, %c0_i32_0 : i32, i32
  }
  func.func @transform_16(%arg0: i32, %arg1: memref<2xi32, #tpu.memory_space<smem>>) -> (i32, i32) {
    %c0_i32 = arith.constant 0 : i32
    %c0_i32_0 = arith.constant 0 : i32
    %c0_i32_1 = arith.constant 0 : i32
    return %c0_i32, %c0_i32_0 : i32, i32
  }
  func.func @transform_17(%arg0: i32, %arg1: memref<2xi32, #tpu.memory_space<smem>>) -> (i32, i32) {
    %c0_i32 = arith.constant 0 : i32
    %c0_i32_0 = arith.constant 0 : i32
    %c0_i32_1 = arith.constant 0 : i32
    return %c0_i32, %c0_i32_0 : i32, i32
  }
  func.func @transform_18(%arg0: i32, %arg1: memref<2xi32, #tpu.memory_space<smem>>) -> (i32, i32) {
    %c0_i32 = arith.constant 0 : i32
    %c0_i32_0 = arith.constant 0 : i32
    %c0_i32_1 = arith.constant 0 : i32
    return %c0_i32, %c0_i32_0 : i32, i32
  }
  func.func @transform_19(%arg0: i32, %arg1: memref<2xi32, #tpu.memory_space<smem>>) -> (i32, i32) {
    %c0_i32 = arith.constant 0 : i32
    %c0_i32_0 = arith.constant 0 : i32
    %c0_i32_1 = arith.constant 0 : i32
    return %c0_i32, %c0_i32_0 : i32, i32
  }
  func.func @transform_20(%arg0: i32, %arg1: memref<2xi32, #tpu.memory_space<smem>>) -> (i32, i32) {
    %c0_i32 = arith.constant 0 : i32
    %c0_i32_0 = arith.constant 0 : i32
    %c0_i32_1 = arith.constant 0 : i32
    return %c0_i32, %c0_i32_0 : i32, i32
  }
  func.func @transform_21(%arg0: i32, %arg1: memref<2xi32, #tpu.memory_space<smem>>) -> (i32, i32) {
    %c0_i32 = arith.constant 0 : i32
    %c0_i32_0 = arith.constant 0 : i32
    %c0_i32_1 = arith.constant 0 : i32
    return %c0_i32, %c0_i32_0 : i32, i32
  }
  func.func @transform_22(%arg0: i32, %arg1: memref<2xi32, #tpu.memory_space<smem>>) -> (i32, i32, i32) {
    %c0_i32 = arith.constant 0 : i32
    %c0_i32_0 = arith.constant 0 : i32
    %c0_i32_1 = arith.constant 0 : i32
    return %arg0, %c0_i32, %c0_i32_0 : i32, i32, i32
  }
}

</mosaic_0001>

<llo_original>
// kernel: tpu_custom_call.1
$region0: #{tpu_custom_call.1}
  #allocation0 [shape = 'u32[]', space=smem, size = 0x4, offset = 0x4, fixed_abs, tag = 'smem constant byte address 0x4 - core index']
  #allocation1 [shape = 'u32[144,128]{1,0:T(1,128)}', space=vmem, size = 0x12000, scoped, tag = 'internal scratch']
  #allocation2 [shape = 'f32[20,32]{1,0:T(8,128)}', space=vmem, size = 0x3000, scoped, tag = 'scratch operand']
  #allocation3 [shape = 's32[1]{0}', space=sflag, size = 0x4, scoped, tag = 'scoped memory for tpu_custom_call.1']
  #allocation4 [shape = 'u8[512]{0}', space=smem, size = 0x200, scoped, tag = 'prefetched SMEM operand 0']
  %s0 = inlined_call_operand.hbm [shape: s32[2], index: 0, kind: input, shape index: {}]
  %s1 = inlined_call_operand.hbm [shape: bf16[2,16,20], index: 1, kind: input, shape index: {}]
  %s2 = inlined_call_operand.vmem [shape: bf16[2,1,16], index: 2, kind: input, shape index: {}]
  %s3 = inlined_call_operand.hbm [shape: bf16[20,32], index: 3, kind: input, shape index: {}]
  %s4 = inlined_call_operand.hbm [shape: f32[1,32], index: 4, kind: input, shape index: {}]
  %s5 = inlined_call_operand.vmem [shape: bf16[32,32], index: 5, kind: input, shape index: {}]
  %s6 = inlined_call_operand.hbm [shape: f32[1,32], index: 6, kind: input, shape index: {}]
  %s7 = inlined_call_operand.hbm [shape: bf16[32,32], index: 7, kind: input, shape index: {}]
  %s8 = inlined_call_operand.hbm [shape: f32[1,32], index: 8, kind: input, shape index: {}]
  %s9 = inlined_call_operand.hbm [shape: bf16[5,32,64], index: 9, kind: input, shape index: {}]
  %s10 = inlined_call_operand.hbm [shape: f32[1,64], index: 10, kind: input, shape index: {}]
  %s11 = inlined_call_operand.hbm [shape: bf16[5,32,64], index: 11, kind: input, shape index: {}]
  %s12 = inlined_call_operand.hbm [shape: f32[1,64], index: 12, kind: input, shape index: {}]
  %s13 = inlined_call_operand.vmem [shape: bf16[32,96], index: 13, kind: input, shape index: {}]
  %s14 = inlined_call_operand.hbm [shape: f32[1,96], index: 14, kind: input, shape index: {}]
  %s15 = inlined_call_operand.vmem [shape: bf16[32,32], index: 15, kind: input, shape index: {}]
  %s16 = inlined_call_operand.hbm [shape: f32[1,32], index: 16, kind: input, shape index: {}]
  %s17 = inlined_call_operand.hbm [shape: bf16[16,32], index: 17, kind: input, shape index: {}]
  %s18 = inlined_call_operand.vmem [shape: f32[1,32], index: 18, kind: input, shape index: {}]
  %s19 = inlined_call_operand.vmem [shape: bf16[32,64], index: 19, kind: input, shape index: {}]
  %s20 = inlined_call_operand.vmem [shape: f32[1,64], index: 20, kind: input, shape index: {}]
  %s21 = inlined_call_operand.vmem [shape: bf16[32,128], index: 21, kind: input, shape index: {}]
  %s22 = inlined_call_operand.vmem [shape: f32[1,128], index: 22, kind: input, shape index: {}]
  %s23 = inlined_call_operand.hbm [shape: f32[2,1,128], index: 23, kind: output, shape index: {}]
  %s24 = sld [smem:[#allocation0]]
  $region173: #{tpu_custom_call.1} parent=0
    _
  %s26 = ssub.s32 1, %s24
  %s27 = scalar_select 0, %s26, %s24
  %29 = dma.hbm_to_smem %s0, 16, [#allocation4], [#allocation3]
  %30 = dma.done [#allocation3], 16
  %31 = sfence
  $region1: #{tpu_custom_call.1} parent=0
    #allocation5 [shape = 'u8[8192]{0}', space=vmem, size = 0x2000, scoped, tag = 'input window, operand 1']
    #allocation6 [shape = 's32[2]{0}', space=sflag, size = 0x8, scoped, tag = 'scoped memory for tpu_custom_call.1']
    #allocation7 [shape = 's32[2]{0}', space=sflag, size = 0x8, scoped, tag = 'scoped memory for tpu_custom_call.1']
    #allocation8 [shape = 'u8[6144]{0}', space=vmem, size = 0x1800, scoped, tag = 'input window, operand 3, single buffered']
    #allocation9 [shape = 's32[1]{0}', space=sflag, size = 0x4, scoped, tag = 'scoped memory for tpu_custom_call.1']
    #allocation10 [shape = 'u8[512]{0}', space=vmem, size = 0x400, scoped, tag = 'input window, operand 4, single buffered']
    #allocation11 [shape = 'u8[512]{0}', space=vmem, size = 0x400, scoped, tag = 'input window, operand 6, single buffered']
    #allocation12 [shape = 's32[1]{0}', space=sflag, size = 0x4, scoped, tag = 'scoped memory for tpu_custom_call.1']
    #allocation13 [shape = 'u8[8192]{0}', space=vmem, size = 0x2000, scoped, tag = 'input window, operand 7, single buffered']
    #allocation14 [shape = 'u8[512]{0}', space=vmem, size = 0x400, scoped, tag = 'input window, operand 8, single buffered']
    #allocation15 [shape = 's32[1]{0}', space=sflag, size = 0x4, scoped, tag = 'scoped memory for tpu_custom_call.1']
    #allocation16 [shape = 'u8[40960]{0}', space=vmem, size = 0xa000, scoped, tag = 'input window, operand 9, single buffered']
    #allocation17 [shape = 'u8[512]{0}', space=vmem, size = 0x400, scoped, tag = 'input window, operand 10, single buffered']
    #allocation18 [shape = 's32[1]{0}', space=sflag, size = 0x4, scoped, tag = 'scoped memory for tpu_custom_call.1']
    #allocation19 [shape = 'u8[40960]{0}', space=vmem, size = 0xa000, scoped, tag = 'input window, operand 11, single buffered']
    #allocation20 [shape = 'u8[512]{0}', space=vmem, size = 0x400, scoped, tag = 'input window, operand 12, single buffered']
    #allocation21 [shape = 's32[1]{0}', space=sflag, size = 0x4, scoped, tag = 'scoped memory for tpu_custom_call.1']
    #allocation22 [shape = 'u8[512]{0}', space=vmem, size = 0x400, scoped, tag = 'input window, operand 14, single buffered']
    #allocation23 [shape = 'u8[512]{0}', space=vmem, size = 0x400, scoped, tag = 'input window, operand 16, single buffered']
    #allocation24 [shape = 's32[1]{0}', space=sflag, size = 0x4, scoped, tag = 'scoped memory for tpu_custom_call.1']
    #allocation25 [shape = 'u8[4096]{0}', space=vmem, size = 0x1000, scoped, tag = 'input window, operand 17, single buffered']
    #allocation26 [shape = 'u8[1024]{0}', space=vmem, size = 0x400, scoped, tag = 'output window, operand 0']
    %32 = vsyncpa [#allocation6], 0
    %s33 = scalar_lea.sflag [#allocation6], 1
    %34 = vsyncpa %s33, 0
    %35 = vsyncpa [#allocation9], 0
    %36 = vsyncpa [#allocation12], 0
    %37 = vsyncpa [#allocation15], 0
    %38 = vsyncpa [#allocation18], 0
    %39 = vsyncpa [#allocation21], 0
    %40 = vsyncpa [#allocation24], 0
    %41 = vsyncpa [#allocation7], 0
    %s42 = scalar_lea.sflag [#allocation7], 1
    %43 = vsyncpa %s42, 0
    loop: start=0, step=1, limit=4
    $region2: #{tpu_custom_call.1} parent=1 // loop_pre_header
      _
    $region3: #{tpu_custom_call.1} parent=1 // loop_header
      %s45 = sphi 0, %s49
      %p46 = scmp.ge.s32.totalorder %s45, 4
      %s55 = sphi 0, %s57
      %s58 = sphi 0, %s55
      %s59 = sphi 0, %s58
      %s75 = sphi 0, %s59
      %s81 = sphi 0, %s83
      %s84 = sphi 0, %s81
      %s85 = sphi 0, %s84
      %s101 = sphi 0, %s85
      %s105 = sphi 0, %s105
      %s107 = sphi 0, %s105
      %s108 = sphi 0, %s107
      %s122 = sphi 0, %s108
      %s126 = sphi 0, %s126
      %s128 = sphi 0, %s126
      %s129 = sphi 0, %s128
      %s143 = sphi 0, %s129
      %s147 = sphi 0, %s147
      %s149 = sphi 0, %s147
      %s150 = sphi 0, %s149
      %s164 = sphi 0, %s150
      %s168 = sphi 0, %s168
      %s170 = sphi 0, %s168
      %s171 = sphi 0, %s170
      %s185 = sphi 0, %s171
      %s189 = sphi 0, %s189
      %s191 = sphi 0, %s189
      %s192 = sphi 0, %s191
      %s206 = sphi 0, %s192
      %s210 = sphi 0, %s210
      %s212 = sphi 0, %s210
      %s213 = sphi 0, %s212
      %s227 = sphi 0, %s213
      %s231 = sphi 0, %s231
      %s233 = sphi 0, %s231
      %s234 = sphi 0, %s233
      %s248 = sphi 0, %s234
      %s252 = sphi 0, %s252
      %s254 = sphi 0, %s252
      %s255 = sphi 0, %s254
      %s269 = sphi 0, %s255
      %s273 = sphi 0, %s273
      %s275 = sphi 0, %s273
      %s276 = sphi 0, %s275
      %s290 = sphi 0, %s276
      %s294 = sphi 0, %s294
      %s296 = sphi 0, %s294
      %s297 = sphi 0, %s296
      %s311 = sphi 0, %s297
      %s315 = sphi 0, %s315
      %s317 = sphi 0, %s315
      %s318 = sphi 0, %s317
      %s332 = sphi 0, %s318
      %s336 = sphi 0, %s336
      %s338 = sphi 0, %s336
      %s339 = sphi 0, %s338
      %s353 = sphi 0, %s339
      %s357 = sphi 0, %s357
      %s359 = sphi 0, %s357
      %s360 = sphi 0, %s359
      %s374 = sphi 0, %s360
      %s378 = sphi 0, %s378
      %s380 = sphi 0, %s378
      %s381 = sphi 0, %s380
      %s395 = sphi 0, %s381
      %s399 = sphi 0, %s399
      %s401 = sphi 0, %s399
      %s402 = sphi 0, %s401
      %s416 = sphi 0, %s402
      %s420 = sphi 0, %s420
      %s422 = sphi 0, %s420
      %s423 = sphi 0, %s422
      %s437 = sphi 0, %s423
      %s441 = sphi 0, %s441
      %s443 = sphi 0, %s441
      %s444 = sphi 0, %s443
      %s458 = sphi 0, %s444
      %s462 = sphi 0, %s462
      %s464 = sphi 0, %s462
      %s465 = sphi 0, %s464
      %s479 = sphi 0, %s465
      %s483 = sphi 0, %s483
      %s485 = sphi 0, %s483
      %s486 = sphi 0, %s485
      %s500 = sphi 0, %s486
      %s504 = sphi 0, %s504
      %s506 = sphi 0, %s504
      %s507 = sphi 0, %s506
      %s521 = sphi 0, %s507
      %s527 = sphi 0, %s529
      %s530 = sphi 0, %s527
      %s531 = sphi 0, %s530
      %s547 = sphi 0, %s531
    $region4: #{tpu_custom_call.1} parent=1 // loop_header_branch
      %48 = sbr.rel (%p46) target = $region8
    $region5: #{tpu_custom_call.1} parent=1 // loop_body
      %s50 = ssub.s32 %s45, 1
      %s51 = ssub.s32 %s45, 2
      %s52 = sadd.s32 %s45, 1
      %s53 = ssub.s32 %s45, %s52
      %p54 = scmp.eq.s32.totalorder %s53, 0
      %s56 = sadd.s32 %s55, 1
      %s57 = scalar_select %p54, %s55, %s56
      %p60 = pneg %p54
      %p61 = scmp.eq.s32.totalorder %s45, 1
      %p62 = por %p60, %p61
      %p63 = scmp.ne.s32.totalorder %s55, %s58
      %p64 = scmp.eq.s32.totalorder %s45, 0
      %p65 = por %p63, %p64
      %p66 = scmp.ne.s32.totalorder %s55, %s58
      %p67 = scmp.eq.s32.totalorder %s50, 1
      %p68 = por %p66, %p67
      %p69 = scmp.ne.s32.totalorder %s58, %s59
      %p70 = scmp.eq.s32.totalorder %s50, 0
      %p71 = por %p69, %p70
      %p72 = scmp.ne.s32.totalorder %s58, %s59
      %p73 = scmp.eq.s32.totalorder %s51, 1
      %p74 = por %p72, %p73
      %p76 = scmp.ne.s32.totalorder %s59, %s75
      %p77 = scmp.eq.s32.totalorder %s51, 0
      %p78 = por %p76, %p77
      %s79 = ssub.s32 %s45, %s52
      %p80 = scmp.eq.s32.totalorder %s79, 0
      %s82 = sadd.s32 %s81, 1
      %s83 = scalar_select %p80, %s81, %s82
      %p86 = pneg %p80
      %p87 = scmp.eq.s32.totalorder %s45, 1
      %p88 = por %p86, %p87
      %p89 = scmp.ne.s32.totalorder %s81, %s84
      %p90 = scmp.eq.s32.totalorder %s45, 0
      %p91 = por %p89, %p90
      %p92 = scmp.ne.s32.totalorder %s81, %s84
      %p93 = scmp.eq.s32.totalorder %s50, 1
      %p94 = por %p92, %p93
      %p95 = scmp.ne.s32.totalorder %s84, %s85
      %p96 = scmp.eq.s32.totalorder %s50, 0
      %p97 = por %p95, %p96
      %p98 = scmp.ne.s32.totalorder %s84, %s85
      %p99 = scmp.eq.s32.totalorder %s51, 1
      %p100 = por %p98, %p99
      %p102 = scmp.ne.s32.totalorder %s85, %s101
      %p103 = scmp.eq.s32.totalorder %s51, 0
      %p104 = por %p102, %p103
      %s106 = sadd.s32 %s105, 1
      %p109 = scmp.eq.s32.totalorder %s45, 1
      %p110 = scmp.ne.s32.totalorder %s105, %s107
      %p111 = scmp.eq.s32.totalorder %s45, 0
      %p112 = por %p110, %p111
      %p113 = scmp.ne.s32.totalorder %s105, %s107
      %p114 = scmp.eq.s32.totalorder %s50, 1
      %p115 = por %p113, %p114
      %p116 = scmp.ne.s32.totalorder %s107, %s108
      %p117 = scmp.eq.s32.totalorder %s50, 0
      %p118 = por %p116, %p117
      %p119 = scmp.ne.s32.totalorder %s107, %s108
      %p120 = scmp.eq.s32.totalorder %s51, 1
      %p121 = por %p119, %p120
      %p123 = scmp.ne.s32.totalorder %s108, %s122
      %p124 = scmp.eq.s32.totalorder %s51, 0
      %p125 = por %p123, %p124
      %s127 = sadd.s32 %s126, 1
      %p130 = scmp.eq.s32.totalorder %s45, 1
      %p131 = scmp.ne.s32.totalorder %s126, %s128
      %p132 = scmp.eq.s32.totalorder %s45, 0
      %p133 = por %p131, %p132
      %p134 = scmp.ne.s32.totalorder %s126, %s128
      %p135 = scmp.eq.s32.totalorder %s50, 1
      %p136 = por %p134, %p135
      %p137 = scmp.ne.s32.totalorder %s128, %s129
      %p138 = scmp.eq.s32.totalorder %s50, 0
      %p139 = por %p137, %p138
      %p140 = scmp.ne.s32.totalorder %s128, %s129
      %p141 = scmp.eq.s32.totalorder %s51, 1
      %p142 = por %p140, %p141
      %p144 = scmp.ne.s32.totalorder %s129, %s143
      %p145 = scmp.eq.s32.totalorder %s51, 0
      %p146 = por %p144, %p145
      %s148 = sadd.s32 %s147, 1
      %p151 = scmp.eq.s32.totalorder %s45, 1
      %p152 = scmp.ne.s32.totalorder %s147, %s149
      %p153 = scmp.eq.s32.totalorder %s45, 0
      %p154 = por %p152, %p153
      %p155 = scmp.ne.s32.totalorder %s147, %s149
      %p156 = scmp.eq.s32.totalorder %s50, 1
      %p157 = por %p155, %p156
      %p158 = scmp.ne.s32.totalorder %s149, %s150
      %p159 = scmp.eq.s32.totalorder %s50, 0
      %p160 = por %p158, %p159
      %p161 = scmp.ne.s32.totalorder %s149, %s150
      %p162 = scmp.eq.s32.totalorder %s51, 1
      %p163 = por %p161, %p162
      %p165 = scmp.ne.s32.totalorder %s150, %s164
      %p166 = scmp.eq.s32.totalorder %s51, 0
      %p167 = por %p165, %p166
      %s169 = sadd.s32 %s168, 1
      %p172 = scmp.eq.s32.totalorder %s45, 1
      %p173 = scmp.ne.s32.totalorder %s168, %s170
      %p174 = scmp.eq.s32.totalorder %s45, 0
      %p175 = por %p173, %p174
      %p176 = scmp.ne.s32.totalorder %s168, %s170
      %p177 = scmp.eq.s32.totalorder %s50, 1
      %p178 = por %p176, %p177
      %p179 = scmp.ne.s32.totalorder %s170, %s171
      %p180 = scmp.eq.s32.totalorder %s50, 0
      %p181 = por %p179, %p180
      %p182 = scmp.ne.s32.totalorder %s170, %s171
      %p183 = scmp.eq.s32.totalorder %s51, 1
      %p184 = por %p182, %p183
      %p186 = scmp.ne.s32.totalorder %s171, %s185
      %p187 = scmp.eq.s32.totalorder %s51, 0
      %p188 = por %p186, %p187
      %s190 = sadd.s32 %s189, 1
      %p193 = scmp.eq.s32.totalorder %s45, 1
      %p194 = scmp.ne.s32.totalorder %s189, %s191
      %p195 = scmp.eq.s32.totalorder %s45, 0
      %p196 = por %p194, %p195
      %p197 = scmp.ne.s32.totalorder %s189, %s191
      %p198 = scmp.eq.s32.totalorder %s50, 1
      %p199 = por %p197, %p198
      %p200 = scmp.ne.s32.totalorder %s191, %s192
      %p201 = scmp.eq.s32.totalorder %s50, 0
      %p202 = por %p200, %p201
      %p203 = scmp.ne.s32.totalorder %s191, %s192
      %p204 = scmp.eq.s32.totalorder %s51, 1
      %p205 = por %p203, %p204
      %p207 = scmp.ne.s32.totalorder %s192, %s206
      %p208 = scmp.eq.s32.totalorder %s51, 0
      %p209 = por %p207, %p208
      %s211 = sadd.s32 %s210, 1
      %p214 = scmp.eq.s32.totalorder %s45, 1
      %p215 = scmp.ne.s32.totalorder %s210, %s212
      %p216 = scmp.eq.s32.totalorder %s45, 0
      %p217 = por %p215, %p216
      %p218 = scmp.ne.s32.totalorder %s210, %s212
      %p219 = scmp.eq.s32.totalorder %s50, 1
      %p220 = por %p218, %p219
      %p221 = scmp.ne.s32.totalorder %s212, %s213
      %p222 = scmp.eq.s32.totalorder %s50, 0
      %p223 = por %p221, %p222
      %p224 = scmp.ne.s32.totalorder %s212, %s213
      %p225 = scmp.eq.s32.totalorder %s51, 1
      %p226 = por %p224, %p225
      %p228 = scmp.ne.s32.totalorder %s213, %s227
      %p229 = scmp.eq.s32.totalorder %s51, 0
      %p230 = por %p228, %p229
      %s232 = sadd.s32 %s231, 1
      %p235 = scmp.eq.s32.totalorder %s45, 1
      %p236 = scmp.ne.s32.totalorder %s231, %s233
      %p237 = scmp.eq.s32.totalorder %s45, 0
      %p238 = por %p236, %p237
      %p239 = scmp.ne.s32.totalorder %s231, %s233
      %p240 = scmp.eq.s32.totalorder %s50, 1
      %p241 = por %p239, %p240
      %p242 = scmp.ne.s32.totalorder %s233, %s234
      %p243 = scmp.eq.s32.totalorder %s50, 0
      %p244 = por %p242, %p243
      %p245 = scmp.ne.s32.totalorder %s233, %s234
      %p246 = scmp.eq.s32.totalorder %s51, 1
      %p247 = por %p245, %p246
      %p249 = scmp.ne.s32.totalorder %s234, %s248
      %p250 = scmp.eq.s32.totalorder %s51, 0
      %p251 = por %p249, %p250
      %s253 = sadd.s32 %s252, 1
      %p256 = scmp.eq.s32.totalorder %s45, 1
      %p257 = scmp.ne.s32.totalorder %s252, %s254
      %p258 = scmp.eq.s32.totalorder %s45, 0
      %p259 = por %p257, %p258
      %p260 = scmp.ne.s32.totalorder %s252, %s254
      %p261 = scmp.eq.s32.totalorder %s50, 1
      %p262 = por %p260, %p261
      %p263 = scmp.ne.s32.totalorder %s254, %s255
      %p264 = scmp.eq.s32.totalorder %s50, 0
      %p265 = por %p263, %p264
      %p266 = scmp.ne.s32.totalorder %s254, %s255
      %p267 = scmp.eq.s32.totalorder %s51, 1
      %p268 = por %p266, %p267
      %p270 = scmp.ne.s32.totalorder %s255, %s269
      %p271 = scmp.eq.s32.totalorder %s51, 0
      %p272 = por %p270, %p271
      %s274 = sadd.s32 %s273, 1
      %p277 = scmp.eq.s32.totalorder %s45, 1
      %p278 = scmp.ne.s32.totalorder %s273, %s275
      %p279 = scmp.eq.s32.totalorder %s45, 0
      %p280 = por %p278, %p279
      %p281 = scmp.ne.s32.totalorder %s273, %s275
      %p282 = scmp.eq.s32.totalorder %s50, 1
      %p283 = por %p281, %p282
      %p284 = scmp.ne.s32.totalorder %s275, %s276
      %p285 = scmp.eq.s32.totalorder %s50, 0
      %p286 = por %p284, %p285
      %p287 = scmp.ne.s32.totalorder %s275, %s276
      %p288 = scmp.eq.s32.totalorder %s51, 1
      %p289 = por %p287, %p288
      %p291 = scmp.ne.s32.totalorder %s276, %s290
      %p292 = scmp.eq.s32.totalorder %s51, 0
      %p293 = por %p291, %p292
      %s295 = sadd.s32 %s294, 1
      %p298 = scmp.eq.s32.totalorder %s45, 1
      %p299 = scmp.ne.s32.totalorder %s294, %s296
      %p300 = scmp.eq.s32.totalorder %s45, 0
      %p301 = por %p299, %p300
      %p302 = scmp.ne.s32.totalorder %s294, %s296
      %p303 = scmp.eq.s32.totalorder %s50, 1
      %p304 = por %p302, %p303
      %p305 = scmp.ne.s32.totalorder %s296, %s297
      %p306 = scmp.eq.s32.totalorder %s50, 0
      %p307 = por %p305, %p306
      %p308 = scmp.ne.s32.totalorder %s296, %s297
      %p309 = scmp.eq.s32.totalorder %s51, 1
      %p310 = por %p308, %p309
      %p312 = scmp.ne.s32.totalorder %s297, %s311
      %p313 = scmp.eq.s32.totalorder %s51, 0
      %p314 = por %p312, %p313
      %s316 = sadd.s32 %s315, 1
      %p319 = scmp.eq.s32.totalorder %s45, 1
      %p320 = scmp.ne.s32.totalorder %s315, %s317
      %p321 = scmp.eq.s32.totalorder %s45, 0
      %p322 = por %p320, %p321
      %p323 = scmp.ne.s32.totalorder %s315, %s317
      %p324 = scmp.eq.s32.totalorder %s50, 1
      %p325 = por %p323, %p324
      %p326 = scmp.ne.s32.totalorder %s317, %s318
      %p327 = scmp.eq.s32.totalorder %s50, 0
      %p328 = por %p326, %p327
      %p329 = scmp.ne.s32.totalorder %s317, %s318
      %p330 = scmp.eq.s32.totalorder %s51, 1
      %p331 = por %p329, %p330
      %p333 = scmp.ne.s32.totalorder %s318, %s332
      %p334 = scmp.eq.s32.totalorder %s51, 0
      %p335 = por %p333, %p334
      %s337 = sadd.s32 %s336, 1
      %p340 = scmp.eq.s32.totalorder %s45, 1
      %p341 = scmp.ne.s32.totalorder %s336, %s338
      %p342 = scmp.eq.s32.totalorder %s45, 0
      %p343 = por %p341, %p342
      %p344 = scmp.ne.s32.totalorder %s336, %s338
      %p345 = scmp.eq.s32.totalorder %s50, 1
      %p346 = por %p344, %p345
      %p347 = scmp.ne.s32.totalorder %s338, %s339
      %p348 = scmp.eq.s32.totalorder %s50, 0
      %p349 = por %p347, %p348
      %p350 = scmp.ne.s32.totalorder %s338, %s339
      %p351 = scmp.eq.s32.totalorder %s51, 1
      %p352 = por %p350, %p351
      %p354 = scmp.ne.s32.totalorder %s339, %s353
      %p355 = scmp.eq.s32.totalorder %s51, 0
      %p356 = por %p354, %p355
      %s358 = sadd.s32 %s357, 1
      %p361 = scmp.eq.s32.totalorder %s45, 1
      %p362 = scmp.ne.s32.totalorder %s357, %s359
      %p363 = scmp.eq.s32.totalorder %s45, 0
      %p364 = por %p362, %p363
      %p365 = scmp.ne.s32.totalorder %s357, %s359
      %p366 = scmp.eq.s32.totalorder %s50, 1
      %p367 = por %p365, %p366
      %p368 = scmp.ne.s32.totalorder %s359, %s360
      %p369 = scmp.eq.s32.totalorder %s50, 0
      %p370 = por %p368, %p369
      %p371 = scmp.ne.s32.totalorder %s359, %s360
      %p372 = scmp.eq.s32.totalorder %s51, 1
      %p373 = por %p371, %p372
      %p375 = scmp.ne.s32.totalorder %s360, %s374
      %p376 = scmp.eq.s32.totalorder %s51, 0
      %p377 = por %p375, %p376
      %s379 = sadd.s32 %s378, 1
      %p382 = scmp.eq.s32.totalorder %s45, 1
      %p383 = scmp.ne.s32.totalorder %s378, %s380
      %p384 = scmp.eq.s32.totalorder %s45, 0
      %p385 = por %p383, %p384
      %p386 = scmp.ne.s32.totalorder %s378, %s380
      %p387 = scmp.eq.s32.totalorder %s50, 1
      %p388 = por %p386, %p387
      %p389 = scmp.ne.s32.totalorder %s380, %s381
      %p390 = scmp.eq.s32.totalorder %s50, 0
      %p391 = por %p389, %p390
      %p392 = scmp.ne.s32.totalorder %s380, %s381
      %p393 = scmp.eq.s32.totalorder %s51, 1
      %p394 = por %p392, %p393
      %p396 = scmp.ne.s32.totalorder %s381, %s395
      %p397 = scmp.eq.s32.totalorder %s51, 0
      %p398 = por %p396, %p397
      %s400 = sadd.s32 %s399, 1
      %p403 = scmp.eq.s32.totalorder %s45, 1
      %p404 = scmp.ne.s32.totalorder %s399, %s401
      %p405 = scmp.eq.s32.totalorder %s45, 0
      %p406 = por %p404, %p405
      %p407 = scmp.ne.s32.totalorder %s399, %s401
      %p408 = scmp.eq.s32.totalorder %s50, 1
      %p409 = por %p407, %p408
      %p410 = scmp.ne.s32.totalorder %s401, %s402
      %p411 = scmp.eq.s32.totalorder %s50, 0
      %p412 = por %p410, %p411
      %p413 = scmp.ne.s32.totalorder %s401, %s402
      %p414 = scmp.eq.s32.totalorder %s51, 1
      %p415 = por %p413, %p414
      %p417 = scmp.ne.s32.totalorder %s402, %s416
      %p418 = scmp.eq.s32.totalorder %s51, 0
      %p419 = por %p417, %p418
      %s421 = sadd.s32 %s420, 1
      %p424 = scmp.eq.s32.totalorder %s45, 1
      %p425 = scmp.ne.s32.totalorder %s420, %s422
      %p426 = scmp.eq.s32.totalorder %s45, 0
      %p427 = por %p425, %p426
      %p428 = scmp.ne.s32.totalorder %s420, %s422
      %p429 = scmp.eq.s32.totalorder %s50, 1
      %p430 = por %p428, %p429
      %p431 = scmp.ne.s32.totalorder %s422, %s423
      %p432 = scmp.eq.s32.totalorder %s50, 0
      %p433 = por %p431, %p432
      %p434 = scmp.ne.s32.totalorder %s422, %s423
      %p435 = scmp.eq.s32.totalorder %s51, 1
      %p436 = por %p434, %p435
      %p438 = scmp.ne.s32.totalorder %s423, %s437
      %p439 = scmp.eq.s32.totalorder %s51, 0
      %p440 = por %p438, %p439
      %s442 = sadd.s32 %s441, 1
      %p445 = scmp.eq.s32.totalorder %s45, 1
      %p446 = scmp.ne.s32.totalorder %s441, %s443
      %p447 = scmp.eq.s32.totalorder %s45, 0
      %p448 = por %p446, %p447
      %p449 = scmp.ne.s32.totalorder %s441, %s443
      %p450 = scmp.eq.s32.totalorder %s50, 1
      %p451 = por %p449, %p450
      %p452 = scmp.ne.s32.totalorder %s443, %s444
      %p453 = scmp.eq.s32.totalorder %s50, 0
      %p454 = por %p452, %p453
      %p455 = scmp.ne.s32.totalorder %s443, %s444
      %p456 = scmp.eq.s32.totalorder %s51, 1
      %p457 = por %p455, %p456
      %p459 = scmp.ne.s32.totalorder %s444, %s458
      %p460 = scmp.eq.s32.totalorder %s51, 0
      %p461 = por %p459, %p460
      %s463 = sadd.s32 %s462, 1
      %p466 = scmp.eq.s32.totalorder %s45, 1
      %p467 = scmp.ne.s32.totalorder %s462, %s464
      %p468 = scmp.eq.s32.totalorder %s45, 0
      %p469 = por %p467, %p468
      %p470 = scmp.ne.s32.totalorder %s462, %s464
      %p471 = scmp.eq.s32.totalorder %s50, 1
      %p472 = por %p470, %p471
      %p473 = scmp.ne.s32.totalorder %s464, %s465
      %p474 = scmp.eq.s32.totalorder %s50, 0
      %p475 = por %p473, %p474
      %p476 = scmp.ne.s32.totalorder %s464, %s465
      %p477 = scmp.eq.s32.totalorder %s51, 1
      %p478 = por %p476, %p477
      %p480 = scmp.ne.s32.totalorder %s465, %s479
      %p481 = scmp.eq.s32.totalorder %s51, 0
      %p482 = por %p480, %p481
      %s484 = sadd.s32 %s483, 1
      %p487 = scmp.eq.s32.totalorder %s45, 1
      %p488 = scmp.ne.s32.totalorder %s483, %s485
      %p489 = scmp.eq.s32.totalorder %s45, 0
      %p490 = por %p488, %p489
      %p491 = scmp.ne.s32.totalorder %s483, %s485
      %p492 = scmp.eq.s32.totalorder %s50, 1
      %p493 = por %p491, %p492
      %p494 = scmp.ne.s32.totalorder %s485, %s486
      %p495 = scmp.eq.s32.totalorder %s50, 0
      %p496 = por %p494, %p495
      %p497 = scmp.ne.s32.totalorder %s485, %s486
      %p498 = scmp.eq.s32.totalorder %s51, 1
      %p499 = por %p497, %p498
      %p501 = scmp.ne.s32.totalorder %s486, %s500
      %p502 = scmp.eq.s32.totalorder %s51, 0
      %p503 = por %p501, %p502
      %s505 = sadd.s32 %s504, 1
      %p508 = scmp.eq.s32.totalorder %s45, 1
      %p509 = scmp.ne.s32.totalorder %s504, %s506
      %p510 = scmp.eq.s32.totalorder %s45, 0
      %p511 = por %p509, %p510
      %p512 = scmp.ne.s32.totalorder %s504, %s506
      %p513 = scmp.eq.s32.totalorder %s50, 1
      %p514 = por %p512, %p513
      %p515 = scmp.ne.s32.totalorder %s506, %s507
      %p516 = scmp.eq.s32.totalorder %s50, 0
      %p517 = por %p515, %p516
      %p518 = scmp.ne.s32.totalorder %s506, %s507
      %p519 = scmp.eq.s32.totalorder %s51, 1
      %p520 = por %p518, %p519
      %p522 = scmp.ne.s32.totalorder %s507, %s521
      %p523 = scmp.eq.s32.totalorder %s51, 0
      %p524 = por %p522, %p523
      %s525 = ssub.s32 %s45, %s52
      %p526 = scmp.eq.s32.totalorder %s525, 0
      %s528 = sadd.s32 %s527, 1
      %s529 = scalar_select %p526, %s527, %s528
      %p532 = pneg %p526
      %p533 = scmp.eq.s32.totalorder %s45, 1
      %p534 = por %p532, %p533
      %p535 = scmp.ne.s32.totalorder %s527, %s530
      %p536 = scmp.eq.s32.totalorder %s45, 0
      %p537 = por %p535, %p536
      %p538 = scmp.ne.s32.totalorder %s527, %s530
      %p539 = scmp.eq.s32.totalorder %s50, 1
      %p540 = por %p538, %p539
      %p541 = scmp.ne.s32.totalorder %s530, %s531
      %p542 = scmp.eq.s32.totalorder %s50, 0
      %p543 = por %p541, %p542
      %p544 = scmp.ne.s32.totalorder %s530, %s531
      %p545 = scmp.eq.s32.totalorder %s51, 1
      %p546 = por %p544, %p545
      %p548 = scmp.ne.s32.totalorder %s531, %s547
      %p549 = scmp.eq.s32.totalorder %s51, 0
      %p550 = por %p548, %p549
      %p551 = scmp.le.s32.totalorder 1, %s45
      %p552 = scmp.lt.s32.totalorder %s45, 3
      %p553 = pnand %p551, %p552
      %p554 = pneg %p553
      // Predicated region
      $region9: #{tpu_custom_call.1} parent=5 // pred_check
        _
      $region10: #{tpu_custom_call.1} parent=5 // pred_check_branch
        %556 = sbr.rel (%p553) target = $region12
      $region11: #{tpu_custom_call.1} parent=5 // pred_region
        %s557 = ssub.s32 %s45, 1
        // Predicated region
        $region13: #{tpu_custom_call.1} parent=11 // pred_check
          %p558 = pneg %p118
        $region14: #{tpu_custom_call.1} parent=11 // pred_check_branch
          %560 = sbr.rel (%p558) target = $region16
        $region15: #{tpu_custom_call.1} parent=11 // pred_region
          %s562 = ssub.s32 192, 192
          %563 = vsyncadd [#allocation9], %s562
          %s564 = sshll.u32 [#allocation8], 4
          %s565 = int_to_ptr.vmem [resolvable:$true] %s564
          %570 = dma.hbm_to_vmem [thread:$0]  %s3, 192, %s565, [#allocation9], 64, 64, 4
        $region16: #{tpu_custom_call.1} parent=11 // pred_fallthru
          _
        // Predicated region
        $region17: #{tpu_custom_call.1} parent=11 // pred_check
          %p571 = pneg %p139
        $region18: #{tpu_custom_call.1} parent=11 // pred_check_branch
          %573 = sbr.rel (%p571) target = $region20
        $region19: #{tpu_custom_call.1} parent=11 // pred_region
          %s575 = ssub.s32 16, 16
          %576 = vsyncadd [#allocation9], %s575
          %s578 = sshll.u32 [#allocation10], 4
          %s579 = int_to_ptr.vmem [resolvable:$true] %s578
          %581 = dma.hbm_to_vmem [thread:$0]  %s4, 16, %s579, [#allocation9]
        $region20: #{tpu_custom_call.1} parent=11 // pred_fallthru
          _
        // Predicated region
        $region21: #{tpu_custom_call.1} parent=11 // pred_check
          %p582 = pneg %p160
        $region22: #{tpu_custom_call.1} parent=11 // pred_check_branch
          %584 = sbr.rel (%p582) target = $region24
        $region23: #{tpu_custom_call.1} parent=11 // pred_region
          _
        $region24: #{tpu_custom_call.1} parent=11 // pred_fallthru
          _
        // Predicated region
        $region25: #{tpu_custom_call.1} parent=11 // pred_check
          %p585 = pneg %p181
        $region26: #{tpu_custom_call.1} parent=11 // pred_check_branch
          %587 = sbr.rel (%p585) target = $region28
        $region27: #{tpu_custom_call.1} parent=11 // pred_region
          %s589 = ssub.s32 16, 16
          %590 = vsyncadd [#allocation12], %s589
          %s592 = sshll.u32 [#allocation11], 4
          %s593 = int_to_ptr.vmem [resolvable:$true] %s592
          %595 = dma.hbm_to_vmem [thread:$0]  %s6, 16, %s593, [#allocation12]
        $region28: #{tpu_custom_call.1} parent=11 // pred_fallthru
          _
        // Predicated region
        $region29: #{tpu_custom_call.1} parent=11 // pred_check
          %p596 = pneg %p202
        $region30: #{tpu_custom_call.1} parent=11 // pred_check_branch
          %598 = sbr.rel (%p596) target = $region32
        $region31: #{tpu_custom_call.1} parent=11 // pred_region
          %s600 = ssub.s32 256, 256
          %601 = vsyncadd [#allocation12], %s600
          %s602 = sshll.u32 [#allocation13], 4
          %s603 = int_to_ptr.vmem [resolvable:$true] %s602
          %608 = dma.hbm_to_vmem [thread:$0]  %s7, 256, %s603, [#allocation12], 64, 64, 4
        $region32: #{tpu_custom_call.1} parent=11 // pred_fallthru
          _
        // Predicated region
        $region33: #{tpu_custom_call.1} parent=11 // pred_check
          %p609 = pneg %p223
        $region34: #{tpu_custom_call.1} parent=11 // pred_check_branch
          %611 = sbr.rel (%p609) target = $region36
        $region35: #{tpu_custom_call.1} parent=11 // pred_region
          %s613 = ssub.s32 16, 16
          %614 = vsyncadd [#allocation15], %s613
          %s616 = sshll.u32 [#allocation14], 4
          %s617 = int_to_ptr.vmem [resolvable:$true] %s616
          %619 = dma.hbm_to_vmem [thread:$0]  %s8, 16, %s617, [#allocation15]
        $region36: #{tpu_custom_call.1} parent=11 // pred_fallthru
          _
        // Predicated region
        $region37: #{tpu_custom_call.1} parent=11 // pred_check
          %p620 = pneg %p244
        $region38: #{tpu_custom_call.1} parent=11 // pred_check_branch
          %622 = sbr.rel (%p620) target = $region40
        $region39: #{tpu_custom_call.1} parent=11 // pred_region
          %s624 = ssub.s32 1280, 1280
          %625 = vsyncadd [#allocation15], %s624
          %s626 = sshll.u32 [#allocation16], 4
          %s627 = int_to_ptr.vmem [resolvable:$true] %s626
          %632 = dma.hbm_to_vmem [thread:$0]  %s9, 1280, %s627, [#allocation15], 64, 64, 4
        $region40: #{tpu_custom_call.1} parent=11 // pred_fallthru
          _
        // Predicated region
        $region41: #{tpu_custom_call.1} parent=11 // pred_check
          %p633 = pneg %p265
        $region42: #{tpu_custom_call.1} parent=11 // pred_check_branch
          %635 = sbr.rel (%p633) target = $region44
        $region43: #{tpu_custom_call.1} parent=11 // pred_region
          %s637 = ssub.s32 16, 16
          %638 = vsyncadd [#allocation18], %s637
          %s640 = sshll.u32 [#allocation17], 4
          %s641 = int_to_ptr.vmem [resolvable:$true] %s640
          %643 = dma.hbm_to_vmem [thread:$0]  %s10, 16, %s641, [#allocation18]
        $region44: #{tpu_custom_call.1} parent=11 // pred_fallthru
          _
        // Predicated region
        $region45: #{tpu_custom_call.1} parent=11 // pred_check
          %p644 = pneg %p286
        $region46: #{tpu_custom_call.1} parent=11 // pred_check_branch
          %646 = sbr.rel (%p644) target = $region48
        $region47: #{tpu_custom_call.1} parent=11 // pred_region
          %s648 = ssub.s32 1280, 1280
          %649 = vsyncadd [#allocation18], %s648
          %s650 = sshll.u32 [#allocation19], 4
          %s651 = int_to_ptr.vmem [resolvable:$true] %s650
          %656 = dma.hbm_to_vmem [thread:$0]  %s11, 1280, %s651, [#allocation18], 64, 64, 4
        $region48: #{tpu_custom_call.1} parent=11 // pred_fallthru
          _
        // Predicated region
        $region49: #{tpu_custom_call.1} parent=11 // pred_check
          %p657 = pneg %p307
        $region50: #{tpu_custom_call.1} parent=11 // pred_check_branch
          %659 = sbr.rel (%p657) target = $region52
        $region51: #{tpu_custom_call.1} parent=11 // pred_region
          %s661 = ssub.s32 16, 16
          %662 = vsyncadd [#allocation21], %s661
          %s664 = sshll.u32 [#allocation20], 4
          %s665 = int_to_ptr.vmem [resolvable:$true] %s664
          %667 = dma.hbm_to_vmem [thread:$0]  %s12, 16, %s665, [#allocation21]
        $region52: #{tpu_custom_call.1} parent=11 // pred_fallthru
          _
        // Predicated region
        $region53: #{tpu_custom_call.1} parent=11 // pred_check
          %p668 = pneg %p328
        $region54: #{tpu_custom_call.1} parent=11 // pred_check_branch
          %670 = sbr.rel (%p668) target = $region56
        $region55: #{tpu_custom_call.1} parent=11 // pred_region
          _
        $region56: #{tpu_custom_call.1} parent=11 // pred_fallthru
          _
        // Predicated region
        $region57: #{tpu_custom_call.1} parent=11 // pred_check
          %p671 = pneg %p349
        $region58: #{tpu_custom_call.1} parent=11 // pred_check_branch
          %673 = sbr.rel (%p671) target = $region60
        $region59: #{tpu_custom_call.1} parent=11 // pred_region
          %s675 = ssub.s32 16, 16
          %676 = vsyncadd [#allocation21], %s675
          %s678 = sshll.u32 [#allocation22], 4
          %s679 = int_to_ptr.vmem [resolvable:$true] %s678
          %681 = dma.hbm_to_vmem [thread:$0]  %s14, 16, %s679, [#allocation21]
        $region60: #{tpu_custom_call.1} parent=11 // pred_fallthru
          _
        // Predicated region
        $region61: #{tpu_custom_call.1} parent=11 // pred_check
          %p682 = pneg %p370
        $region62: #{tpu_custom_call.1} parent=11 // pred_check_branch
          %684 = sbr.rel (%p682) target = $region64
        $region63: #{tpu_custom_call.1} parent=11 // pred_region
          _
        $region64: #{tpu_custom_call.1} parent=11 // pred_fallthru
          _
        // Predicated region
        $region65: #{tpu_custom_call.1} parent=11 // pred_check
          %p685 = pneg %p391
        $region66: #{tpu_custom_call.1} parent=11 // pred_check_branch
          %687 = sbr.rel (%p685) target = $region68
        $region67: #{tpu_custom_call.1} parent=11 // pred_region
          %s689 = ssub.s32 16, 16
          %690 = vsyncadd [#allocation24], %s689
          %s692 = sshll.u32 [#allocation23], 4
          %s693 = int_to_ptr.vmem [resolvable:$true] %s692
          %695 = dma.hbm_to_vmem [thread:$0]  %s16, 16, %s693, [#allocation24]
        $region68: #{tpu_custom_call.1} parent=11 // pred_fallthru
          _
        // Predicated region
        $region69: #{tpu_custom_call.1} parent=11 // pred_check
          %p696 = pneg %p412
        $region70: #{tpu_custom_call.1} parent=11 // pred_check_branch
          %698 = sbr.rel (%p696) target = $region72
        $region71: #{tpu_custom_call.1} parent=11 // pred_region
          %s700 = ssub.s32 128, 128
          %701 = vsyncadd [#allocation24], %s700
          %s702 = sshll.u32 [#allocation25], 4
          %s703 = int_to_ptr.vmem [resolvable:$true] %s702
          %708 = dma.hbm_to_vmem [thread:$0]  %s17, 128, %s703, [#allocation24], 64, 64, 4
        $region72: #{tpu_custom_call.1} parent=11 // pred_fallthru
          _
        // Predicated region
        $region73: #{tpu_custom_call.1} parent=11 // pred_check
          %p709 = pneg %p433
        $region74: #{tpu_custom_call.1} parent=11 // pred_check_branch
          %711 = sbr.rel (%p709) target = $region76
        $region75: #{tpu_custom_call.1} parent=11 // pred_region
          _
        $region76: #{tpu_custom_call.1} parent=11 // pred_fallthru
          _
        // Predicated region
        $region77: #{tpu_custom_call.1} parent=11 // pred_check
          %p712 = pneg %p454
        $region78: #{tpu_custom_call.1} parent=11 // pred_check_branch
          %714 = sbr.rel (%p712) target = $region80
        $region79: #{tpu_custom_call.1} parent=11 // pred_region
          _
        $region80: #{tpu_custom_call.1} parent=11 // pred_fallthru
          _
        // Predicated region
        $region81: #{tpu_custom_call.1} parent=11 // pred_check
          %p715 = pneg %p475
        $region82: #{tpu_custom_call.1} parent=11 // pred_check_branch
          %717 = sbr.rel (%p715) target = $region84
        $region83: #{tpu_custom_call.1} parent=11 // pred_region
          _
        $region84: #{tpu_custom_call.1} parent=11 // pred_fallthru
          _
        // Predicated region
        $region85: #{tpu_custom_call.1} parent=11 // pred_check
          %p718 = pneg %p496
        $region86: #{tpu_custom_call.1} parent=11 // pred_check_branch
          %720 = sbr.rel (%p718) target = $region88
        $region87: #{tpu_custom_call.1} parent=11 // pred_region
          _
        $region88: #{tpu_custom_call.1} parent=11 // pred_fallthru
          _
        // Predicated region
        $region89: #{tpu_custom_call.1} parent=11 // pred_check
          %p721 = pneg %p517
        $region90: #{tpu_custom_call.1} parent=11 // pred_check_branch
          %723 = sbr.rel (%p721) target = $region92
        $region91: #{tpu_custom_call.1} parent=11 // pred_region
          _
        $region92: #{tpu_custom_call.1} parent=11 // pred_fallthru
          _
      $region12: #{tpu_custom_call.1} parent=5 // pred_fallthru
        _
      %p724 = scmp.lt.s32.totalorder %s45, 2
      // Predicated region
      $region93: #{tpu_custom_call.1} parent=5 // pred_check
        %p725 = pneg %p724
      $region94: #{tpu_custom_call.1} parent=5 // pred_check_branch
        %727 = sbr.rel (%p725) target = $region96
      $region95: #{tpu_custom_call.1} parent=5 // pred_region
        // Predicated region
        $region97: #{tpu_custom_call.1} parent=95 // pred_check
          %p728 = pneg %p65
        $region98: #{tpu_custom_call.1} parent=95 // pred_check_branch
          %730 = sbr.rel (%p728) target = $region100
        $region99: #{tpu_custom_call.1} parent=95 // pred_region
          %s731 = sand.u32 %s55, 1
          %s732 = scalar_lea.sflag [#allocation6], %s731
          %s733 = sand.u32 %s55, 1
          %s734 = smul.addr %s733, 8
          %s735 = scalar_lea.vmem [#allocation5], %s734
          %s737 = ssub.s32 128, 128
          %738 = vsyncadd %s732, %s737
          %s739 = smul.addr %s45, 2
          %s740 = smul.addr %s739, 64
          %s741 = scalar_lea.hbm %s1, %s740
          %s742 = sshll.u32 %s735, 4
          %s743 = int_to_ptr.vmem [resolvable:$true] %s742
          %748 = dma.hbm_to_vmem [thread:$0]  %s741, 128, %s743, %s732, 64, 64, 4
        $region100: #{tpu_custom_call.1} parent=95 // pred_fallthru
          _
        // Predicated region
        $region101: #{tpu_custom_call.1} parent=95 // pred_check
          %p749 = pneg %p91
        $region102: #{tpu_custom_call.1} parent=95 // pred_check_branch
          %751 = sbr.rel (%p749) target = $region104
        $region103: #{tpu_custom_call.1} parent=95 // pred_region
          %p752 = scmp.lt.s32.totalorder %s45, 1
          %s753 = scalar_select %p752, %s45, 1
          %s754 = scalar_lea.vmem %s2, %s753
        $region104: #{tpu_custom_call.1} parent=95 // pred_fallthru
          _
      $region96: #{tpu_custom_call.1} parent=5 // pred_fallthru
        _
      %p755 = scmp.le.s32.totalorder 1, %s45
      %p756 = scmp.lt.s32.totalorder %s45, 3
      %p757 = pnand %p755, %p756
      %p758 = pneg %p757
      // Predicated region
      $region105: #{tpu_custom_call.1} parent=5 // pred_check
        _
      $region106: #{tpu_custom_call.1} parent=5 // pred_check_branch
        %760 = sbr.rel (%p757) target = $region108
      $region107: #{tpu_custom_call.1} parent=5 // pred_region
        %s761 = ssub.s32 %s45, 1
        %s762 = sand.u32 %s58, 1
        %s763 = scalar_lea.sflag [#allocation6], %s762
        %s764 = sand.u32 %s58, 1
        %s765 = smul.addr %s764, 8
        %s766 = scalar_lea.vmem [#allocation5], %s765
        // Predicated region
        $region109: #{tpu_custom_call.1} parent=107 // pred_check
          %p767 = pneg %p71
        $region110: #{tpu_custom_call.1} parent=107 // pred_check_branch
          %769 = sbr.rel (%p767) target = $region112
        $region111: #{tpu_custom_call.1} parent=107 // pred_region
          %770 = dma.done %s763, 128
        $region112: #{tpu_custom_call.1} parent=107 // pred_fallthru
          _
        // Predicated region
        $region113: #{tpu_custom_call.1} parent=107 // pred_check
          %p771 = pneg %p118
        $region114: #{tpu_custom_call.1} parent=107 // pred_check_branch
          %773 = sbr.rel (%p771) target = $region116
        $region115: #{tpu_custom_call.1} parent=107 // pred_region
          %774 = dma.done [#allocation9], 192
        $region116: #{tpu_custom_call.1} parent=107 // pred_fallthru
          _
        // Predicated region
        $region117: #{tpu_custom_call.1} parent=107 // pred_check
          %p775 = pneg %p139
        $region118: #{tpu_custom_call.1} parent=107 // pred_check_branch
          %777 = sbr.rel (%p775) target = $region120
        $region119: #{tpu_custom_call.1} parent=107 // pred_region
          %778 = dma.done [#allocation9], 16
        $region120: #{tpu_custom_call.1} parent=107 // pred_fallthru
          _
        // Predicated region
        $region121: #{tpu_custom_call.1} parent=107 // pred_check
          %p779 = pneg %p181
        $region122: #{tpu_custom_call.1} parent=107 // pred_check_branch
          %781 = sbr.rel (%p779) target = $region124
        $region123: #{tpu_custom_call.1} parent=107 // pred_region
          %782 = dma.done [#allocation12], 16
        $region124: #{tpu_custom_call.1} parent=107 // pred_fallthru
          _
        // Predicated region
        $region125: #{tpu_custom_call.1} parent=107 // pred_check
          %p783 = pneg %p202
        $region126: #{tpu_custom_call.1} parent=107 // pred_check_branch
          %785 = sbr.rel (%p783) target = $region128
        $region127: #{tpu_custom_call.1} parent=107 // pred_region
          %786 = dma.done [#allocation12], 256
        $region128: #{tpu_custom_call.1} parent=107 // pred_fallthru
          _
        // Predicated region
        $region129: #{tpu_custom_call.1} parent=107 // pred_check
          %p787 = pneg %p223
        $region130: #{tpu_custom_call.1} parent=107 // pred_check_branch
          %789 = sbr.rel (%p787) target = $region132
        $region131: #{tpu_custom_call.1} parent=107 // pred_region
          %790 = dma.done [#allocation15], 16
        $region132: #{tpu_custom_call.1} parent=107 // pred_fallthru
          _
        // Predicated region
        $region133: #{tpu_custom_call.1} parent=107 // pred_check
          %p791 = pneg %p244
        $region134: #{tpu_custom_call.1} parent=107 // pred_check_branch
          %793 = sbr.rel (%p791) target = $region136
        $region135: #{tpu_custom_call.1} parent=107 // pred_region
          %794 = dma.done [#allocation15], 1280
        $region136: #{tpu_custom_call.1} parent=107 // pred_fallthru
          _
        // Predicated region
        $region137: #{tpu_custom_call.1} parent=107 // pred_check
          %p795 = pneg %p265
        $region138: #{tpu_custom_call.1} parent=107 // pred_check_branch
          %797 = sbr.rel (%p795) target = $region140
        $region139: #{tpu_custom_call.1} parent=107 // pred_region
          %798 = dma.done [#allocation18], 16
        $region140: #{tpu_custom_call.1} parent=107 // pred_fallthru
          _
        // Predicated region
        $region141: #{tpu_custom_call.1} parent=107 // pred_check
          %p799 = pneg %p286
        $region142: #{tpu_custom_call.1} parent=107 // pred_check_branch
          %801 = sbr.rel (%p799) target = $region144
        $region143: #{tpu_custom_call.1} parent=107 // pred_region
          %802 = dma.done [#allocation18], 1280
        $region144: #{tpu_custom_call.1} parent=107 // pred_fallthru
          _
        // Predicated region
        $region145: #{tpu_custom_call.1} parent=107 // pred_check
          %p803 = pneg %p307
        $region146: #{tpu_custom_call.1} parent=107 // pred_check_branch
          %805 = sbr.rel (%p803) target = $region148
        $region147: #{tpu_custom_call.1} parent=107 // pred_region
          %806 = dma.done [#allocation21], 16
        $region148: #{tpu_custom_call.1} parent=107 // pred_fallthru
          _
        // Predicated region
        $region149: #{tpu_custom_call.1} parent=107 // pred_check
          %p807 = pneg %p349
        $region150: #{tpu_custom_call.1} parent=107 // pred_check_branch
          %809 = sbr.rel (%p807) target = $region152
        $region151: #{tpu_custom_call.1} parent=107 // pred_region
          %810 = dma.done [#allocation21], 16
        $region152: #{tpu_custom_call.1} parent=107 // pred_fallthru
          _
        // Predicated region
        $region153: #{tpu_custom_call.1} parent=107 // pred_check
          %p811 = pneg %p391
        $region154: #{tpu_custom_call.1} parent=107 // pred_check_branch
          %813 = sbr.rel (%p811) target = $region156
        $region155: #{tpu_custom_call.1} parent=107 // pred_region
          %814 = dma.done [#allocation24], 16
        $region156: #{tpu_custom_call.1} parent=107 // pred_fallthru
          _
        // Predicated region
        $region157: #{tpu_custom_call.1} parent=107 // pred_check
          %p815 = pneg %p412
        $region158: #{tpu_custom_call.1} parent=107 // pred_check_branch
          %817 = sbr.rel (%p815) target = $region160
        $region159: #{tpu_custom_call.1} parent=107 // pred_region
          %818 = dma.done [#allocation24], 128
        $region160: #{tpu_custom_call.1} parent=107 // pred_fallthru
          _
        %s819 = sand.u32 %s58, 1
        %s820 = scalar_lea.sflag [#allocation6], %s819
        %s821 = sand.u32 %s58, 1
        %s822 = smul.addr %s821, 8
        %s823 = scalar_lea.vmem [#allocation5], %s822
        %p824 = pneg %p71
        %p825 = pneg %p68
        %p826 = scmp.lt.s32.totalorder %s50, 1
        %s827 = scalar_select %p826, %s50, 1
        %s828 = scalar_lea.vmem %s2, %s827
        %p829 = pneg %p97
        %p830 = pneg %p94
        %p831 = pneg %p118
        %p832 = pneg %p115
        %p833 = pneg %p139
        %p834 = pneg %p136
        %p835 = pneg %p160
        %p836 = pneg %p157
        %p837 = pneg %p181
        %p838 = pneg %p178
        %p839 = pneg %p202
        %p840 = pneg %p199
        %p841 = pneg %p223
        %p842 = pneg %p220
        %p843 = pneg %p244
        %p844 = pneg %p241
        %p845 = pneg %p265
        %p846 = pneg %p262
        %p847 = pneg %p286
        %p848 = pneg %p283
        %p849 = pneg %p307
        %p850 = pneg %p304
        %p851 = pneg %p328
        %p852 = pneg %p325
        %p853 = pneg %p349
        %p854 = pneg %p346
        %p855 = pneg %p370
        %p856 = pneg %p367
        %p857 = pneg %p391
        %p858 = pneg %p388
        %p859 = pneg %p412
        %p860 = pneg %p409
        %p861 = pneg %p433
        %p862 = pneg %p430
        %p863 = pneg %p454
        %p864 = pneg %p451
        %p865 = pneg %p475
        %p866 = pneg %p472
        %p867 = pneg %p496
        %p868 = pneg %p493
        %p869 = pneg %p517
        %p870 = pneg %p514
        %p871 = pneg %p543
        %p872 = pneg %p540
        %s873 = sand.u32 %s530, 1
        %s874 = scalar_lea.sflag [#allocation7], %s873
        %s875 = sand.u32 %s530, 1
        %s876 = scalar_lea.vmem [#allocation26], %s875
        %p877 = scmp.lt.s32.totalorder %s50, 1
        %s878 = scalar_select %p877, %s50, 1
        %s879 = scalar_lea.vmem %s2, %s878
        %s881 = sld [smem:[#allocation4 + %s50]]
        %v882 = vlaneseq
        %v883 = vshrl.u32 %v882, 7
        %v884 = vadd.s32 %v883, 8
        %v885 = vlaneseq
        %v886 = vand.u32 %v885, 127
        %v887 = vstv %s881
        %vm888 = vcmp.lt.s32.totalorder %v883, %v887
        %vm889 = vcmp.lt.s32.totalorder %v884, %v887
        %v890 = vsel %vm888, 1, 0
        %v891 = vsel %vm889, 1, 0
        %v892 = vcvt.s32.f32 %v890
        %v893 = vcvt.s32.f32 %v891
        %vm894 = vcmp.lt.s32.totalorder %v886, %v887
        %v895 = vld [vmem:[%s766] sm:$0xf]
        %v896 = vld [vmem:[%s766 + $0x4] sm:$0xf]
        %v897 = vld [vmem:[#allocation8] sm:$0xf]
        %v898 = vld [vmem:[#allocation8 + $0x4] sm:$0xf]
        %v899 = vld [vmem:[#allocation8 + $0x8] sm:$0x3]
        %v900 = vld [vmem:[#allocation10] sm:$0x1]
        %v902 = vlaneseq
        %v903 = vshrl.u32 %v902, 7
        %v904 = vsub.s32 0, %v903
        %v905 = vrot.slane %v900, %v904
        %v909 = vunpack.c.l.b16 %v895
        %v910 = vunpack.c.l.b16 %v896
        %v911 = vpack.c.b16 %v910, %v909
        %v915 = vunpack.c.l.b16 %v897
        %v916 = vunpack.c.l.b16 %v898
        %v917 = vunpack.c.l.b16 %v899
        %v918 = vpack.c.b16 %v916, %v915
        %v919 = vpack.c.b16 %v917, %v917
        %vm921 = vcmask 162816
        %v923 = vsel %vm921, %v911, 0
        %vm925 = vcmask 1041408
        %v927 = vsel %vm925, %v919, 0
        %929 = vmatprep.subr.bf16.mxu0 0
        %930 = vmatpush1.bf16.msra.mxu0 %v918
        %931 = vmatprep.subr.bf16.mxu0 0
        %932 = vmatpush1.bf16.msra.mxu0 %v927
        %933 = vmatprep.subr.bf16.mxu0 0
        %934 = vmatpush1.bf16.msra.mxu0 0
        %935 = vmatprep.subr.bf16.mxu0 0
        %936 = vmatpush1.bf16.msra.mxu0 0
        %937 = vmatprep.subr.bf16.mxu0 0
        %938 = vmatpush1.bf16.msra.mxu0 0
        %939 = vmatprep.subr.bf16.mxu0 0
        %940 = vmatpush1.bf16.msra.mxu0 0
        %941 = vmatprep.subr.bf16.mxu0 0
        %942 = vmatpush1.bf16.msra.mxu0 0
        %943 = vmatprep.subr.bf16.mxu0 0
        %944 = vmatpush1.bf16.msra.mxu0 0
        %945 = vmatprep.subr.bf16.mxu0 0
        %946 = vmatpush1.bf16.msra.mxu0 0
        %947 = vmatprep.subr.bf16.mxu0 0
        %948 = vmatpush1.bf16.msra.mxu0 0
        %949 = vmatprep.subr.bf16.mxu0 0
        %950 = vmatpush1.bf16.msra.mxu0 0
        %951 = vmatprep.subr.bf16.mxu0 0
        %952 = vmatpush1.bf16.msra.mxu0 0
        %953 = vmatprep.subr.bf16.mxu0 0
        %954 = vmatpush1.bf16.msra.mxu0 0
        %955 = vmatprep.subr.bf16.mxu0 0
        %956 = vmatpush1.bf16.msra.mxu0 0
        %957 = vmatprep.subr.bf16.mxu0 0
        %958 = vmatpush1.bf16.msra.mxu0 0
        %959 = vmatprep.subr.bf16.mxu0 0
        %960 = vmatpush1.bf16.msra.mxu0 0
        %961 = vmatprep.mubr.bf16.mxu0 0
        %962 = vmatmul.mubr.bf16.gmra.mrb[0].mxu0 %v923
        %v963 = vpop.f32.mrb[0].mxu0
        %v964 = vadd.f32 %v905, %v963
        %v965 = vpop.f32.mrb[0].mxu0
        %v966 = vpop.f32.mrb[0].mxu0
        %v967 = vadd.f32 %v905, %v966
        %v968 = vpop.f32.mrb[0].mxu0
        %969 = vdwg.mxu0
        %v970 = vmax.f32 %v964, 0.0
        %v971 = vmax.f32 %v967, 0.0
        %vm972 = vcmp.ne.f32.partialorder %v964, %v964
        %vm973 = vcmp.ne.f32.partialorder %v967, %v967
        %v974 = vadd.f32 %v964, 0.0
        %v975 = vadd.f32 %v967, 0.0
        %v976 = vand.u32 2147483647, %v964
        %v977 = vand.u32 2147483647, %v967
        %v978 = vsub.f32 0.0, %v976
        %v979 = vsub.f32 0.0, %v977
        %v980 = vmul.f32 %v978, 1.442695
        %v981 = vpow.pop %v980
        %v982 = vmul.f32 %v979, 1.442695
        %v983 = vpow.pop %v982
        %v984 = vadd.f32 %v981, 1.0
        %v985 = vlog2.pop %v984
        %v986 = vmul.f32 %v985, 0.6931472
        %v987 = vmul.f32 -0.5, %v981
        %v988 = vadd.f32 %v987, 1.0
        %v989 = vmul.f32 %v988, %v981
        %v990 = vand.u32 2147483647, %v981
        %vm991 = vcmp.lt.f32.partialorder %v990, 0.0004427343
        %v992 = vsel %vm991, %v989, %v986
        %v993 = vadd.f32 %v983, 1.0
        %v994 = vlog2.pop %v993
        %v995 = vmul.f32 %v994, 0.6931472
        %v996 = vmul.f32 -0.5, %v983
        %v997 = vadd.f32 %v996, 1.0
        %v998 = vmul.f32 %v997, %v983
        %v999 = vand.u32 2147483647, %v983
        %vm1000 = vcmp.lt.f32.partialorder %v999, 0.0004427343
        %v1001 = vsel %vm1000, %v998, %v995
        %v1002 = vadd.f32 %v970, %v992
        %v1003 = vadd.f32 %v971, %v1001
        %v1004 = vsel %vm972, %v974, %v1002
        %v1005 = vsel %vm973, %v975, %v1003
        %v1006 = vtanh.pop %v1004
        %v1007 = vtanh.pop %v1005
        %v1008 = vmul.f32 %v964, %v1006
        %v1009 = vmul.f32 %v967, %v1007
        %v1010 = vpack.c.bf16 %v1009, %v1008
        %v1011 = vld [vmem:[%s5] sm:$0xf]
        %v1012 = vld [vmem:[%s5 + $0x4] sm:$0xf]
        %v1013 = vld [vmem:[%s5 + $0x8] sm:$0xf]
        %v1014 = vld [vmem:[%s5 + $0xc] sm:$0xf]
        %v1015 = vld [vmem:[#allocation11] sm:$0x1]
        %v1017 = vlaneseq
        %v1018 = vshrl.u32 %v1017, 7
        %v1019 = vsub.s32 0, %v1018
        %v1020 = vrot.slane %v1015, %v1019
        %v1026 = vunpack.c.l.b16 %v1011
        %v1027 = vunpack.c.l.b16 %v1012
        %v1028 = vunpack.c.l.b16 %v1013
        %v1029 = vunpack.c.l.b16 %v1014
        %v1030 = vpack.c.b16 %v1027, %v1026
        %v1031 = vpack.c.b16 %v1029, %v1028
        %vm1034 = vcmask 261120
        %v1036 = vsel %vm1034, %v1010, 0
        %1038 = vmatprep.subr.bf16.mxu0 0
        %1039 = vmatpush1.bf16.msra.mxu0 %v1030
        %1040 = vmatprep.subr.bf16.mxu0 0
        %1041 = vmatpush1.bf16.msra.mxu0 %v1031
        %1042 = vmatprep.subr.bf16.mxu0 0
        %1043 = vmatpush1.bf16.msra.mxu0 0
        %1044 = vmatprep.subr.bf16.mxu0 0
        %1045 = vmatpush1.bf16.msra.mxu0 0
        %1046 = vmatprep.subr.bf16.mxu0 0
        %1047 = vmatpush1.bf16.msra.mxu0 0
        %1048 = vmatprep.subr.bf16.mxu0 0
        %1049 = vmatpush1.bf16.msra.mxu0 0
        %1050 = vmatprep.subr.bf16.mxu0 0
        %1051 = vmatpush1.bf16.msra.mxu0 0
        %1052 = vmatprep.subr.bf16.mxu0 0
        %1053 = vmatpush1.bf16.msra.mxu0 0
        %1054 = vmatprep.subr.bf16.mxu0 0
        %1055 = vmatpush1.bf16.msra.mxu0 0
        %1056 = vmatprep.subr.bf16.mxu0 0
        %1057 = vmatpush1.bf16.msra.mxu0 0
        %1058 = vmatprep.subr.bf16.mxu0 0
        %1059 = vmatpush1.bf16.msra.mxu0 0
        %1060 = vmatprep.subr.bf16.mxu0 0
        %1061 = vmatpush1.bf16.msra.mxu0 0
        %1062 = vmatprep.subr.bf16.mxu0 0
        %1063 = vmatpush1.bf16.msra.mxu0 0
        %1064 = vmatprep.subr.bf16.mxu0 0
        %1065 = vmatpush1.bf16.msra.mxu0 0
        %1066 = vmatprep.subr.bf16.mxu0 0
        %1067 = vmatpush1.bf16.msra.mxu0 0
        %1068 = vmatprep.subr.bf16.mxu0 0
        %1069 = vmatpush1.bf16.msra.mxu0 0
        %1070 = vmatprep.mubr.bf16.mxu0 0
        %1071 = vmatmul.mubr.bf16.gmra.mrb[0].mxu0 %v1036
        %v1072 = vpop.f32.mrb[0].mxu0
        %v1073 = vadd.f32 %v1020, %v1072
        %v1074 = vpop.f32.mrb[0].mxu0
        %v1075 = vpop.f32.mrb[0].mxu0
        %v1076 = vadd.f32 %v1020, %v1075
        %v1077 = vpop.f32.mrb[0].mxu0
        %1078 = vdwg.mxu0
        %v1079 = vmax.f32 %v1073, 0.0
        %v1080 = vmax.f32 %v1076, 0.0
        %vm1081 = vcmp.ne.f32.partialorder %v1073, %v1073
        %vm1082 = vcmp.ne.f32.partialorder %v1076, %v1076
        %v1083 = vadd.f32 %v1073, 0.0
        %v1084 = vadd.f32 %v1076, 0.0
        %v1085 = vand.u32 2147483647, %v1073
        %v1086 = vand.u32 2147483647, %v1076
        %v1087 = vsub.f32 0.0, %v1085
        %v1088 = vsub.f32 0.0, %v1086
        %v1089 = vmul.f32 %v1087, 1.442695
        %v1090 = vpow.pop %v1089
        %v1091 = vmul.f32 %v1088, 1.442695
        %v1092 = vpow.pop %v1091
        %v1093 = vadd.f32 %v1090, 1.0
        %v1094 = vlog2.pop %v1093
        %v1095 = vmul.f32 %v1094, 0.6931472
        %v1096 = vmul.f32 -0.5, %v1090
        %v1097 = vadd.f32 %v1096, 1.0
        %v1098 = vmul.f32 %v1097, %v1090
        %v1099 = vand.u32 2147483647, %v1090
        %vm1100 = vcmp.lt.f32.partialorder %v1099, 0.0004427343
        %v1101 = vsel %vm1100, %v1098, %v1095
        %v1102 = vadd.f32 %v1092, 1.0
        %v1103 = vlog2.pop %v1102
        %v1104 = vmul.f32 %v1103, 0.6931472
        %v1105 = vmul.f32 -0.5, %v1092
        %v1106 = vadd.f32 %v1105, 1.0
        %v1107 = vmul.f32 %v1106, %v1092
        %v1108 = vand.u32 2147483647, %v1092
        %vm1109 = vcmp.lt.f32.partialorder %v1108, 0.0004427343
        %v1110 = vsel %vm1109, %v1107, %v1104
        %v1111 = vadd.f32 %v1079, %v1101
        %v1112 = vadd.f32 %v1080, %v1110
        %v1113 = vsel %vm1081, %v1083, %v1111
        %v1114 = vsel %vm1082, %v1084, %v1112
        %v1115 = vtanh.pop %v1113
        %v1116 = vtanh.pop %v1114
        %v1117 = vmul.f32 %v1073, %v1115
        %v1118 = vmul.f32 %v1076, %v1116
        %v1119 = vpack.c.bf16 %v1118, %v1117
        %v1120 = vld [vmem:[#allocation13] sm:$0xf]
        %v1121 = vld [vmem:[#allocation13 + $0x4] sm:$0xf]
        %v1122 = vld [vmem:[#allocation13 + $0x8] sm:$0xf]
        %v1123 = vld [vmem:[#allocation13 + $0xc] sm:$0xf]
        %v1124 = vld [vmem:[#allocation14] sm:$0x1]
        %v1126 = vlaneseq
        %v1127 = vshrl.u32 %v1126, 7
        %v1128 = vsub.s32 0, %v1127
        %v1129 = vrot.slane %v1124, %v1128
        %v1135 = vunpack.c.l.b16 %v1120
        %v1136 = vunpack.c.l.b16 %v1121
        %v1137 = vunpack.c.l.b16 %v1122
        %v1138 = vunpack.c.l.b16 %v1123
        %v1139 = vpack.c.b16 %v1136, %v1135
        %v1140 = vpack.c.b16 %v1138, %v1137
        %v1144 = vsel %vm1034, %v1119, 0
        %1146 = vmatprep.subr.bf16.mxu0 0
        %1147 = vmatpush1.bf16.msra.mxu0 %v1139
        %1148 = vmatprep.subr.bf16.mxu0 0
        %1149 = vmatpush1.bf16.msra.mxu0 %v1140
        %1150 = vmatprep.subr.bf16.mxu0 0
        %1151 = vmatpush1.bf16.msra.mxu0 0
        %1152 = vmatprep.subr.bf16.mxu0 0
        %1153 = vmatpush1.bf16.msra.mxu0 0
        %1154 = vmatprep.subr.bf16.mxu0 0
        %1155 = vmatpush1.bf16.msra.mxu0 0
        %1156 = vmatprep.subr.bf16.mxu0 0
        %1157 = vmatpush1.bf16.msra.mxu0 0
        %1158 = vmatprep.subr.bf16.mxu0 0
        %1159 = vmatpush1.bf16.msra.mxu0 0
        %1160 = vmatprep.subr.bf16.mxu0 0
        %1161 = vmatpush1.bf16.msra.mxu0 0
        %1162 = vmatprep.subr.bf16.mxu0 0
        %1163 = vmatpush1.bf16.msra.mxu0 0
        %1164 = vmatprep.subr.bf16.mxu0 0
        %1165 = vmatpush1.bf16.msra.mxu0 0
        %1166 = vmatprep.subr.bf16.mxu0 0
        %1167 = vmatpush1.bf16.msra.mxu0 0
        %1168 = vmatprep.subr.bf16.mxu0 0
        %1169 = vmatpush1.bf16.msra.mxu0 0
        %1170 = vmatprep.subr.bf16.mxu0 0
        %1171 = vmatpush1.bf16.msra.mxu0 0
        %1172 = vmatprep.subr.bf16.mxu0 0
        %1173 = vmatpush1.bf16.msra.mxu0 0
        %1174 = vmatprep.subr.bf16.mxu0 0
        %1175 = vmatpush1.bf16.msra.mxu0 0
        %1176 = vmatprep.subr.bf16.mxu0 0
        %1177 = vmatpush1.bf16.msra.mxu0 0
        %1178 = vmatprep.mubr.bf16.mxu0 0
        %1179 = vmatmul.mubr.bf16.gmra.mrb[0].mxu0 %v1144
        %v1180 = vpop.f32.mrb[0].mxu0
        %v1181 = vadd.f32 %v1129, %v1180
        %v1182 = vpop.f32.mrb[0].mxu0
        %v1183 = vpop.f32.mrb[0].mxu0
        %v1184 = vadd.f32 %v1129, %v1183
        %v1185 = vpop.f32.mrb[0].mxu0
        %1186 = vdwg.mxu0
        %v1187 = vmax.f32 %v1181, 0.0
        %v1188 = vmax.f32 %v1184, 0.0
        %vm1189 = vcmp.ne.f32.partialorder %v1181, %v1181
        %vm1190 = vcmp.ne.f32.partialorder %v1184, %v1184
        %v1191 = vadd.f32 %v1181, 0.0
        %v1192 = vadd.f32 %v1184, 0.0
        %v1193 = vand.u32 2147483647, %v1181
        %v1194 = vand.u32 2147483647, %v1184
        %v1195 = vsub.f32 0.0, %v1193
        %v1196 = vsub.f32 0.0, %v1194
        %v1197 = vmul.f32 %v1195, 1.442695
        %v1198 = vpow.pop %v1197
        %v1199 = vmul.f32 %v1196, 1.442695
        %v1200 = vpow.pop %v1199
        %v1201 = vadd.f32 %v1198, 1.0
        %v1202 = vlog2.pop %v1201
        %v1203 = vmul.f32 %v1202, 0.6931472
        %v1204 = vmul.f32 -0.5, %v1198
        %v1205 = vadd.f32 %v1204, 1.0
        %v1206 = vmul.f32 %v1205, %v1198
        %v1207 = vand.u32 2147483647, %v1198
        %vm1208 = vcmp.lt.f32.partialorder %v1207, 0.0004427343
        %v1209 = vsel %vm1208, %v1206, %v1203
        %v1210 = vadd.f32 %v1200, 1.0
        %v1211 = vlog2.pop %v1210
        %v1212 = vmul.f32 %v1211, 0.6931472
        %v1213 = vmul.f32 -0.5, %v1200
        %v1214 = vadd.f32 %v1213, 1.0
        %v1215 = vmul.f32 %v1214, %v1200
        %v1216 = vand.u32 2147483647, %v1200
        %vm1217 = vcmp.lt.f32.partialorder %v1216, 0.0004427343
        %v1218 = vsel %vm1217, %v1215, %v1212
        %v1219 = vadd.f32 %v1187, %v1209
        %v1220 = vadd.f32 %v1188, %v1218
        %v1221 = vsel %vm1189, %v1191, %v1219
        %v1222 = vsel %vm1190, %v1192, %v1220
        %v1223 = vtanh.pop %v1221
        %v1224 = vtanh.pop %v1222
        %v1225 = vmul.f32 %v1181, %v1223
        %v1226 = vmul.f32 %v1184, %v1224
        %v1227 = vmul.f32 %v1225, %v892
        %v1228 = vmul.f32 %v1226, %v893
        %vm1229 = vcmask 254976
        %1230 = vst.msk [vmem:[#allocation2] sm:$0x3] %vm1229, 0.0
        %1231 = vst.msk [vmem:[#allocation2 + $0x12] sm:$0x3] %vm1229, 0.0
        %1232 = vst.msk [vmem:[#allocation2 + $0x2] sm:$0xff] %vm1034, %v1227
        %1233 = vst.msk [vmem:[#allocation2 + $0xa] sm:$0xff] %vm1034, %v1228
        %v1234 = vpack.c.bf16 %v1228, %v1227
        %s1235 = scalar_lea.vmem [#allocation16], 32
        %v1236 = vld [vmem:[%s1235] sm:$0xf]
        %v1237 = vld [vmem:[%s1235 + $0x4] sm:$0xf]
        %v1238 = vld [vmem:[%s1235 + $0x8] sm:$0xf]
        %v1239 = vld [vmem:[%s1235 + $0xc] sm:$0xf]
        %v1240 = vld [vmem:[#allocation2] sm:$0xff]
        %v1241 = vld [vmem:[#allocation2 + $0x8] sm:$0xff]
        %v1242 = vpack.c.bf16 %v1241, %v1240
        %v1243 = vld [vmem:[#allocation16] sm:$0xf]
        %v1244 = vld [vmem:[#allocation16 + $0x4] sm:$0xf]
        %v1245 = vld [vmem:[#allocation16 + $0x8] sm:$0xf]
        %v1246 = vld [vmem:[#allocation16 + $0xc] sm:$0xf]
        %v1251 = vunpack.c.l.b16 %v1243
        %v1252 = vunpack.c.l.b16 %v1244
        %v1253 = vunpack.c.l.b16 %v1245
        %v1254 = vunpack.c.l.b16 %v1246
        %v1255 = vpack.c.b16 %v1252, %v1251
        %v1256 = vpack.c.b16 %v1254, %v1253
        %v1260 = vsel %vm1034, %v1242, 0
        %1262 = vmatprep.subr.bf16.mxu0 0
        %1263 = vmatpush1.bf16.msra.mxu0 %v1255
        %1264 = vmatprep.subr.bf16.mxu0 0
        %1265 = vmatpush1.bf16.msra.mxu0 %v1256
        %1266 = vmatprep.subr.bf16.mxu0 0
        %1267 = vmatpush1.bf16.msra.mxu0 0
        %1268 = vmatprep.subr.bf16.mxu0 0
        %1269 = vmatpush1.bf16.msra.mxu0 0
        %1270 = vmatprep.subr.bf16.mxu0 0
        %1271 = vmatpush1.bf16.msra.mxu0 0
        %1272 = vmatprep.subr.bf16.mxu0 0
        %1273 = vmatpush1.bf16.msra.mxu0 0
        %1274 = vmatprep.subr.bf16.mxu0 0
        %1275 = vmatpush1.bf16.msra.mxu0 0
        %1276 = vmatprep.subr.bf16.mxu0 0
        %1277 = vmatpush1.bf16.msra.mxu0 0
        %1278 = vmatprep.subr.bf16.mxu0 0
        %1279 = vmatpush1.bf16.msra.mxu0 0
        %1280 = vmatprep.subr.bf16.mxu0 0
        %1281 = vmatpush1.bf16.msra.mxu0 0
        %1282 = vmatprep.subr.bf16.mxu0 0
        %1283 = vmatpush1.bf16.msra.mxu0 0
        %1284 = vmatprep.subr.bf16.mxu0 0
        %1285 = vmatpush1.bf16.msra.mxu0 0
        %1286 = vmatprep.subr.bf16.mxu0 0
        %1287 = vmatpush1.bf16.msra.mxu0 0
        %1288 = vmatprep.subr.bf16.mxu0 0
        %1289 = vmatpush1.bf16.msra.mxu0 0
        %1290 = vmatprep.subr.bf16.mxu0 0
        %1291 = vmatpush1.bf16.msra.mxu0 0
        %1292 = vmatprep.subr.bf16.mxu0 0
        %1293 = vmatpush1.bf16.msra.mxu0 0
        %1294 = vmatprep.mubr.bf16.mxu0 0
        %1295 = vmatmul.mubr.bf16.gmra.mrb[0].mxu0 %v1260
        %v1296 = vpop.f32.mrb[0].mxu0
        %v1297 = vadd.f32 0.0, %v1296
        %v1298 = vpop.f32.mrb[0].mxu0
        %v1299 = vpop.f32.mrb[0].mxu0
        %v1300 = vadd.f32 0.0, %v1299
        %v1301 = vpop.f32.mrb[0].mxu0
        %1302 = vdwg.mxu0
        %v1307 = vunpack.c.l.b16 %v1236
        %v1308 = vunpack.c.l.b16 %v1237
        %v1309 = vunpack.c.l.b16 %v1238
        %v1310 = vunpack.c.l.b16 %v1239
        %v1311 = vpack.c.b16 %v1308, %v1307
        %v1312 = vpack.c.b16 %v1310, %v1309
        %v1316 = vsel %vm1034, %v1234, 0
        %1318 = vmatprep.subr.bf16.mxu0 0
        %1319 = vmatpush1.bf16.msra.mxu0 %v1311
        %1320 = vmatprep.subr.bf16.mxu0 0
        %1321 = vmatpush1.bf16.msra.mxu0 %v1312
        %1322 = vmatprep.subr.bf16.mxu0 0
        %1323 = vmatpush1.bf16.msra.mxu0 0
        %1324 = vmatprep.subr.bf16.mxu0 0
        %1325 = vmatpush1.bf16.msra.mxu0 0
        %1326 = vmatprep.subr.bf16.mxu0 0
        %1327 = vmatpush1.bf16.msra.mxu0 0
        %1328 = vmatprep.subr.bf16.mxu0 0
        %1329 = vmatpush1.bf16.msra.mxu0 0
        %1330 = vmatprep.subr.bf16.mxu0 0
        %1331 = vmatpush1.bf16.msra.mxu0 0
        %1332 = vmatprep.subr.bf16.mxu0 0
        %1333 = vmatpush1.bf16.msra.mxu0 0
        %1334 = vmatprep.subr.bf16.mxu0 0
        %1335 = vmatpush1.bf16.msra.mxu0 0
        %1336 = vmatprep.subr.bf16.mxu0 0
        %1337 = vmatpush1.bf16.msra.mxu0 0
        %1338 = vmatprep.subr.bf16.mxu0 0
        %1339 = vmatpush1.bf16.msra.mxu0 0
        %1340 = vmatprep.subr.bf16.mxu0 0
        %1341 = vmatpush1.bf16.msra.mxu0 0
        %1342 = vmatprep.subr.bf16.mxu0 0
        %1343 = vmatpush1.bf16.msra.mxu0 0
        %1344 = vmatprep.subr.bf16.mxu0 0
        %1345 = vmatpush1.bf16.msra.mxu0 0
        %1346 = vmatprep.subr.bf16.mxu0 0
        %1347 = vmatpush1.bf16.msra.mxu0 0
        %1348 = vmatprep.subr.bf16.mxu0 0
        %1349 = vmatpush1.bf16.msra.mxu0 0
        %1350 = vmatprep.mubr.bf16.mxu0 0
        %1351 = vmatmul.mubr.bf16.gmra.mrb[0].mxu0 %v1316
        %v1352 = vpop.f32.mrb[0].mxu0
        %v1353 = vadd.f32 %v1297, %v1352
        %v1354 = vpop.f32.mrb[0].mxu0
        %v1355 = vpop.f32.mrb[0].mxu0
        %v1356 = vadd.f32 %v1300, %v1355
        %v1357 = vpop.f32.mrb[0].mxu0
        %1358 = vdwg.mxu0
        %v1359 = vld [vmem:[#allocation2 + $0x1] sm:$0xff]
        %v1360 = vld [vmem:[#allocation2 + $0x9] sm:$0xff]
        %v1361 = vpack.c.bf16 %v1360, %v1359
        %s1362 = scalar_lea.vmem [#allocation16], 16
        %v1363 = vld [vmem:[%s1362] sm:$0xf]
        %v1364 = vld [vmem:[%s1362 + $0x4] sm:$0xf]
        %v1365 = vld [vmem:[%s1362 + $0x8] sm:$0xf]
        %v1366 = vld [vmem:[%s1362 + $0xc] sm:$0xf]
        %v1371 = vunpack.c.l.b16 %v1363
        %v1372 = vunpack.c.l.b16 %v1364
        %v1373 = vunpack.c.l.b16 %v1365
        %v1374 = vunpack.c.l.b16 %v1366
        %v1375 = vpack.c.b16 %v1372, %v1371
        %v1376 = vpack.c.b16 %v1374, %v1373
        %v1380 = vsel %vm1034, %v1361, 0
        %1382 = vmatprep.subr.bf16.mxu0 0
        %1383 = vmatpush1.bf16.msra.mxu0 %v1375
        %1384 = vmatprep.subr.bf16.mxu0 0
        %1385 = vmatpush1.bf16.msra.mxu0 %v1376
        %1386 = vmatprep.subr.bf16.mxu0 0
        %1387 = vmatpush1.bf16.msra.mxu0 0
        %1388 = vmatprep.subr.bf16.mxu0 0
        %1389 = vmatpush1.bf16.msra.mxu0 0
        %1390 = vmatprep.subr.bf16.mxu0 0
        %1391 = vmatpush1.bf16.msra.mxu0 0
        %1392 = vmatprep.subr.bf16.mxu0 0
        %1393 = vmatpush1.bf16.msra.mxu0 0
        %1394 = vmatprep.subr.bf16.mxu0 0
        %1395 = vmatpush1.bf16.msra.mxu0 0
        %1396 = vmatprep.subr.bf16.mxu0 0
        %1397 = vmatpush1.bf16.msra.mxu0 0
        %1398 = vmatprep.subr.bf16.mxu0 0
        %1399 = vmatpush1.bf16.msra.mxu0 0
        %1400 = vmatprep.subr.bf16.mxu0 0
        %1401 = vmatpush1.bf16.msra.mxu0 0
        %1402 = vmatprep.subr.bf16.mxu0 0
        %1403 = vmatpush1.bf16.msra.mxu0 0
        %1404 = vmatprep.subr.bf16.mxu0 0
        %1405 = vmatpush1.bf16.msra.mxu0 0
        %1406 = vmatprep.subr.bf16.mxu0 0
        %1407 = vmatpush1.bf16.msra.mxu0 0
        %1408 = vmatprep.subr.bf16.mxu0 0
        %1409 = vmatpush1.bf16.msra.mxu0 0
        %1410 = vmatprep.subr.bf16.mxu0 0
        %1411 = vmatpush1.bf16.msra.mxu0 0
        %1412 = vmatprep.subr.bf16.mxu0 0
        %1413 = vmatpush1.bf16.msra.mxu0 0
        %1414 = vmatprep.mubr.bf16.mxu0 0
        %1415 = vmatmul.mubr.bf16.gmra.mrb[0].mxu0 %v1380
        %v1416 = vpop.f32.mrb[0].mxu0
        %v1417 = vadd.f32 0.0, %v1416
        %v1418 = vpop.f32.mrb[0].mxu0
        %v1419 = vpop.f32.mrb[0].mxu0
        %v1420 = vadd.f32 0.0, %v1419
        %v1421 = vpop.f32.mrb[0].mxu0
        %1422 = vdwg.mxu0
        %v1423 = vadd.f32 %v1353, %v1417
        %v1424 = vadd.f32 %v1356, %v1420
        %v1425 = vld [vmem:[#allocation2 + $0x3] sm:$0xff]
        %v1426 = vld [vmem:[#allocation2 + $0xb] sm:$0xff]
        %v1427 = vpack.c.bf16 %v1426, %v1425
        %s1428 = scalar_lea.vmem [#allocation16], 48
        %v1429 = vld [vmem:[%s1428] sm:$0xf]
        %v1430 = vld [vmem:[%s1428 + $0x4] sm:$0xf]
        %v1431 = vld [vmem:[%s1428 + $0x8] sm:$0xf]
        %v1432 = vld [vmem:[%s1428 + $0xc] sm:$0xf]
        %v1437 = vunpack.c.l.b16 %v1429
        %v1438 = vunpack.c.l.b16 %v1430
        %v1439 = vunpack.c.l.b16 %v1431
        %v1440 = vunpack.c.l.b16 %v1432
        %v1441 = vpack.c.b16 %v1438, %v1437
        %v1442 = vpack.c.b16 %v1440, %v1439
        %v1446 = vsel %vm1034, %v1427, 0
        %1448 = vmatprep.subr.bf16.mxu0 0
        %1449 = vmatpush1.bf16.msra.mxu0 %v1441
        %1450 = vmatprep.subr.bf16.mxu0 0
        %1451 = vmatpush1.bf16.msra.mxu0 %v1442
        %1452 = vmatprep.subr.bf16.mxu0 0
        %1453 = vmatpush1.bf16.msra.mxu0 0
        %1454 = vmatprep.subr.bf16.mxu0 0
        %1455 = vmatpush1.bf16.msra.mxu0 0
        %1456 = vmatprep.subr.bf16.mxu0 0
        %1457 = vmatpush1.bf16.msra.mxu0 0
        %1458 = vmatprep.subr.bf16.mxu0 0
        %1459 = vmatpush1.bf16.msra.mxu0 0
        %1460 = vmatprep.subr.bf16.mxu0 0
        %1461 = vmatpush1.bf16.msra.mxu0 0
        %1462 = vmatprep.subr.bf16.mxu0 0
        %1463 = vmatpush1.bf16.msra.mxu0 0
        %1464 = vmatprep.subr.bf16.mxu0 0
        %1465 = vmatpush1.bf16.msra.mxu0 0
        %1466 = vmatprep.subr.bf16.mxu0 0
        %1467 = vmatpush1.bf16.msra.mxu0 0
        %1468 = vmatprep.subr.bf16.mxu0 0
        %1469 = vmatpush1.bf16.msra.mxu0 0
        %1470 = vmatprep.subr.bf16.mxu0 0
        %1471 = vmatpush1.bf16.msra.mxu0 0
        %1472 = vmatprep.subr.bf16.mxu0 0
        %1473 = vmatpush1.bf16.msra.mxu0 0
        %1474 = vmatprep.subr.bf16.mxu0 0
        %1475 = vmatpush1.bf16.msra.mxu0 0
        %1476 = vmatprep.subr.bf16.mxu0 0
        %1477 = vmatpush1.bf16.msra.mxu0 0
        %1478 = vmatprep.subr.bf16.mxu0 0
        %1479 = vmatpush1.bf16.msra.mxu0 0
        %1480 = vmatprep.mubr.bf16.mxu0 0
        %1481 = vmatmul.mubr.bf16.gmra.mrb[0].mxu0 %v1446
        %v1482 = vpop.f32.mrb[0].mxu0
        %v1483 = vadd.f32 0.0, %v1482
        %v1484 = vpop.f32.mrb[0].mxu0
        %v1485 = vpop.f32.mrb[0].mxu0
        %v1486 = vadd.f32 0.0, %v1485
        %v1487 = vpop.f32.mrb[0].mxu0
        %1488 = vdwg.mxu0
        %v1489 = vadd.f32 %v1423, %v1483
        %v1490 = vadd.f32 %v1424, %v1486
        %v1491 = vld [vmem:[#allocation2 + $0x4] sm:$0xff]
        %v1492 = vld [vmem:[#allocation2 + $0xc] sm:$0xff]
        %v1493 = vpack.c.bf16 %v1492, %v1491
        %s1494 = scalar_lea.vmem [#allocation16], 64
        %v1495 = vld [vmem:[%s1494] sm:$0xf]
        %v1496 = vld [vmem:[%s1494 + $0x4] sm:$0xf]
        %v1497 = vld [vmem:[%s1494 + $0x8] sm:$0xf]
        %v1498 = vld [vmem:[%s1494 + $0xc] sm:$0xf]
        %v1503 = vunpack.c.l.b16 %v1495
        %v1504 = vunpack.c.l.b16 %v1496
        %v1505 = vunpack.c.l.b16 %v1497
        %v1506 = vunpack.c.l.b16 %v1498
        %v1507 = vpack.c.b16 %v1504, %v1503
        %v1508 = vpack.c.b16 %v1506, %v1505
        %v1512 = vsel %vm1034, %v1493, 0
        %1514 = vmatprep.subr.bf16.mxu0 0
        %1515 = vmatpush1.bf16.msra.mxu0 %v1507
        %1516 = vmatprep.subr.bf16.mxu0 0
        %1517 = vmatpush1.bf16.msra.mxu0 %v1508
        %1518 = vmatprep.subr.bf16.mxu0 0
        %1519 = vmatpush1.bf16.msra.mxu0 0
        %1520 = vmatprep.subr.bf16.mxu0 0
        %1521 = vmatpush1.bf16.msra.mxu0 0
        %1522 = vmatprep.subr.bf16.mxu0 0
        %1523 = vmatpush1.bf16.msra.mxu0 0
        %1524 = vmatprep.subr.bf16.mxu0 0
        %1525 = vmatpush1.bf16.msra.mxu0 0
        %1526 = vmatprep.subr.bf16.mxu0 0
        %1527 = vmatpush1.bf16.msra.mxu0 0
        %1528 = vmatprep.subr.bf16.mxu0 0
        %1529 = vmatpush1.bf16.msra.mxu0 0
        %1530 = vmatprep.subr.bf16.mxu0 0
        %1531 = vmatpush1.bf16.msra.mxu0 0
        %1532 = vmatprep.subr.bf16.mxu0 0
        %1533 = vmatpush1.bf16.msra.mxu0 0
        %1534 = vmatprep.subr.bf16.mxu0 0
        %1535 = vmatpush1.bf16.msra.mxu0 0
        %1536 = vmatprep.subr.bf16.mxu0 0
        %1537 = vmatpush1.bf16.msra.mxu0 0
        %1538 = vmatprep.subr.bf16.mxu0 0
        %1539 = vmatpush1.bf16.msra.mxu0 0
        %1540 = vmatprep.subr.bf16.mxu0 0
        %1541 = vmatpush1.bf16.msra.mxu0 0
        %1542 = vmatprep.subr.bf16.mxu0 0
        %1543 = vmatpush1.bf16.msra.mxu0 0
        %1544 = vmatprep.subr.bf16.mxu0 0
        %1545 = vmatpush1.bf16.msra.mxu0 0
        %1546 = vmatprep.mubr.bf16.mxu0 0
        %1547 = vmatmul.mubr.bf16.gmra.mrb[0].mxu0 %v1512
        %v1548 = vpop.f32.mrb[0].mxu0
        %v1549 = vadd.f32 0.0, %v1548
        %v1550 = vpop.f32.mrb[0].mxu0
        %v1551 = vpop.f32.mrb[0].mxu0
        %v1552 = vadd.f32 0.0, %v1551
        %v1553 = vpop.f32.mrb[0].mxu0
        %1554 = vdwg.mxu0
        %v1555 = vadd.f32 %v1489, %v1549
        %v1556 = vadd.f32 %v1490, %v1552
        %v1557 = vld [vmem:[#allocation17] sm:$0x1]
        %v1559 = vlaneseq
        %v1560 = vshrl.u32 %v1559, 7
        %v1561 = vsub.s32 0, %v1560
        %v1562 = vrot.slane %v1557, %v1561
        %v1564 = vadd.f32 %v1555, %v1562
        %v1565 = vadd.f32 %v1556, %v1562
        %v1566 = vmax.f32 %v1564, 0.0
        %v1567 = vmax.f32 %v1565, 0.0
        %vm1568 = vcmp.ne.f32.partialorder %v1564, %v1564
        %vm1569 = vcmp.ne.f32.partialorder %v1565, %v1565
        %v1570 = vadd.f32 %v1564, 0.0
        %v1571 = vadd.f32 %v1565, 0.0
        %v1572 = vand.u32 2147483647, %v1564
        %v1573 = vand.u32 2147483647, %v1565
        %v1574 = vsub.f32 0.0, %v1572
        %v1575 = vsub.f32 0.0, %v1573
        %v1576 = vmul.f32 %v1574, 1.442695
        %v1577 = vpow.pop %v1576
        %v1578 = vmul.f32 %v1575, 1.442695
        %v1579 = vpow.pop %v1578
        %v1580 = vadd.f32 %v1577, 1.0
        %v1581 = vlog2.pop %v1580
        %v1582 = vmul.f32 %v1581, 0.6931472
        %v1583 = vmul.f32 -0.5, %v1577
        %v1584 = vadd.f32 %v1583, 1.0
        %v1585 = vmul.f32 %v1584, %v1577
        %v1586 = vand.u32 2147483647, %v1577
        %vm1587 = vcmp.lt.f32.partialorder %v1586, 0.0004427343
        %v1588 = vsel %vm1587, %v1585, %v1582
        %v1589 = vadd.f32 %v1579, 1.0
        %v1590 = vlog2.pop %v1589
        %v1591 = vmul.f32 %v1590, 0.6931472
        %v1592 = vmul.f32 -0.5, %v1579
        %v1593 = vadd.f32 %v1592, 1.0
        %v1594 = vmul.f32 %v1593, %v1579
        %v1595 = vand.u32 2147483647, %v1579
        %vm1596 = vcmp.lt.f32.partialorder %v1595, 0.0004427343
        %v1597 = vsel %vm1596, %v1594, %v1591
        %v1598 = vadd.f32 %v1566, %v1588
        %v1599 = vadd.f32 %v1567, %v1597
        %v1600 = vsel %vm1568, %v1570, %v1598
        %v1601 = vsel %vm1569, %v1571, %v1599
        %v1602 = vtanh.pop %v1600
        %v1603 = vtanh.pop %v1601
        %v1604 = vmul.f32 %v1564, %v1602
        %v1605 = vmul.f32 %v1565, %v1603
        %v1606 = vxor.u32 %v1604, 2147483648
        %v1607 = vxor.u32 %v1605, 2147483648
        %v1608 = vmul.f32 %v1606, 1.442695
        %v1609 = vpow.pop %v1608
        %v1610 = vmul.f32 %v1607, 1.442695
        %v1611 = vpow.pop %v1610
        %v1612 = vadd.f32 %v1609, 1.0
        %v1613 = vadd.f32 %v1611, 1.0
        %v1614 = vrcp.pop %v1612
        %v1615 = vmul.f32 1.0, %v1614
        %v1616 = vrcp.pop %v1613
        %v1617 = vmul.f32 1.0, %v1616
        %1620 = vrot.lane.b32.xlu0 %v1615, 96
        %v1621 = vpop.permute.xlu0 %1620
        %1622 = vrot.lane.b32.xlu0 %v1617, 96
        %v1623 = vpop.permute.xlu0 %1622
        %v1626 = vmul.f32 %v1604, %v1621
        %v1627 = vmul.f32 %v1605, %v1623
        %v1628 = vadd.f32 %v1227, %v1626
        %v1629 = vadd.f32 %v1228, %v1627
        %v1630 = vmul.f32 %v1628, %v892
        %v1631 = vmul.f32 %v1629, %v893
        %1632 = vst.msk [vmem:[#allocation2 + $0x2] sm:$0xff] %vm1034, %v1630
        %1633 = vst.msk [vmem:[#allocation2 + $0xa] sm:$0xff] %vm1034, %v1631
        %v1634 = vpack.c.bf16 %v1631, %v1630
        %s1635 = scalar_lea.vmem [#allocation19], 32
        %v1636 = vld [vmem:[%s1635] sm:$0xf]
        %v1637 = vld [vmem:[%s1635 + $0x4] sm:$0xf]
        %v1638 = vld [vmem:[%s1635 + $0x8] sm:$0xf]
        %v1639 = vld [vmem:[%s1635 + $0xc] sm:$0xf]
        %v1640 = vld [vmem:[#allocation2] sm:$0xff]
        %v1641 = vld [vmem:[#allocation2 + $0x8] sm:$0xff]
        %v1642 = vpack.c.bf16 %v1641, %v1640
        %v1643 = vld [vmem:[#allocation19] sm:$0xf]
        %v1644 = vld [vmem:[#allocation19 + $0x4] sm:$0xf]
        %v1645 = vld [vmem:[#allocation19 + $0x8] sm:$0xf]
        %v1646 = vld [vmem:[#allocation19 + $0xc] sm:$0xf]
        %v1651 = vunpack.c.l.b16 %v1643
        %v1652 = vunpack.c.l.b16 %v1644
        %v1653 = vunpack.c.l.b16 %v1645
        %v1654 = vunpack.c.l.b16 %v1646
        %v1655 = vpack.c.b16 %v1652, %v1651
        %v1656 = vpack.c.b16 %v1654, %v1653
        %v1660 = vsel %vm1034, %v1642, 0
        %1662 = vmatprep.subr.bf16.mxu0 0
        %1663 = vmatpush1.bf16.msra.mxu0 %v1655
        %1664 = vmatprep.subr.bf16.mxu0 0
        %1665 = vmatpush1.bf16.msra.mxu0 %v1656
        %1666 = vmatprep.subr.bf16.mxu0 0
        %1667 = vmatpush1.bf16.msra.mxu0 0
        %1668 = vmatprep.subr.bf16.mxu0 0
        %1669 = vmatpush1.bf16.msra.mxu0 0
        %1670 = vmatprep.subr.bf16.mxu0 0
        %1671 = vmatpush1.bf16.msra.mxu0 0
        %1672 = vmatprep.subr.bf16.mxu0 0
        %1673 = vmatpush1.bf16.msra.mxu0 0
        %1674 = vmatprep.subr.bf16.mxu0 0
        %1675 = vmatpush1.bf16.msra.mxu0 0
        %1676 = vmatprep.subr.bf16.mxu0 0
        %1677 = vmatpush1.bf16.msra.mxu0 0
        %1678 = vmatprep.subr.bf16.mxu0 0
        %1679 = vmatpush1.bf16.msra.mxu0 0
        %1680 = vmatprep.subr.bf16.mxu0 0
        %1681 = vmatpush1.bf16.msra.mxu0 0
        %1682 = vmatprep.subr.bf16.mxu0 0
        %1683 = vmatpush1.bf16.msra.mxu0 0
        %1684 = vmatprep.subr.bf16.mxu0 0
        %1685 = vmatpush1.bf16.msra.mxu0 0
        %1686 = vmatprep.subr.bf16.mxu0 0
        %1687 = vmatpush1.bf16.msra.mxu0 0
        %1688 = vmatprep.subr.bf16.mxu0 0
        %1689 = vmatpush1.bf16.msra.mxu0 0
        %1690 = vmatprep.subr.bf16.mxu0 0
        %1691 = vmatpush1.bf16.msra.mxu0 0
        %1692 = vmatprep.subr.bf16.mxu0 0
        %1693 = vmatpush1.bf16.msra.mxu0 0
        %1694 = vmatprep.mubr.bf16.mxu0 0
        %1695 = vmatmul.mubr.bf16.gmra.mrb[0].mxu0 %v1660
        %v1696 = vpop.f32.mrb[0].mxu0
        %v1697 = vadd.f32 0.0, %v1696
        %v1698 = vpop.f32.mrb[0].mxu0
        %v1699 = vpop.f32.mrb[0].mxu0
        %v1700 = vadd.f32 0.0, %v1699
        %v1701 = vpop.f32.mrb[0].mxu0
        %1702 = vdwg.mxu0
        %v1707 = vunpack.c.l.b16 %v1636
        %v1708 = vunpack.c.l.b16 %v1637
        %v1709 = vunpack.c.l.b16 %v1638
        %v1710 = vunpack.c.l.b16 %v1639
        %v1711 = vpack.c.b16 %v1708, %v1707
        %v1712 = vpack.c.b16 %v1710, %v1709
        %v1716 = vsel %vm1034, %v1634, 0
        %1718 = vmatprep.subr.bf16.mxu0 0
        %1719 = vmatpush1.bf16.msra.mxu0 %v1711
        %1720 = vmatprep.subr.bf16.mxu0 0
        %1721 = vmatpush1.bf16.msra.mxu0 %v1712
        %1722 = vmatprep.subr.bf16.mxu0 0
        %1723 = vmatpush1.bf16.msra.mxu0 0
        %1724 = vmatprep.subr.bf16.mxu0 0
        %1725 = vmatpush1.bf16.msra.mxu0 0
        %1726 = vmatprep.subr.bf16.mxu0 0
        %1727 = vmatpush1.bf16.msra.mxu0 0
        %1728 = vmatprep.subr.bf16.mxu0 0
        %1729 = vmatpush1.bf16.msra.mxu0 0
        %1730 = vmatprep.subr.bf16.mxu0 0
        %1731 = vmatpush1.bf16.msra.mxu0 0
        %1732 = vmatprep.subr.bf16.mxu0 0
        %1733 = vmatpush1.bf16.msra.mxu0 0
        %1734 = vmatprep.subr.bf16.mxu0 0
        %1735 = vmatpush1.bf16.msra.mxu0 0
        %1736 = vmatprep.subr.bf16.mxu0 0
        %1737 = vmatpush1.bf16.msra.mxu0 0
        %1738 = vmatprep.subr.bf16.mxu0 0
        %1739 = vmatpush1.bf16.msra.mxu0 0
        %1740 = vmatprep.subr.bf16.mxu0 0
        %1741 = vmatpush1.bf16.msra.mxu0 0
        %1742 = vmatprep.subr.bf16.mxu0 0
        %1743 = vmatpush1.bf16.msra.mxu0 0
        %1744 = vmatprep.subr.bf16.mxu0 0
        %1745 = vmatpush1.bf16.msra.mxu0 0
        %1746 = vmatprep.subr.bf16.mxu0 0
        %1747 = vmatpush1.bf16.msra.mxu0 0
        %1748 = vmatprep.subr.bf16.mxu0 0
        %1749 = vmatpush1.bf16.msra.mxu0 0
        %1750 = vmatprep.mubr.bf16.mxu0 0
        %1751 = vmatmul.mubr.bf16.gmra.mrb[0].mxu0 %v1716
        %v1752 = vpop.f32.mrb[0].mxu0
        %v1753 = vadd.f32 %v1697, %v1752
        %v1754 = vpop.f32.mrb[0].mxu0
        %v1755 = vpop.f32.mrb[0].mxu0
        %v1756 = vadd.f32 %v1700, %v1755
        %v1757 = vpop.f32.mrb[0].mxu0
        %1758 = vdwg.mxu0
        %v1759 = vld [vmem:[#allocation2 + $0x1] sm:$0xff]
        %v1760 = vld [vmem:[#allocation2 + $0x9] sm:$0xff]
        %v1761 = vpack.c.bf16 %v1760, %v1759
        %s1762 = scalar_lea.vmem [#allocation19], 16
        %v1763 = vld [vmem:[%s1762] sm:$0xf]
        %v1764 = vld [vmem:[%s1762 + $0x4] sm:$0xf]
        %v1765 = vld [vmem:[%s1762 + $0x8] sm:$0xf]
        %v1766 = vld [vmem:[%s1762 + $0xc] sm:$0xf]
        %v1771 = vunpack.c.l.b16 %v1763
        %v1772 = vunpack.c.l.b16 %v1764
        %v1773 = vunpack.c.l.b16 %v1765
        %v1774 = vunpack.c.l.b16 %v1766
        %v1775 = vpack.c.b16 %v1772, %v1771
        %v1776 = vpack.c.b16 %v1774, %v1773
        %v1780 = vsel %vm1034, %v1761, 0
        %1782 = vmatprep.subr.bf16.mxu0 0
        %1783 = vmatpush1.bf16.msra.mxu0 %v1775
        %1784 = vmatprep.subr.bf16.mxu0 0
        %1785 = vmatpush1.bf16.msra.mxu0 %v1776
        %1786 = vmatprep.subr.bf16.mxu0 0
        %1787 = vmatpush1.bf16.msra.mxu0 0
        %1788 = vmatprep.subr.bf16.mxu0 0
        %1789 = vmatpush1.bf16.msra.mxu0 0
        %1790 = vmatprep.subr.bf16.mxu0 0
        %1791 = vmatpush1.bf16.msra.mxu0 0
        %1792 = vmatprep.subr.bf16.mxu0 0
        %1793 = vmatpush1.bf16.msra.mxu0 0
        %1794 = vmatprep.subr.bf16.mxu0 0
        %1795 = vmatpush1.bf16.msra.mxu0 0
        %1796 = vmatprep.subr.bf16.mxu0 0
        %1797 = vmatpush1.bf16.msra.mxu0 0
        %1798 = vmatprep.subr.bf16.mxu0 0
        %1799 = vmatpush1.bf16.msra.mxu0 0
        %1800 = vmatprep.subr.bf16.mxu0 0
        %1801 = vmatpush1.bf16.msra.mxu0 0
        %1802 = vmatprep.subr.bf16.mxu0 0
        %1803 = vmatpush1.bf16.msra.mxu0 0
        %1804 = vmatprep.subr.bf16.mxu0 0
        %1805 = vmatpush1.bf16.msra.mxu0 0
        %1806 = vmatprep.subr.bf16.mxu0 0
        %1807 = vmatpush1.bf16.msra.mxu0 0
        %1808 = vmatprep.subr.bf16.mxu0 0
        %1809 = vmatpush1.bf16.msra.mxu0 0
        %1810 = vmatprep.subr.bf16.mxu0 0
        %1811 = vmatpush1.bf16.msra.mxu0 0
        %1812 = vmatprep.subr.bf16.mxu0 0
        %1813 = vmatpush1.bf16.msra.mxu0 0
        %1814 = vmatprep.mubr.bf16.mxu0 0
        %1815 = vmatmul.mubr.bf16.gmra.mrb[0].mxu0 %v1780
        %v1816 = vpop.f32.mrb[0].mxu0
        %v1817 = vadd.f32 0.0, %v1816
        %v1818 = vpop.f32.mrb[0].mxu0
        %v1819 = vpop.f32.mrb[0].mxu0
        %v1820 = vadd.f32 0.0, %v1819
        %v1821 = vpop.f32.mrb[0].mxu0
        %1822 = vdwg.mxu0
        %v1823 = vadd.f32 %v1753, %v1817
        %v1824 = vadd.f32 %v1756, %v1820
        %v1825 = vld [vmem:[#allocation2 + $0x3] sm:$0xff]
        %v1826 = vld [vmem:[#allocation2 + $0xb] sm:$0xff]
        %v1827 = vpack.c.bf16 %v1826, %v1825
        %s1828 = scalar_lea.vmem [#allocation19], 48
        %v1829 = vld [vmem:[%s1828] sm:$0xf]
        %v1830 = vld [vmem:[%s1828 + $0x4] sm:$0xf]
        %v1831 = vld [vmem:[%s1828 + $0x8] sm:$0xf]
        %v1832 = vld [vmem:[%s1828 + $0xc] sm:$0xf]
        %v1837 = vunpack.c.l.b16 %v1829
        %v1838 = vunpack.c.l.b16 %v1830
        %v1839 = vunpack.c.l.b16 %v1831
        %v1840 = vunpack.c.l.b16 %v1832
        %v1841 = vpack.c.b16 %v1838, %v1837
        %v1842 = vpack.c.b16 %v1840, %v1839
        %v1846 = vsel %vm1034, %v1827, 0
        %1848 = vmatprep.subr.bf16.mxu0 0
        %1849 = vmatpush1.bf16.msra.mxu0 %v1841
        %1850 = vmatprep.subr.bf16.mxu0 0
        %1851 = vmatpush1.bf16.msra.mxu0 %v1842
        %1852 = vmatprep.subr.bf16.mxu0 0
        %1853 = vmatpush1.bf16.msra.mxu0 0
        %1854 = vmatprep.subr.bf16.mxu0 0
        %1855 = vmatpush1.bf16.msra.mxu0 0
        %1856 = vmatprep.subr.bf16.mxu0 0
        %1857 = vmatpush1.bf16.msra.mxu0 0
        %1858 = vmatprep.subr.bf16.mxu0 0
        %1859 = vmatpush1.bf16.msra.mxu0 0
        %1860 = vmatprep.subr.bf16.mxu0 0
        %1861 = vmatpush1.bf16.msra.mxu0 0
        %1862 = vmatprep.subr.bf16.mxu0 0
        %1863 = vmatpush1.bf16.msra.mxu0 0
        %1864 = vmatprep.subr.bf16.mxu0 0
        %1865 = vmatpush1.bf16.msra.mxu0 0
        %1866 = vmatprep.subr.bf16.mxu0 0
        %1867 = vmatpush1.bf16.msra.mxu0 0
        %1868 = vmatprep.subr.bf16.mxu0 0
        %1869 = vmatpush1.bf16.msra.mxu0 0
        %1870 = vmatprep.subr.bf16.mxu0 0
        %1871 = vmatpush1.bf16.msra.mxu0 0
        %1872 = vmatprep.subr.bf16.mxu0 0
        %1873 = vmatpush1.bf16.msra.mxu0 0
        %1874 = vmatprep.subr.bf16.mxu0 0
        %1875 = vmatpush1.bf16.msra.mxu0 0
        %1876 = vmatprep.subr.bf16.mxu0 0
        %1877 = vmatpush1.bf16.msra.mxu0 0
        %1878 = vmatprep.subr.bf16.mxu0 0
        %1879 = vmatpush1.bf16.msra.mxu0 0
        %1880 = vmatprep.mubr.bf16.mxu0 0
        %1881 = vmatmul.mubr.bf16.gmra.mrb[0].mxu0 %v1846
        %v1882 = vpop.f32.mrb[0].mxu0
        %v1883 = vadd.f32 0.0, %v1882
        %v1884 = vpop.f32.mrb[0].mxu0
        %v1885 = vpop.f32.mrb[0].mxu0
        %v1886 = vadd.f32 0.0, %v1885
        %v1887 = vpop.f32.mrb[0].mxu0
        %1888 = vdwg.mxu0
        %v1889 = vadd.f32 %v1823, %v1883
        %v1890 = vadd.f32 %v1824, %v1886
        %v1891 = vld [vmem:[#allocation2 + $0x4] sm:$0xff]
        %v1892 = vld [vmem:[#allocation2 + $0xc] sm:$0xff]
        %v1893 = vpack.c.bf16 %v1892, %v1891
        %s1894 = scalar_lea.vmem [#allocation19], 64
        %v1895 = vld [vmem:[%s1894] sm:$0xf]
        %v1896 = vld [vmem:[%s1894 + $0x4] sm:$0xf]
        %v1897 = vld [vmem:[%s1894 + $0x8] sm:$0xf]
        %v1898 = vld [vmem:[%s1894 + $0xc] sm:$0xf]
        %v1903 = vunpack.c.l.b16 %v1895
        %v1904 = vunpack.c.l.b16 %v1896
        %v1905 = vunpack.c.l.b16 %v1897
        %v1906 = vunpack.c.l.b16 %v1898
        %v1907 = vpack.c.b16 %v1904, %v1903
        %v1908 = vpack.c.b16 %v1906, %v1905
        %v1912 = vsel %vm1034, %v1893, 0
        %1914 = vmatprep.subr.bf16.mxu0 0
        %1915 = vmatpush1.bf16.msra.mxu0 %v1907
        %1916 = vmatprep.subr.bf16.mxu0 0
        %1917 = vmatpush1.bf16.msra.mxu0 %v1908
        %1918 = vmatprep.subr.bf16.mxu0 0
        %1919 = vmatpush1.bf16.msra.mxu0 0
        %1920 = vmatprep.subr.bf16.mxu0 0
        %1921 = vmatpush1.bf16.msra.mxu0 0
        %1922 = vmatprep.subr.bf16.mxu0 0
        %1923 = vmatpush1.bf16.msra.mxu0 0
        %1924 = vmatprep.subr.bf16.mxu0 0
        %1925 = vmatpush1.bf16.msra.mxu0 0
        %1926 = vmatprep.subr.bf16.mxu0 0
        %1927 = vmatpush1.bf16.msra.mxu0 0
        %1928 = vmatprep.subr.bf16.mxu0 0
        %1929 = vmatpush1.bf16.msra.mxu0 0
        %1930 = vmatprep.subr.bf16.mxu0 0
        %1931 = vmatpush1.bf16.msra.mxu0 0
        %1932 = vmatprep.subr.bf16.mxu0 0
        %1933 = vmatpush1.bf16.msra.mxu0 0
        %1934 = vmatprep.subr.bf16.mxu0 0
        %1935 = vmatpush1.bf16.msra.mxu0 0
        %1936 = vmatprep.subr.bf16.mxu0 0
        %1937 = vmatpush1.bf16.msra.mxu0 0
        %1938 = vmatprep.subr.bf16.mxu0 0
        %1939 = vmatpush1.bf16.msra.mxu0 0
        %1940 = vmatprep.subr.bf16.mxu0 0
        %1941 = vmatpush1.bf16.msra.mxu0 0
        %1942 = vmatprep.subr.bf16.mxu0 0
        %1943 = vmatpush1.bf16.msra.mxu0 0
        %1944 = vmatprep.subr.bf16.mxu0 0
        %1945 = vmatpush1.bf16.msra.mxu0 0
        %1946 = vmatprep.mubr.bf16.mxu0 0
        %1947 = vmatmul.mubr.bf16.gmra.mrb[0].mxu0 %v1912
        %v1948 = vpop.f32.mrb[0].mxu0
        %v1949 = vadd.f32 0.0, %v1948
        %v1950 = vpop.f32.mrb[0].mxu0
        %v1951 = vpop.f32.mrb[0].mxu0
        %v1952 = vadd.f32 0.0, %v1951
        %v1953 = vpop.f32.mrb[0].mxu0
        %1954 = vdwg.mxu0
        %v1955 = vadd.f32 %v1889, %v1949
        %v1956 = vadd.f32 %v1890, %v1952
        %v1957 = vld [vmem:[#allocation20] sm:$0x1]
        %v1959 = vlaneseq
        %v1960 = vshrl.u32 %v1959, 7
        %v1961 = vsub.s32 0, %v1960
        %v1962 = vrot.slane %v1957, %v1961
        %v1964 = vadd.f32 %v1955, %v1962
        %v1965 = vadd.f32 %v1956, %v1962
        %v1966 = vmax.f32 %v1964, 0.0
        %v1967 = vmax.f32 %v1965, 0.0
        %vm1968 = vcmp.ne.f32.partialorder %v1964, %v1964
        %vm1969 = vcmp.ne.f32.partialorder %v1965, %v1965
        %v1970 = vadd.f32 %v1964, 0.0
        %v1971 = vadd.f32 %v1965, 0.0
        %v1972 = vand.u32 2147483647, %v1964
        %v1973 = vand.u32 2147483647, %v1965
        %v1974 = vsub.f32 0.0, %v1972
        %v1975 = vsub.f32 0.0, %v1973
        %v1976 = vmul.f32 %v1974, 1.442695
        %v1977 = vpow.pop %v1976
        %v1978 = vmul.f32 %v1975, 1.442695
        %v1979 = vpow.pop %v1978
        %v1980 = vadd.f32 %v1977, 1.0
        %v1981 = vlog2.pop %v1980
        %v1982 = vmul.f32 %v1981, 0.6931472
        %v1983 = vmul.f32 -0.5, %v1977
        %v1984 = vadd.f32 %v1983, 1.0
        %v1985 = vmul.f32 %v1984, %v1977
        %v1986 = vand.u32 2147483647, %v1977
        %vm1987 = vcmp.lt.f32.partialorder %v1986, 0.0004427343
        %v1988 = vsel %vm1987, %v1985, %v1982
        %v1989 = vadd.f32 %v1979, 1.0
        %v1990 = vlog2.pop %v1989
        %v1991 = vmul.f32 %v1990, 0.6931472
        %v1992 = vmul.f32 -0.5, %v1979
        %v1993 = vadd.f32 %v1992, 1.0
        %v1994 = vmul.f32 %v1993, %v1979
        %v1995 = vand.u32 2147483647, %v1979
        %vm1996 = vcmp.lt.f32.partialorder %v1995, 0.0004427343
        %v1997 = vsel %vm1996, %v1994, %v1991
        %v1998 = vadd.f32 %v1966, %v1988
        %v1999 = vadd.f32 %v1967, %v1997
        %v2000 = vsel %vm1968, %v1970, %v1998
        %v2001 = vsel %vm1969, %v1971, %v1999
        %v2002 = vtanh.pop %v2000
        %v2003 = vtanh.pop %v2001
        %v2004 = vmul.f32 %v1964, %v2002
        %v2005 = vmul.f32 %v1965, %v2003
        %v2006 = vxor.u32 %v2004, 2147483648
        %v2007 = vxor.u32 %v2005, 2147483648
        %v2008 = vmul.f32 %v2006, 1.442695
        %v2009 = vpow.pop %v2008
        %v2010 = vmul.f32 %v2007, 1.442695
        %v2011 = vpow.pop %v2010
        %v2012 = vadd.f32 %v2009, 1.0
        %v2013 = vadd.f32 %v2011, 1.0
        %v2014 = vrcp.pop %v2012
        %v2015 = vmul.f32 1.0, %v2014
        %v2016 = vrcp.pop %v2013
        %v2017 = vmul.f32 1.0, %v2016
        %2020 = vrot.lane.b32.xlu0 %v2015, 96
        %v2021 = vpop.permute.xlu0 %2020
        %2022 = vrot.lane.b32.xlu0 %v2017, 96
        %v2023 = vpop.permute.xlu0 %2022
        %v2026 = vmul.f32 %v2004, %v2021
        %v2027 = vmul.f32 %v2005, %v2023
        %v2028 = vadd.f32 %v1630, %v2026
        %v2029 = vadd.f32 %v1631, %v2027
        %v2030 = vmul.f32 %v2028, %v892
        %v2031 = vmul.f32 %v2029, %v893
        %v2032 = vld [vmem:[%s879] sm:$0x1]
        %v2033 = vld [vmem:[#allocation25] sm:$0xf]
        %v2034 = vld [vmem:[#allocation25 + $0x4] sm:$0xf]
        %v2035 = vld [vmem:[%s18] sm:$0x1]
        %v2038 = vunpack.c.l.b16 %v2033
        %v2039 = vunpack.c.l.b16 %v2034
        %v2040 = vpack.c.b16 %v2039, %v2038
        %vm2042 = vcmask 130048
        %v2044 = vsel %vm2042, %v2032, 0
        %2046 = vmatprep.subr.bf16.mxu0 0
        %2047 = vmatpush1.bf16.msra.mxu0 %v2040
        %2048 = vmatprep.subr.bf16.mxu0 0
        %2049 = vmatpush1.bf16.msra.mxu0 0
        %2050 = vmatprep.subr.bf16.mxu0 0
        %2051 = vmatpush1.bf16.msra.mxu0 0
        %2052 = vmatprep.subr.bf16.mxu0 0
        %2053 = vmatpush1.bf16.msra.mxu0 0
        %2054 = vmatprep.subr.bf16.mxu0 0
        %2055 = vmatpush1.bf16.msra.mxu0 0
        %2056 = vmatprep.subr.bf16.mxu0 0
        %2057 = vmatpush1.bf16.msra.mxu0 0
        %2058 = vmatprep.subr.bf16.mxu0 0
        %2059 = vmatpush1.bf16.msra.mxu0 0
        %2060 = vmatprep.subr.bf16.mxu0 0
        %2061 = vmatpush1.bf16.msra.mxu0 0
        %2062 = vmatprep.subr.bf16.mxu0 0
        %2063 = vmatpush1.bf16.msra.mxu0 0
        %2064 = vmatprep.subr.bf16.mxu0 0
        %2065 = vmatpush1.bf16.msra.mxu0 0
        %2066 = vmatprep.subr.bf16.mxu0 0
        %2067 = vmatpush1.bf16.msra.mxu0 0
        %2068 = vmatprep.subr.bf16.mxu0 0
        %2069 = vmatpush1.bf16.msra.mxu0 0
        %2070 = vmatprep.subr.bf16.mxu0 0
        %2071 = vmatpush1.bf16.msra.mxu0 0
        %2072 = vmatprep.subr.bf16.mxu0 0
        %2073 = vmatpush1.bf16.msra.mxu0 0
        %2074 = vmatprep.subr.bf16.mxu0 0
        %2075 = vmatpush1.bf16.msra.mxu0 0
        %2076 = vmatprep.subr.bf16.mxu0 0
        %2077 = vmatpush1.bf16.msra.mxu0 0
        %2078 = vmatprep.mubr.bf16.mxu0 0
        %2079 = vmatmul.mubr.bf16.gmra.mrb[0].mxu0 %v2044
        %v2080 = vpop.f32.mrb[0].mxu0
        %v2081 = vadd.f32 %v2035, %v2080
        %v2082 = vpop.f32.mrb[0].mxu0
        %v2083 = vpop.f32.mrb[0].mxu0
        %v2084 = vpop.f32.mrb[0].mxu0
        %2085 = vdwg.mxu0
        %v2086 = vmax.f32 %v2081, 0.0
        %v2087 = vpack.c.bf16 %v2086, %v2086
        %v2088 = vld [vmem:[%s19] sm:$0xf]
        %v2089 = vld [vmem:[%s19 + $0x4] sm:$0xf]
        %v2090 = vld [vmem:[%s19 + $0x8] sm:$0xf]
        %v2091 = vld [vmem:[%s19 + $0xc] sm:$0xf]
        %v2092 = vld [vmem:[%s20] sm:$0x1]
        %v2097 = vunpack.c.l.b16 %v2088
        %v2098 = vunpack.c.l.b16 %v2089
        %v2099 = vunpack.c.l.b16 %v2090
        %v2100 = vunpack.c.l.b16 %v2091
        %v2101 = vpack.c.b16 %v2098, %v2097
        %v2102 = vpack.c.b16 %v2100, %v2099
        %v2106 = vsel %vm1034, %v2087, 0
        %2108 = vmatprep.subr.bf16.mxu0 0
        %2109 = vmatpush1.bf16.msra.mxu0 %v2101
        %2110 = vmatprep.subr.bf16.mxu0 0
        %2111 = vmatpush1.bf16.msra.mxu0 %v2102
        %2112 = vmatprep.subr.bf16.mxu0 0
        %2113 = vmatpush1.bf16.msra.mxu0 0
        %2114 = vmatprep.subr.bf16.mxu0 0
        %2115 = vmatpush1.bf16.msra.mxu0 0
        %2116 = vmatprep.subr.bf16.mxu0 0
        %2117 = vmatpush1.bf16.msra.mxu0 0
        %2118 = vmatprep.subr.bf16.mxu0 0
        %2119 = vmatpush1.bf16.msra.mxu0 0
        %2120 = vmatprep.subr.bf16.mxu0 0
        %2121 = vmatpush1.bf16.msra.mxu0 0
        %2122 = vmatprep.subr.bf16.mxu0 0
        %2123 = vmatpush1.bf16.msra.mxu0 0
        %2124 = vmatprep.subr.bf16.mxu0 0
        %2125 = vmatpush1.bf16.msra.mxu0 0
        %2126 = vmatprep.subr.bf16.mxu0 0
        %2127 = vmatpush1.bf16.msra.mxu0 0
        %2128 = vmatprep.subr.bf16.mxu0 0
        %2129 = vmatpush1.bf16.msra.mxu0 0
        %2130 = vmatprep.subr.bf16.mxu0 0
        %2131 = vmatpush1.bf16.msra.mxu0 0
        %2132 = vmatprep.subr.bf16.mxu0 0
        %2133 = vmatpush1.bf16.msra.mxu0 0
        %2134 = vmatprep.subr.bf16.mxu0 0
        %2135 = vmatpush1.bf16.msra.mxu0 0
        %2136 = vmatprep.subr.bf16.mxu0 0
        %2137 = vmatpush1.bf16.msra.mxu0 0
        %2138 = vmatprep.subr.bf16.mxu0 0
        %2139 = vmatpush1.bf16.msra.mxu0 0
        %2140 = vmatprep.mubr.bf16.mxu0 0
        %2141 = vmatmul.mubr.bf16.gmra.mrb[0].mxu0 %v2106
        %v2142 = vpop.f32.mrb[0].mxu0
        %v2143 = vadd.f32 %v2092, %v2142
        %v2144 = vpop.f32.mrb[0].mxu0
        %v2145 = vpop.f32.mrb[0].mxu0
        %v2146 = vpop.f32.mrb[0].mxu0
        %2147 = vdwg.mxu0
        %v2148 = vpack.c.bf16 %v2031, %v2030
        %v2149 = vld [vmem:[%s13] sm:$0xf]
        %v2150 = vld [vmem:[%s13 + $0x4] sm:$0xf]
        %v2151 = vld [vmem:[%s13 + $0x8] sm:$0xf]
        %v2152 = vld [vmem:[%s13 + $0xc] sm:$0xf]
        %v2153 = vld [vmem:[#allocation22] sm:$0x1]
        %v2155 = vlaneseq
        %v2156 = vshrl.u32 %v2155, 7
        %v2157 = vsub.s32 0, %v2156
        %v2158 = vrot.slane %v2153, %v2157
        %v2164 = vunpack.c.l.b16 %v2149
        %v2165 = vunpack.c.l.b16 %v2150
        %v2166 = vunpack.c.l.b16 %v2151
        %v2167 = vunpack.c.l.b16 %v2152
        %v2168 = vpack.c.b16 %v2165, %v2164
        %v2169 = vpack.c.b16 %v2167, %v2166
        %v2173 = vsel %vm1034, %v2148, 0
        %2175 = vmatprep.subr.bf16.mxu0 0
        %2176 = vmatpush1.bf16.msra.mxu0 %v2168
        %2177 = vmatprep.subr.bf16.mxu0 0
        %2178 = vmatpush1.bf16.msra.mxu0 %v2169
        %2179 = vmatprep.subr.bf16.mxu0 0
        %2180 = vmatpush1.bf16.msra.mxu0 0
        %2181 = vmatprep.subr.bf16.mxu0 0
        %2182 = vmatpush1.bf16.msra.mxu0 0
        %2183 = vmatprep.subr.bf16.mxu0 0
        %2184 = vmatpush1.bf16.msra.mxu0 0
        %2185 = vmatprep.subr.bf16.mxu0 0
        %2186 = vmatpush1.bf16.msra.mxu0 0
        %2187 = vmatprep.subr.bf16.mxu0 0
        %2188 = vmatpush1.bf16.msra.mxu0 0
        %2189 = vmatprep.subr.bf16.mxu0 0
        %2190 = vmatpush1.bf16.msra.mxu0 0
        %2191 = vmatprep.subr.bf16.mxu0 0
        %2192 = vmatpush1.bf16.msra.mxu0 0
        %2193 = vmatprep.subr.bf16.mxu0 0
        %2194 = vmatpush1.bf16.msra.mxu0 0
        %2195 = vmatprep.subr.bf16.mxu0 0
        %2196 = vmatpush1.bf16.msra.mxu0 0
        %2197 = vmatprep.subr.bf16.mxu0 0
        %2198 = vmatpush1.bf16.msra.mxu0 0
        %2199 = vmatprep.subr.bf16.mxu0 0
        %2200 = vmatpush1.bf16.msra.mxu0 0
        %2201 = vmatprep.subr.bf16.mxu0 0
        %2202 = vmatpush1.bf16.msra.mxu0 0
        %2203 = vmatprep.subr.bf16.mxu0 0
        %2204 = vmatpush1.bf16.msra.mxu0 0
        %2205 = vmatprep.subr.bf16.mxu0 0
        %2206 = vmatpush1.bf16.msra.mxu0 0
        %2207 = vmatprep.mubr.bf16.mxu0 0
        %2208 = vmatmul.mubr.bf16.gmra.mrb[0].mxu0 %v2173
        %v2209 = vpop.f32.mrb[0].mxu0
        %v2210 = vadd.f32 %v2158, %v2209
        %v2211 = vpop.f32.mrb[0].mxu0
        %v2212 = vpop.f32.mrb[0].mxu0
        %v2213 = vadd.f32 %v2158, %v2212
        %v2214 = vpop.f32.mrb[0].mxu0
        %2215 = vdwg.mxu0
        %v2216 = vpack.c.bf16 %v2213, %v2210
        %2218 = vrot.lane.b32.xlu0 %v2216, 96
        %v2219 = vpop.permute.xlu0 %2218
        %v2221 = vsel %vm2042, %v2216, 0
        %v2224 = vsel %vm2042, %v2219, 0
        %2226 = vmatprep.subr.bf16.mxu0 0
        %2227 = vmatpush1.bf16.xpose.msra.mxu0 %v2224
        %2228 = vmatprep.subr.bf16.mxu0 0
        %2229 = vmatpush1.bf16.xpose.msra.mxu0 0
        %2230 = vmatprep.subr.bf16.mxu0 0
        %2231 = vmatpush1.bf16.xpose.msra.mxu0 0
        %2232 = vmatprep.subr.bf16.mxu0 0
        %2233 = vmatpush1.bf16.xpose.msra.mxu0 0
        %2234 = vmatprep.subr.bf16.mxu0 0
        %2235 = vmatpush1.bf16.xpose.msra.mxu0 0
        %2236 = vmatprep.subr.bf16.mxu0 0
        %2237 = vmatpush1.bf16.xpose.msra.mxu0 0
        %2238 = vmatprep.subr.bf16.mxu0 0
        %2239 = vmatpush1.bf16.xpose.msra.mxu0 0
        %2240 = vmatprep.subr.bf16.mxu0 0
        %2241 = vmatpush1.bf16.xpose.msra.mxu0 0
        %2242 = vmatprep.subr.bf16.mxu0 0
        %2243 = vmatpush1.bf16.xpose.msra.mxu0 0
        %2244 = vmatprep.subr.bf16.mxu0 0
        %2245 = vmatpush1.bf16.xpose.msra.mxu0 0
        %2246 = vmatprep.subr.bf16.mxu0 0
        %2247 = vmatpush1.bf16.xpose.msra.mxu0 0
        %2248 = vmatprep.subr.bf16.mxu0 0
        %2249 = vmatpush1.bf16.xpose.msra.mxu0 0
        %2250 = vmatprep.subr.bf16.mxu0 0
        %2251 = vmatpush1.bf16.xpose.msra.mxu0 0
        %2252 = vmatprep.subr.bf16.mxu0 0
        %2253 = vmatpush1.bf16.xpose.msra.mxu0 0
        %2254 = vmatprep.subr.bf16.mxu0 0
        %2255 = vmatpush1.bf16.xpose.msra.mxu0 0
        %2256 = vmatprep.subr.bf16.mxu0 0
        %2257 = vmatpush1.bf16.xpose.msra.mxu0 0
        %2258 = vmatprep.mubr.bf16.mxu0 0
        %2259 = vmatmul.mubr.bf16.gmra.mrb[0].mxu0 %v2221
        %v2260 = vpop.f32.mrb[0].mxu0
        %v2261 = vadd.f32 0.0, %v2260
        %v2262 = vpop.f32.mrb[0].mxu0
        %v2263 = vpop.f32.mrb[0].mxu0
        %v2264 = vadd.f32 0.0, %v2263
        %v2265 = vpop.f32.mrb[0].mxu0
        %2266 = vdwg.mxu0
        %v2267 = vsel %vm894, 1, 0
        %vm2268 = vcmp.eq.s32.totalorder %v2267, 1
        %v2269 = vsel %vm2268, %v2261, -1e+30
        %v2270 = vsel %vm2268, %v2264, -1e+30
        %v2271 = vsel %vm2042, %v2269, -inf
        %2272 = vmax.xlane.f32.xlu0 %v2271
        %v2273 = vpop.xlane.xlu0 %2272
        %v2274 = vsel %vm2042, %v2270, -inf
        %2275 = vmax.xlane.f32.xlu0 %v2274
        %v2276 = vpop.xlane.xlu0 %2275
        %v2277 = vsub.f32 %v2269, %v2273
        %v2278 = vsub.f32 %v2270, %v2276
        %v2279 = vmul.f32 %v2277, 1.442695
        %v2280 = vpow.pop %v2279
        %v2281 = vmul.f32 %v2278, 1.442695
        %v2282 = vpow.pop %v2281
        %v2283 = vsel %vm2042, %v2280, 0.0
        %2284 = vadd.xlane.f32.xlu0 %v2283
        %v2285 = vpop.xlane.xlu0 %2284
        %v2286 = vsel %vm2042, %v2282, 0.0
        %2287 = vadd.xlane.f32.xlu0 %v2286
        %v2288 = vpop.xlane.xlu0 %2287
        %v2289 = vrcp.pop %v2285
        %v2290 = vrcp.pop %v2288
        %v2291 = vmul.f32 %v2280, %v2289
        %v2292 = vmul.f32 %v2282, %v2290
        %v2293 = vpack.c.bf16 %v2292, %v2291
        %2294 = vrot.lane.b32.xlu0 %v2216, 64
        %v2295 = vpop.permute.xlu0 %2294
        %v2298 = vsel %vm2042, %v2293, 0
        %2300 = vmatprep.subr.bf16.mxu0 0
        %2301 = vmatpush1.bf16.msra.mxu0 %v2295
        %2302 = vmatprep.subr.bf16.mxu0 0
        %2303 = vmatpush1.bf16.msra.mxu0 0
        %2304 = vmatprep.subr.bf16.mxu0 0
        %2305 = vmatpush1.bf16.msra.mxu0 0
        %2306 = vmatprep.subr.bf16.mxu0 0
        %2307 = vmatpush1.bf16.msra.mxu0 0
        %2308 = vmatprep.subr.bf16.mxu0 0
        %2309 = vmatpush1.bf16.msra.mxu0 0
        %2310 = vmatprep.subr.bf16.mxu0 0
        %2311 = vmatpush1.bf16.msra.mxu0 0
        %2312 = vmatprep.subr.bf16.mxu0 0
        %2313 = vmatpush1.bf16.msra.mxu0 0
        %2314 = vmatprep.subr.bf16.mxu0 0
        %2315 = vmatpush1.bf16.msra.mxu0 0
        %2316 = vmatprep.subr.bf16.mxu0 0
        %2317 = vmatpush1.bf16.msra.mxu0 0
        %2318 = vmatprep.subr.bf16.mxu0 0
        %2319 = vmatpush1.bf16.msra.mxu0 0
        %2320 = vmatprep.subr.bf16.mxu0 0
        %2321 = vmatpush1.bf16.msra.mxu0 0
        %2322 = vmatprep.subr.bf16.mxu0 0
        %2323 = vmatpush1.bf16.msra.mxu0 0
        %2324 = vmatprep.subr.bf16.mxu0 0
        %2325 = vmatpush1.bf16.msra.mxu0 0
        %2326 = vmatprep.subr.bf16.mxu0 0
        %2327 = vmatpush1.bf16.msra.mxu0 0
        %2328 = vmatprep.subr.bf16.mxu0 0
        %2329 = vmatpush1.bf16.msra.mxu0 0
        %2330 = vmatprep.subr.bf16.mxu0 0
        %2331 = vmatpush1.bf16.msra.mxu0 0
        %2332 = vmatprep.mubr.bf16.mxu0 0
        %2333 = vmatmul.mubr.bf16.gmra.mrb[0].mxu0 %v2298
        %v2334 = vpop.f32.mrb[0].mxu0
        %v2335 = vadd.f32 0.0, %v2334
        %v2336 = vpop.f32.mrb[0].mxu0
        %v2337 = vpop.f32.mrb[0].mxu0
        %v2338 = vadd.f32 0.0, %v2337
        %v2339 = vpop.f32.mrb[0].mxu0
        %2340 = vdwg.mxu0
        %2341 = vrot.lane.b32.xlu0 %v2216, 112
        %v2342 = vpop.permute.xlu0 %2341
        %2343 = vrot.lane.b32.xlu0 %v2216, 80
        %v2344 = vpop.permute.xlu0 %2343
        %v2346 = vsel %vm2042, %v2342, 0
        %v2349 = vsel %vm2042, %v2344, 0
        %2351 = vmatprep.subr.bf16.mxu0 0
        %2352 = vmatpush1.bf16.xpose.msra.mxu0 %v2349
        %2353 = vmatprep.subr.bf16.mxu0 0
        %2354 = vmatpush1.bf16.xpose.msra.mxu0 0
        %2355 = vmatprep.subr.bf16.mxu0 0
        %2356 = vmatpush1.bf16.xpose.msra.mxu0 0
        %2357 = vmatprep.subr.bf16.mxu0 0
        %2358 = vmatpush1.bf16.xpose.msra.mxu0 0
        %2359 = vmatprep.subr.bf16.mxu0 0
        %2360 = vmatpush1.bf16.xpose.msra.mxu0 0
        %2361 = vmatprep.subr.bf16.mxu0 0
        %2362 = vmatpush1.bf16.xpose.msra.mxu0 0
        %2363 = vmatprep.subr.bf16.mxu0 0
        %2364 = vmatpush1.bf16.xpose.msra.mxu0 0
        %2365 = vmatprep.subr.bf16.mxu0 0
        %2366 = vmatpush1.bf16.xpose.msra.mxu0 0
        %2367 = vmatprep.subr.bf16.mxu0 0
        %2368 = vmatpush1.bf16.xpose.msra.mxu0 0
        %2369 = vmatprep.subr.bf16.mxu0 0
        %2370 = vmatpush1.bf16.xpose.msra.mxu0 0
        %2371 = vmatprep.subr.bf16.mxu0 0
        %2372 = vmatpush1.bf16.xpose.msra.mxu0 0
        %2373 = vmatprep.subr.bf16.mxu0 0
        %2374 = vmatpush1.bf16.xpose.msra.mxu0 0
        %2375 = vmatprep.subr.bf16.mxu0 0
        %2376 = vmatpush1.bf16.xpose.msra.mxu0 0
        %2377 = vmatprep.subr.bf16.mxu0 0
        %2378 = vmatpush1.bf16.xpose.msra.mxu0 0
        %2379 = vmatprep.subr.bf16.mxu0 0
        %2380 = vmatpush1.bf16.xpose.msra.mxu0 0
        %2381 = vmatprep.subr.bf16.mxu0 0
        %2382 = vmatpush1.bf16.xpose.msra.mxu0 0
        %2383 = vmatprep.mubr.bf16.mxu0 0
        %2384 = vmatmul.mubr.bf16.gmra.mrb[0].mxu0 %v2346
        %v2385 = vpop.f32.mrb[0].mxu0
        %v2386 = vadd.f32 0.0, %v2385
        %v2387 = vpop.f32.mrb[0].mxu0
        %v2388 = vpop.f32.mrb[0].mxu0
        %v2389 = vadd.f32 0.0, %v2388
        %v2390 = vpop.f32.mrb[0].mxu0
        %2391 = vdwg.mxu0
        %v2392 = vsel %vm2268, %v2386, -1e+30
        %v2393 = vsel %vm2268, %v2389, -1e+30
        %v2394 = vsel %vm2042, %v2392, -inf
        %2395 = vmax.xlane.f32.xlu0 %v2394
        %v2396 = vpop.xlane.xlu0 %2395
        %v2397 = vsel %vm2042, %v2393, -inf
        %2398 = vmax.xlane.f32.xlu0 %v2397
        %v2399 = vpop.xlane.xlu0 %2398
        %v2400 = vsub.f32 %v2392, %v2396
        %v2401 = vsub.f32 %v2393, %v2399
        %v2402 = vmul.f32 %v2400, 1.442695
        %v2403 = vpow.pop %v2402
        %v2404 = vmul.f32 %v2401, 1.442695
        %v2405 = vpow.pop %v2404
        %v2406 = vsel %vm2042, %v2403, 0.0
        %2407 = vadd.xlane.f32.xlu0 %v2406
        %v2408 = vpop.xlane.xlu0 %2407
        %v2409 = vsel %vm2042, %v2405, 0.0
        %2410 = vadd.xlane.f32.xlu0 %v2409
        %v2411 = vpop.xlane.xlu0 %2410
        %v2412 = vrcp.pop %v2408
        %v2413 = vrcp.pop %v2411
        %v2414 = vmul.f32 %v2403, %v2412
        %v2415 = vmul.f32 %v2405, %v2413
        %v2416 = vpack.c.bf16 %v2415, %v2414
        %2417 = vrot.lane.b32.xlu0 %v2216, 48
        %v2418 = vpop.permute.xlu0 %2417
        %v2421 = vsel %vm2042, %v2416, 0
        %2423 = vmatprep.subr.bf16.mxu0 0
        %2424 = vmatpush1.bf16.msra.mxu0 %v2418
        %2425 = vmatprep.subr.bf16.mxu0 0
        %2426 = vmatpush1.bf16.msra.mxu0 0
        %2427 = vmatprep.subr.bf16.mxu0 0
        %2428 = vmatpush1.bf16.msra.mxu0 0
        %2429 = vmatprep.subr.bf16.mxu0 0
        %2430 = vmatpush1.bf16.msra.mxu0 0
        %2431 = vmatprep.subr.bf16.mxu0 0
        %2432 = vmatpush1.bf16.msra.mxu0 0
        %2433 = vmatprep.subr.bf16.mxu0 0
        %2434 = vmatpush1.bf16.msra.mxu0 0
        %2435 = vmatprep.subr.bf16.mxu0 0
        %2436 = vmatpush1.bf16.msra.mxu0 0
        %2437 = vmatprep.subr.bf16.mxu0 0
        %2438 = vmatpush1.bf16.msra.mxu0 0
        %2439 = vmatprep.subr.bf16.mxu0 0
        %2440 = vmatpush1.bf16.msra.mxu0 0
        %2441 = vmatprep.subr.bf16.mxu0 0
        %2442 = vmatpush1.bf16.msra.mxu0 0
        %2443 = vmatprep.subr.bf16.mxu0 0
        %2444 = vmatpush1.bf16.msra.mxu0 0
        %2445 = vmatprep.subr.bf16.mxu0 0
        %2446 = vmatpush1.bf16.msra.mxu0 0
        %2447 = vmatprep.subr.bf16.mxu0 0
        %2448 = vmatpush1.bf16.msra.mxu0 0
        %2449 = vmatprep.subr.bf16.mxu0 0
        %2450 = vmatpush1.bf16.msra.mxu0 0
        %2451 = vmatprep.subr.bf16.mxu0 0
        %2452 = vmatpush1.bf16.msra.mxu0 0
        %2453 = vmatprep.subr.bf16.mxu0 0
        %2454 = vmatpush1.bf16.msra.mxu0 0
        %2455 = vmatprep.mubr.bf16.mxu0 0
        %2456 = vmatmul.mubr.bf16.gmra.mrb[0].mxu0 %v2421
        %v2457 = vpop.f32.mrb[0].mxu0
        %v2458 = vadd.f32 0.0, %v2457
        %v2459 = vpop.f32.mrb[0].mxu0
        %v2460 = vpop.f32.mrb[0].mxu0
        %v2461 = vadd.f32 0.0, %v2460
        %v2462 = vpop.f32.mrb[0].mxu0
        %2463 = vdwg.mxu0
        %2466 = vrot.lane.b32.xlu0 %v2458, 16
        %v2467 = vpop.permute.xlu0 %2466
        %2468 = vrot.lane.b32.xlu0 %v2461, 16
        %v2469 = vpop.permute.xlu0 %2468
        %v2472 = vsel %vm2042, %v2335, %v2467
        %v2473 = vsel %vm2042, %v2338, %v2469
        %v2474 = vpack.c.bf16 %v2473, %v2472
        %v2475 = vld [vmem:[%s15] sm:$0xf]
        %v2476 = vld [vmem:[%s15 + $0x4] sm:$0xf]
        %v2477 = vld [vmem:[%s15 + $0x8] sm:$0xf]
        %v2478 = vld [vmem:[%s15 + $0xc] sm:$0xf]
        %v2479 = vld [vmem:[#allocation23] sm:$0x1]
        %v2481 = vlaneseq
        %v2482 = vshrl.u32 %v2481, 7
        %v2483 = vsub.s32 0, %v2482
        %v2484 = vrot.slane %v2479, %v2483
        %v2490 = vunpack.c.l.b16 %v2475
        %v2491 = vunpack.c.l.b16 %v2476
        %v2492 = vunpack.c.l.b16 %v2477
        %v2493 = vunpack.c.l.b16 %v2478
        %v2494 = vpack.c.b16 %v2491, %v2490
        %v2495 = vpack.c.b16 %v2493, %v2492
        %v2499 = vsel %vm1034, %v2474, 0
        %2501 = vmatprep.subr.bf16.mxu0 0
        %2502 = vmatpush1.bf16.msra.mxu0 %v2494
        %2503 = vmatprep.subr.bf16.mxu0 0
        %2504 = vmatpush1.bf16.msra.mxu0 %v2495
        %2505 = vmatprep.subr.bf16.mxu0 0
        %2506 = vmatpush1.bf16.msra.mxu0 0
        %2507 = vmatprep.subr.bf16.mxu0 0
        %2508 = vmatpush1.bf16.msra.mxu0 0
        %2509 = vmatprep.subr.bf16.mxu0 0
        %2510 = vmatpush1.bf16.msra.mxu0 0
        %2511 = vmatprep.subr.bf16.mxu0 0
        %2512 = vmatpush1.bf16.msra.mxu0 0
        %2513 = vmatprep.subr.bf16.mxu0 0
        %2514 = vmatpush1.bf16.msra.mxu0 0
        %2515 = vmatprep.subr.bf16.mxu0 0
        %2516 = vmatpush1.bf16.msra.mxu0 0
        %2517 = vmatprep.subr.bf16.mxu0 0
        %2518 = vmatpush1.bf16.msra.mxu0 0
        %2519 = vmatprep.subr.bf16.mxu0 0
        %2520 = vmatpush1.bf16.msra.mxu0 0
        %2521 = vmatprep.subr.bf16.mxu0 0
        %2522 = vmatpush1.bf16.msra.mxu0 0
        %2523 = vmatprep.subr.bf16.mxu0 0
        %2524 = vmatpush1.bf16.msra.mxu0 0
        %2525 = vmatprep.subr.bf16.mxu0 0
        %2526 = vmatpush1.bf16.msra.mxu0 0
        %2527 = vmatprep.subr.bf16.mxu0 0
        %2528 = vmatpush1.bf16.msra.mxu0 0
        %2529 = vmatprep.subr.bf16.mxu0 0
        %2530 = vmatpush1.bf16.msra.mxu0 0
        %2531 = vmatprep.subr.bf16.mxu0 0
        %2532 = vmatpush1.bf16.msra.mxu0 0
        %2533 = vmatprep.mubr.bf16.mxu0 0
        %2534 = vmatmul.mubr.bf16.gmra.mrb[0].mxu0 %v2499
        %v2535 = vpop.f32.mrb[0].mxu0
        %v2536 = vadd.f32 %v2484, %v2535
        %v2537 = vpop.f32.mrb[0].mxu0
        %v2538 = vpop.f32.mrb[0].mxu0
        %v2539 = vadd.f32 %v2484, %v2538
        %v2540 = vpop.f32.mrb[0].mxu0
        %2541 = vdwg.mxu0
        %v2542 = vadd.f32 %v2030, %v2536
        %v2543 = vadd.f32 %v2031, %v2539
        %v2544 = vlaneseq
        %v2545 = vshrl.u32 %v2544, 7
        %v2546 = vsub.s32 0, %v2545
        %v2547 = vrot.slane %v2143, %v2546
        %v2548 = vadd.f32 %v2542, %v2547
        %v2549 = vadd.f32 %v2543, %v2547
        %v2550 = vpack.c.bf16 %v2549, %v2548
        %v2551 = vld [vmem:[%s21] sm:$0xf]
        %v2552 = vld [vmem:[%s21 + $0x4] sm:$0xf]
        %v2553 = vld [vmem:[%s21 + $0x8] sm:$0xf]
        %v2554 = vld [vmem:[%s21 + $0xc] sm:$0xf]
        %v2555 = vld [vmem:[%s22] sm:$0x1]
        %v2557 = vlaneseq
        %v2558 = vshrl.u32 %v2557, 7
        %v2559 = vsub.s32 0, %v2558
        %v2560 = vrot.slane %v2555, %v2559
        %v2566 = vunpack.c.l.b16 %v2551
        %v2567 = vunpack.c.l.b16 %v2552
        %v2568 = vunpack.c.l.b16 %v2553
        %v2569 = vunpack.c.l.b16 %v2554
        %v2570 = vpack.c.b16 %v2567, %v2566
        %v2571 = vpack.c.b16 %v2569, %v2568
        %v2575 = vsel %vm1034, %v2550, 0
        %2577 = vmatprep.subr.bf16.mxu0 0
        %2578 = vmatpush1.bf16.msra.mxu0 %v2570
        %2579 = vmatprep.subr.bf16.mxu0 0
        %2580 = vmatpush1.bf16.msra.mxu0 %v2571
        %2581 = vmatprep.subr.bf16.mxu0 0
        %2582 = vmatpush1.bf16.msra.mxu0 0
        %2583 = vmatprep.subr.bf16.mxu0 0
        %2584 = vmatpush1.bf16.msra.mxu0 0
        %2585 = vmatprep.subr.bf16.mxu0 0
        %2586 = vmatpush1.bf16.msra.mxu0 0
        %2587 = vmatprep.subr.bf16.mxu0 0
        %2588 = vmatpush1.bf16.msra.mxu0 0
        %2589 = vmatprep.subr.bf16.mxu0 0
        %2590 = vmatpush1.bf16.msra.mxu0 0
        %2591 = vmatprep.subr.bf16.mxu0 0
        %2592 = vmatpush1.bf16.msra.mxu0 0
        %2593 = vmatprep.subr.bf16.mxu0 0
        %2594 = vmatpush1.bf16.msra.mxu0 0
        %2595 = vmatprep.subr.bf16.mxu0 0
        %2596 = vmatpush1.bf16.msra.mxu0 0
        %2597 = vmatprep.subr.bf16.mxu0 0
        %2598 = vmatpush1.bf16.msra.mxu0 0
        %2599 = vmatprep.subr.bf16.mxu0 0
        %2600 = vmatpush1.bf16.msra.mxu0 0
        %2601 = vmatprep.subr.bf16.mxu0 0
        %2602 = vmatpush1.bf16.msra.mxu0 0
        %2603 = vmatprep.subr.bf16.mxu0 0
        %2604 = vmatpush1.bf16.msra.mxu0 0
        %2605 = vmatprep.subr.bf16.mxu0 0
        %2606 = vmatpush1.bf16.msra.mxu0 0
        %2607 = vmatprep.subr.bf16.mxu0 0
        %2608 = vmatpush1.bf16.msra.mxu0 0
        %2609 = vmatprep.mubr.bf16.mxu0 0
        %2610 = vmatmul.mubr.bf16.gmra.mrb[0].mxu0 %v2575
        %v2611 = vpop.f32.mrb[0].mxu0
        %v2612 = vadd.f32 %v2560, %v2611
        %v2613 = vpop.f32.mrb[0].mxu0
        %v2614 = vpop.f32.mrb[0].mxu0
        %v2615 = vadd.f32 %v2560, %v2614
        %v2616 = vpop.f32.mrb[0].mxu0
        %2617 = vdwg.mxu0
        %v2618 = vmax.f32 %v2612, 0.0
        %v2619 = vmax.f32 %v2615, 0.0
        %vm2620 = vcmp.ne.f32.partialorder %v2612, %v2612
        %vm2621 = vcmp.ne.f32.partialorder %v2615, %v2615
        %v2622 = vadd.f32 %v2612, 0.0
        %v2623 = vadd.f32 %v2615, 0.0
        %v2624 = vand.u32 2147483647, %v2612
        %v2625 = vand.u32 2147483647, %v2615
        %v2626 = vsub.f32 0.0, %v2624
        %v2627 = vsub.f32 0.0, %v2625
        %v2628 = vmul.f32 %v2626, 1.442695
        %v2629 = vpow.pop %v2628
        %v2630 = vmul.f32 %v2627, 1.442695
        %v2631 = vpow.pop %v2630
        %v2632 = vadd.f32 %v2629, 1.0
        %v2633 = vlog2.pop %v2632
        %v2634 = vmul.f32 %v2633, 0.6931472
        %v2635 = vmul.f32 -0.5, %v2629
        %v2636 = vadd.f32 %v2635, 1.0
        %v2637 = vmul.f32 %v2636, %v2629
        %v2638 = vand.u32 2147483647, %v2629
        %vm2639 = vcmp.lt.f32.partialorder %v2638, 0.0004427343
        %v2640 = vsel %vm2639, %v2637, %v2634
        %v2641 = vadd.f32 %v2631, 1.0
        %v2642 = vlog2.pop %v2641
        %v2643 = vmul.f32 %v2642, 0.6931472
        %v2644 = vmul.f32 -0.5, %v2631
        %v2645 = vadd.f32 %v2644, 1.0
        %v2646 = vmul.f32 %v2645, %v2631
        %v2647 = vand.u32 2147483647, %v2631
        %vm2648 = vcmp.lt.f32.partialorder %v2647, 0.0004427343
        %v2649 = vsel %vm2648, %v2646, %v2643
        %v2650 = vadd.f32 %v2618, %v2640
        %v2651 = vadd.f32 %v2619, %v2649
        %v2652 = vsel %vm2620, %v2622, %v2650
        %v2653 = vsel %vm2621, %v2623, %v2651
        %v2654 = vtanh.pop %v2652
        %v2655 = vtanh.pop %v2653
        %v2656 = vmul.f32 %v2612, %v2654
        %v2657 = vmul.f32 %v2615, %v2655
        %v2658 = vmul.f32 %v2656, %v892
        %v2659 = vmul.f32 %v2657, %v893
        %v2660 = vadd.f32 %v2658, %v2659
        %v2661 = vrot.slane %v2660, 4
        %v2662 = vadd.f32 %v2660, %v2661
        %v2663 = vrot.slane %v2662, 2
        %v2664 = vadd.f32 %v2662, %v2663
        %v2665 = vrot.slane %v2664, 1
        %v2666 = vadd.f32 %v2664, %v2665
        %v2667 = vadd.f32 %v892, %v893
        %v2668 = vrot.slane %v2667, 4
        %v2669 = vadd.f32 %v2667, %v2668
        %v2670 = vrot.slane %v2669, 2
        %v2671 = vadd.f32 %v2669, %v2670
        %v2672 = vrot.slane %v2671, 1
        %v2673 = vadd.f32 %v2671, %v2672
        %v2674 = vrcp.pop %v2673
        %v2675 = vmul.f32 %v2666, %v2674
        %2676 = vst [vmem:[%s876] sm:$0x1] %v2675
        %s2677 = sand.u32 %s530, 1
        %s2678 = scalar_lea.sflag [#allocation7], %s2677
        %s2679 = sand.u32 %s530, 1
        %s2680 = scalar_lea.vmem [#allocation26], %s2679
        // Predicated region
        $region161: #{tpu_custom_call.1} parent=107 // pred_check
          %p2681 = pneg %p540
        $region162: #{tpu_custom_call.1} parent=107 // pred_check_branch
          %2683 = sbr.rel (%p2681) target = $region164
        $region163: #{tpu_custom_call.1} parent=107 // pred_region
          %s2685 = ssub.s32 16, 16
          %2686 = vsyncadd %s2678, %s2685
          %s2687 = smul.addr %s50, 16
          %s2688 = scalar_lea.hbm %s23, %s2687
          %s2690 = sshll.u32 %s2680, 4
          %s2691 = int_to_ptr.vmem [resolvable:$true] %s2690
          %2693 = dma.vmem_to_hbm [thread:$0]  %s2691, 16, %s2688, %s2678
        $region164: #{tpu_custom_call.1} parent=107 // pred_fallthru
          _
      $region108: #{tpu_custom_call.1} parent=5 // pred_fallthru
        _
      %p2694 = scmp.le.s32.totalorder 2, %s45
      // Predicated region
      $region165: #{tpu_custom_call.1} parent=5 // pred_check
        %p2695 = pneg %p2694
      $region166: #{tpu_custom_call.1} parent=5 // pred_check_branch
        %2697 = sbr.rel (%p2695) target = $region168
      $region167: #{tpu_custom_call.1} parent=5 // pred_region
        %s2698 = ssub.s32 %s45, 2
        // Predicated region
        $region169: #{tpu_custom_call.1} parent=167 // pred_check
          %p2699 = pneg %p546
        $region170: #{tpu_custom_call.1} parent=167 // pred_check_branch
          %2701 = sbr.rel (%p2699) target = $region172
        $region171: #{tpu_custom_call.1} parent=167 // pred_region
          %s2702 = sand.u32 %s531, 1
          %s2703 = scalar_lea.sflag [#allocation7], %s2702
          %s2704 = sand.u32 %s531, 1
          %s2705 = scalar_lea.vmem [#allocation26], %s2704
          %2706 = dma.done %s2703, 16
        $region172: #{tpu_custom_call.1} parent=167 // pred_fallthru
          _
      $region168: #{tpu_custom_call.1} parent=5 // pred_fallthru
        _
    $region6: #{tpu_custom_call.1} parent=1 // loop_footer
      %s49 = sadd.s32 1, %s45
    $region7: #{tpu_custom_call.1} parent=1 // loop_footer_branch
      %44 = sbr.rel target = $region3
    $region8: #{tpu_custom_call.1} parent=1 // loop_exit
      _
    %2707 = vsyncpa [#allocation6], 1
    %s2708 = scalar_lea.sflag [#allocation6], 1
    %2709 = vsyncpa %s2708, 1
    %2710 = vsyncpa [#allocation9], 1
    %2711 = vsyncpa [#allocation12], 1
    %2712 = vsyncpa [#allocation15], 1
    %2713 = vsyncpa [#allocation18], 1
    %2714 = vsyncpa [#allocation21], 1
    %2715 = vsyncpa [#allocation24], 1
    %2716 = vsyncpa [#allocation7], 1
    %s2717 = scalar_lea.sflag [#allocation7], 1
    %2718 = vsyncpa %s2717, 1

</llo_original>
